<compile_context>
chip_gen: v7x
topology: tpu7x:2x2x1
jax: 0.10.0
libtpu: 0.0.40
codegen_flags: <defaults>
</compile_context>

<pallas_src>
import jax
import jax.numpy as jnp
from jax.experimental import pallas as pl
from jax.experimental.pallas import tpu as pltpu

# ---------------- model hyperparameters (args) ----------------
D_INPUT = 3        # use_rri=False
D_MODEL = 64       # args.d_model
N_CLUSTERS = 16    # args.n_clusters
BN_EPS = 1e-5

# In-kernel MAC counts per point (for pl.CostEstimate).
ENC_MACS = D_INPUT * 64 + 64 * 128 + 128 * 256 + 256 * D_MODEL
DEC_MACS = D_MODEL * 512 + 512 * 256 + 256 * 128 + 128 * N_CLUSTERS  # split-w5


# ---------------- kernel bodies ----------------
def _cbr(w_ref, b_ref, h):
    """1x1 conv (+ folded BN) + ReLU.  bf16 MXU operands, f32 accumulation."""
    z = jnp.dot(w_ref[...], h, preferred_element_type=jnp.float32) + b_ref[...]
    return jnp.maximum(z, 0.0)


def _encoder(x, w1, b1, w2, b2, w3, b3, w4, b4):
    h = _cbr(w1, b1, x).astype(jnp.bfloat16)
    h = _cbr(w2, b2, h).astype(jnp.bfloat16)
    h = _cbr(w3, b3, h).astype(jnp.bfloat16)
    return _cbr(w4, b4, h)                               # (d_model, TN) float32


def encoder_max_kernel(pts_ref, w1, b1, w2, b2, w3, b3, w4, b4, glob_ref):
    """Phase 1: per-tile encoder + running global max over the point axis."""
    t = pl.program_id(1)
    f_loc = _encoder(pts_ref[0], w1, b1, w2, b2, w3, b3, w4, b4)
    tile_max = jnp.max(f_loc, axis=1, keepdims=True)     # (d_model, 1)

    @pl.when(t == 0)
    def _():
        glob_ref[0] = tile_max

    @pl.when(t != 0)
    def _():
        glob_ref[0] = jnp.maximum(glob_ref[0], tile_max)


def decoder_kernel(pts_ref, gb5_ref,
                   w1, b1, w2, b2, w3, b3, w4, b4,
                   w5a, w6, b6, w7, b7, w8, b8,
                   out_ref):
    """Phase 2: recompute encoder for this tile, then run the decoder."""
    f_loc = _encoder(pts_ref[0], w1, b1, w2, b2, w3, b3, w4, b4)
    f_loc = f_loc.astype(jnp.bfloat16)

    # concat([f_loc, bcast(f_glob)]) @ w5^T == w5a @ f_loc + (w5g @ f_glob + b5)
    # where the global half has been folded into the per-batch bias gb5_ref.
    z5 = jnp.dot(w5a[...], f_loc, preferred_element_type=jnp.float32) + gb5_ref[0]
    h = jnp.maximum(z5, 0.0).astype(jnp.bfloat16)
    h = _cbr(w6, b6, h).astype(jnp.bfloat16)
    h = _cbr(w7, b7, h).astype(jnp.bfloat16)
    out_ref[0] = jnp.dot(w8[...], h, preferred_element_type=jnp.float32) + b8[...]


# ---------------- wrapper ----------------
def pointnet_forward(pts, params, *, tile_n=256, single_buffer_weights=True):
    """pts: (B, 3, N) float32.  Returns (B, N, n_clusters) float32."""
    B, C, N = pts.shape
    assert C == D_INPUT

    # Point-axis tile: multiple of 256 fills the 256-lane v6e/v7x MXU and keeps
    # the live activation set (~5-6 KB/point) well inside VMEM for large N.
    if N % tile_n == 0:
        tn = tile_n
    else:
        tn = N  # TODO(synk): pad/mask ragged point counts instead of whole-N blocks.
    n_tiles = N // tn

    (w1, b1), (w2, b2), (w3, b3), (w4, b4), \
        (w5, b5), (w6, b6), (w7, b7), (w8, b8) = params

    bf16 = lambda a: a.astype(jnp.bfloat16)
    pts_b = bf16(pts)
    enc_params = [bf16(w1), b1, bf16(w2), b2, bf16(w3), b3, bf16(w4), b4]
    w5a, w5g = bf16(w5[:, :D_MODEL]), bf16(w5[:, D_MODEL:])   # local / global halves
    dec_params = [w5a, bf16(w6), b6, bf16(w7), b7, bf16(w8), b8]
    all_params = enc_params + dec_params

    def wspec(arr):
        # Grid-invariant blocks; single-buffer them to halve their VMEM cost.
        if single_buffer_weights:
            return pl.BlockSpec(arr.shape, lambda b, t: (0, 0),
                                pipeline_mode=pl.Buffered(1))
        return pl.BlockSpec(arr.shape, lambda b, t: (0, 0))

    nbytes = lambda arrs: sum(int(a.size) * a.dtype.itemsize for a in arrs)

    # -------- phase 1: encoder + global max-pool over points --------
    f_glob = pl.pallas_call(
        encoder_max_kernel,
        out_shape=jax.ShapeDtypeStruct((B, D_MODEL, 1), jnp.float32),
        grid_spec=pltpu.PrefetchScalarGridSpec(
            num_scalar_prefetch=0,
            grid=(B, n_tiles),
            in_specs=[pl.BlockSpec((1, C, tn), lambda b, t: (b, 0, t))]
                     + [wspec(a) for a in enc_params],
            out_specs=pl.BlockSpec((1, D_MODEL, 1), lambda b, t: (b, 0, 0)),
        ),
        compiler_params=pltpu.CompilerParams(
            # N axis is a (max) reduction -> must be "arbitrary".
            dimension_semantics=("parallel", "arbitrary"),
            vmem_limit_bytes=64 * 1024 * 1024),
        cost_estimate=pl.CostEstimate(
            flops=2 * ENC_MACS * B * N, transcendentals=0,
            bytes_accessed=nbytes([pts_b] + enc_params) + B * D_MODEL * 4),
    )(pts_b, *enc_params)

    # Fold the global-feature half of decoder layer 5 into a per-batch bias
    # column: gb5 = w5g @ f_glob + b5  (tiny (B,512,64) matvec, once per batch).
    gbias5 = jnp.einsum('oc,bcu->bou', w5g, f_glob.astype(jnp.bfloat16),
                        preferred_element_type=jnp.float32) + b5[None]

    # -------- phase 2: encoder recompute + decoder, per point tile --------
    out = pl.pallas_call(
        decoder_kernel,
        out_shape=jax.ShapeDtypeStruct((B, N_CLUSTERS, N), jnp.float32),
        grid_spec=pltpu.PrefetchScalarGridSpec(
            num_scalar_prefetch=0,
            grid=(B, n_tiles),
            in_specs=[pl.BlockSpec((1, C, tn), lambda b, t: (b, 0, t)),
                      pl.BlockSpec((1, 512, 1), lambda b, t: (b, 0, 0))]
                     + [wspec(a) for a in all_params],
            out_specs=pl.BlockSpec((1, N_CLUSTERS, tn), lambda b, t: (b, 0, t)),
        ),
        compiler_params=pltpu.CompilerParams(
            dimension_semantics=("parallel", "parallel"),
            vmem_limit_bytes=64 * 1024 * 1024),
        cost_estimate=pl.CostEstimate(
            flops=2 * (ENC_MACS + DEC_MACS) * B * N, transcendentals=0,
            bytes_accessed=nbytes([pts_b, gbias5] + all_params)
                           + B * N_CLUSTERS * N * 4),
    )(pts_b, gbias5, *all_params)

    # Keep the kernel output lane-dense (channels-first); transpose in XLA.
    return jnp.transpose(out, (0, 2, 1))


# ---------------- deterministic parameter construction ----------------
def make_conv_bn(key, c_in, c_out):
    """Conv1d(k=1, bias=False) + BatchNorm1d (eval stats) folded -> (W', b')."""
    kw, kg, kb, km, kv = jax.random.split(key, 5)
    w = jax.random.normal(kw, (c_out, c_in), jnp.float32) * 0.1
    gamma = 1.0 + 0.1 * jax.random.normal(kg, (c_out,), jnp.float32)
    beta = 0.1 * jax.random.normal(kb, (c_out,), jnp.float32)
    mean = 0.1 * jax.random.normal(km, (c_out,), jnp.float32)
    var = jnp.abs(jax.random.normal(kv, (c_out,), jnp.float32)) * 0.1 + 1.0
    scale = gamma / jnp.sqrt(var + BN_EPS)
    w_fold = w * scale[:, None]
    b_fold = (beta - scale * mean)[:, None]  # (c_out, 1)
    return w_fold, b_fold


def make_conv(key, c_in, c_out):
    """Final Conv1d(k=1) with bias, no BN."""
    kw, kb = jax.random.split(key)
    w = jax.random.normal(kw, (c_out, c_in), jnp.float32) * 0.1
    b = 0.1 * jax.random.normal(kb, (c_out,), jnp.float32)
    return w, b[:, None]


def build_params(key):
    keys = jax.random.split(key, 8)
    return [
        # encoder: 3 -> 64 -> 128 -> 256 -> d_model
        make_conv_bn(keys[0], D_INPUT, 64),
        make_conv_bn(keys[1], 64, 128),
        make_conv_bn(keys[2], 128, 256),
        make_conv_bn(keys[3], 256, D_MODEL),
        # decoder: 2*d_model -> 512 -> 256 -> 128 -> n_clusters
        make_conv_bn(keys[4], D_MODEL * 2, 512),
        make_conv_bn(keys[5], 512, 256),
        make_conv_bn(keys[6], 256, 128),
        make_conv(keys[7], 128, N_CLUSTERS),
    ]


# ---------------- pure-JAX reference (same bf16/f32 mixed precision) ----------------
def reference_forward(pts, params):
    def cbr(w, b, x_b):
        z = jnp.einsum('oc,bcn->bon', w.astype(jnp.bfloat16), x_b,
                       preferred_element_type=jnp.float32) + b[None]
        return jnp.maximum(z, 0.0)

    (w1, b1), (w2, b2), (w3, b3), (w4, b4), \
        (w5, b5), (w6, b6), (w7, b7), (w8, b8) = params
    x = pts.astype(jnp.bfloat16)
    h = cbr(w1, b1, x).astype(jnp.bfloat16)
    h = cbr(w2, b2, h).astype(jnp.bfloat16)
    h = cbr(w3, b3, h).astype(jnp.bfloat16)
    f_loc = cbr(w4, b4, h)                                   # f32
    f_glob = jnp.max(f_loc, axis=2, keepdims=True)           # f32
    f = jnp.concatenate([f_loc, jnp.broadcast_to(f_glob, f_loc.shape)], axis=1)
    h = cbr(w5, b5, f.astype(jnp.bfloat16)).astype(jnp.bfloat16)
    h = cbr(w6, b6, h).astype(jnp.bfloat16)
    h = cbr(w7, b7, h).astype(jnp.bfloat16)
    y = jnp.einsum('oc,bcn->bon', w8.astype(jnp.bfloat16), h,
                   preferred_element_type=jnp.float32) + b8[None]
    return jnp.transpose(y, (0, 2, 1))


if __name__ == "__main__":
    key = jax.random.PRNGKey(0)
    k_pts, k_params = jax.random.split(key)

    B, N = 2, 512   # small demo shapes; two 256-point lane tiles per batch
    pts = jax.random.normal(k_pts, (B, D_INPUT, N), jnp.float32)
    params = build_params(k_params)

    def run(single_buffer):
        y = pointnet_forward(pts, params, tile_n=256,
                             single_buffer_weights=single_buffer)
        return jax.block_until_ready(y)

    try:
        y = run(True)
    except Exception:
        # pl.Buffered(1) not supported by this jax version -> default buffering.
        y = run(False)

    y_ref = reference_forward(pts, params)
    assert y.shape == (B, N, N_CLUSTERS), y.shape
    assert jnp.allclose(y, y_ref, atol=2e-2, rtol=2e-2), \
        float(jnp.max(jnp.abs(y - y_ref)))

    print("KERNEL_OK")
</pallas_src>

<mosaic_0001>
module attributes {stable_mosaic.version = 11 : i64} {
  func.func @encoder_max_kernel(%arg0: i32, %arg1: i32, %arg2: memref<1x3x256xbf16, #tpu.memory_space<vmem>>, %arg3: memref<64x3xbf16, #tpu.memory_space<vmem>>, %arg4: memref<64x1xf32, #tpu.memory_space<vmem>>, %arg5: memref<128x64xbf16, #tpu.memory_space<vmem>>, %arg6: memref<128x1xf32, #tpu.memory_space<vmem>>, %arg7: memref<256x128xbf16, #tpu.memory_space<vmem>>, %arg8: memref<256x1xf32, #tpu.memory_space<vmem>>, %arg9: memref<64x256xbf16, #tpu.memory_space<vmem>>, %arg10: memref<64x1xf32, #tpu.memory_space<vmem>>, %arg11: memref<1x64x1xf32, #tpu.memory_space<vmem>>) attributes {dimension_semantics = [#tpu.dimension_semantics<parallel>, #tpu.dimension_semantics<arbitrary>], iteration_bounds = array<i64: 2, 2>, scalar_prefetch = 0 : i64, scratch_operands = 0 : i64, tpu.core_type = #tpu.core_type<tc>, window_params = [{transform_indices = @transform_0, window_bounds = array<i64: 1, 3, 256>}, {pipeline_mode = #tpu.pipeline_mode<synchronous>, transform_indices = @transform_1, window_bounds = array<i64: 64, 3>}, {pipeline_mode = #tpu.pipeline_mode<synchronous>, transform_indices = @transform_2, window_bounds = array<i64: 64, 1>}, {pipeline_mode = #tpu.pipeline_mode<synchronous>, transform_indices = @transform_3, window_bounds = array<i64: 128, 64>}, {pipeline_mode = #tpu.pipeline_mode<synchronous>, transform_indices = @transform_4, window_bounds = array<i64: 128, 1>}, {pipeline_mode = #tpu.pipeline_mode<synchronous>, transform_indices = @transform_5, window_bounds = array<i64: 256, 128>}, {pipeline_mode = #tpu.pipeline_mode<synchronous>, transform_indices = @transform_6, window_bounds = array<i64: 256, 1>}, {pipeline_mode = #tpu.pipeline_mode<synchronous>, transform_indices = @transform_7, window_bounds = array<i64: 64, 256>}, {pipeline_mode = #tpu.pipeline_mode<synchronous>, transform_indices = @transform_8, window_bounds = array<i64: 64, 1>}, {transform_indices = @transform_9, window_bounds = array<i64: 1, 64, 1>}]} {
    %c0 = arith.constant 0 : index
    %c0_0 = arith.constant 0 : index
    %c0_1 = arith.constant 0 : index
    %0 = vector.load %arg2[%c0, %c0_0, %c0_1] : memref<1x3x256xbf16, #tpu.memory_space<vmem>>, vector<1x3x256xbf16>
    %1 = vector.shape_cast %0 : vector<1x3x256xbf16> to vector<3x256xbf16>
    %c0_2 = arith.constant 0 : index
    %c0_3 = arith.constant 0 : index
    %2 = vector.load %arg3[%c0_2, %c0_3] : memref<64x3xbf16, #tpu.memory_space<vmem>>, vector<64x3xbf16>
    %cst = arith.constant dense<0.000000e+00> : vector<64x256xf32>
    %3 = tpu.matmul %2, %1, %cst {dimension_numbers = #tpu.dot_dimension_numbers<[1], [0], [0], [1], [0, 0, 1, 1], [], []>} : vector<64x3xbf16>, vector<3x256xbf16>, vector<64x256xf32> -> vector<64x256xf32>
    %c0_4 = arith.constant 0 : index
    %c0_5 = arith.constant 0 : index
    %4 = vector.load %arg4[%c0_4, %c0_5] : memref<64x1xf32, #tpu.memory_space<vmem>>, vector<64x1xf32>
    %5 = vector.broadcast %4 : vector<64x1xf32> to vector<64x256xf32>
    %6 = arith.addf %3, %5 : vector<64x256xf32>
    %cst_6 = arith.constant 0.000000e+00 : f32
    %7 = vector.broadcast %cst_6 : f32 to vector<64x256xf32>
    %8 = arith.maximumf %6, %7 : vector<64x256xf32>
    %9 = arith.truncf %8 : vector<64x256xf32> to vector<64x256xbf16>
    %c0_7 = arith.constant 0 : index
    %c0_8 = arith.constant 0 : index
    %10 = vector.load %arg5[%c0_7, %c0_8] : memref<128x64xbf16, #tpu.memory_space<vmem>>, vector<128x64xbf16>
    %cst_9 = arith.constant dense<0.000000e+00> : vector<128x256xf32>
    %11 = tpu.matmul %10, %9, %cst_9 {dimension_numbers = #tpu.dot_dimension_numbers<[1], [0], [0], [1], [0, 0, 1, 1], [], []>} : vector<128x64xbf16>, vector<64x256xbf16>, vector<128x256xf32> -> vector<128x256xf32>
    %c0_10 = arith.constant 0 : index
    %c0_11 = arith.constant 0 : index
    %12 = vector.load %arg6[%c0_10, %c0_11] : memref<128x1xf32, #tpu.memory_space<vmem>>, vector<128x1xf32>
    %13 = vector.broadcast %12 : vector<128x1xf32> to vector<128x256xf32>
    %14 = arith.addf %11, %13 : vector<128x256xf32>
    %cst_12 = arith.constant 0.000000e+00 : f32
    %15 = vector.broadcast %cst_12 : f32 to vector<128x256xf32>
    %16 = arith.maximumf %14, %15 : vector<128x256xf32>
    %17 = arith.truncf %16 : vector<128x256xf32> to vector<128x256xbf16>
    %c0_13 = arith.constant 0 : index
    %c0_14 = arith.constant 0 : index
    %18 = vector.load %arg7[%c0_13, %c0_14] : memref<256x128xbf16, #tpu.memory_space<vmem>>, vector<256x128xbf16>
    %cst_15 = arith.constant dense<0.000000e+00> : vector<256x256xf32>
    %19 = tpu.matmul %18, %17, %cst_15 {dimension_numbers = #tpu.dot_dimension_numbers<[1], [0], [0], [1], [0, 0, 1, 1], [], []>} : vector<256x128xbf16>, vector<128x256xbf16>, vector<256x256xf32> -> vector<256x256xf32>
    %c0_16 = arith.constant 0 : index
    %c0_17 = arith.constant 0 : index
    %20 = vector.load %arg8[%c0_16, %c0_17] : memref<256x1xf32, #tpu.memory_space<vmem>>, vector<256x1xf32>
    %21 = vector.broadcast %20 : vector<256x1xf32> to vector<256x256xf32>
    %22 = arith.addf %19, %21 : vector<256x256xf32>
    %cst_18 = arith.constant 0.000000e+00 : f32
    %23 = vector.broadcast %cst_18 : f32 to vector<256x256xf32>
    %24 = arith.maximumf %22, %23 : vector<256x256xf32>
    %25 = arith.truncf %24 : vector<256x256xf32> to vector<256x256xbf16>
    %c0_19 = arith.constant 0 : index
    %c0_20 = arith.constant 0 : index
    %26 = vector.load %arg9[%c0_19, %c0_20] : memref<64x256xbf16, #tpu.memory_space<vmem>>, vector<64x256xbf16>
    %cst_21 = arith.constant dense<0.000000e+00> : vector<64x256xf32>
    %27 = tpu.matmul %26, %25, %cst_21 {dimension_numbers = #tpu.dot_dimension_numbers<[1], [0], [0], [1], [0, 0, 1, 1], [], []>} : vector<64x256xbf16>, vector<256x256xbf16>, vector<64x256xf32> -> vector<64x256xf32>
    %c0_22 = arith.constant 0 : index
    %c0_23 = arith.constant 0 : index
    %28 = vector.load %arg10[%c0_22, %c0_23] : memref<64x1xf32, #tpu.memory_space<vmem>>, vector<64x1xf32>
    %29 = vector.broadcast %28 : vector<64x1xf32> to vector<64x256xf32>
    %30 = arith.addf %27, %29 : vector<64x256xf32>
    %cst_24 = arith.constant 0.000000e+00 : f32
    %31 = vector.broadcast %cst_24 : f32 to vector<64x256xf32>
    %32 = arith.maximumf %30, %31 : vector<64x256xf32>
    %cst_25 = arith.constant dense<0xFF800000> : vector<64xf32>
    %33 = vector.multi_reduction <maximumf>, %32, %cst_25 [1] : vector<64x256xf32> to vector<64xf32>
    %34 = vector.shape_cast %33 : vector<64xf32> to vector<64x1xf32>
    %c0_i32 = arith.constant 0 : i32
    %35 = arith.cmpi eq, %arg1, %c0_i32 : i32
    %36 = arith.extui %35 : i1 to i32
    %c0_i32_26 = arith.constant 0 : i32
    %37 = arith.cmpi ne, %36, %c0_i32_26 : i32
    scf.if %37 {
      %c0_29 = arith.constant 0 : index
      %c0_30 = arith.constant 0 : index
      %c0_31 = arith.constant 0 : index
      %41 = vector.load %arg11[%c0_29, %c0_30, %c0_31] : memref<1x64x1xf32, #tpu.memory_space<vmem>>, vector<1x64x1xf32>
      %42 = vector.shape_cast %41 : vector<1x64x1xf32> to vector<64x1xf32>
      %43 = vector.shape_cast %34 : vector<64x1xf32> to vector<1x64x1xf32>
      tpu.vector_store %arg11[%c0_29, %c0_30, %c0_31], %43 {strides = array<i32>} : memref<1x64x1xf32, #tpu.memory_space<vmem>>, vector<1x64x1xf32>,
    } else {
    }
    %c0_i32_27 = arith.constant 0 : i32
    %38 = arith.cmpi ne, %arg1, %c0_i32_27 : i32
    %39 = arith.extui %38 : i1 to i32
    %c0_i32_28 = arith.constant 0 : i32
    %40 = arith.cmpi ne, %39, %c0_i32_28 : i32
    scf.if %40 {
      %c0_29 = arith.constant 0 : index
      %c0_30 = arith.constant 0 : index
      %c0_31 = arith.constant 0 : index
      %41 = vector.load %arg11[%c0_29, %c0_30, %c0_31] : memref<1x64x1xf32, #tpu.memory_space<vmem>>, vector<1x64x1xf32>
      %42 = vector.shape_cast %41 : vector<1x64x1xf32> to vector<64x1xf32>
      %43 = arith.maximumf %42, %34 : vector<64x1xf32>
      %c0_32 = arith.constant 0 : index
      %c0_33 = arith.constant 0 : index
      %c0_34 = arith.constant 0 : index
      %44 = vector.load %arg11[%c0_32, %c0_33, %c0_34] : memref<1x64x1xf32, #tpu.memory_space<vmem>>, vector<1x64x1xf32>
      %45 = vector.shape_cast %44 : vector<1x64x1xf32> to vector<64x1xf32>
      %46 = vector.shape_cast %43 : vector<64x1xf32> to vector<1x64x1xf32>
      tpu.vector_store %arg11[%c0_32, %c0_33, %c0_34], %46 {strides = array<i32>} : memref<1x64x1xf32, #tpu.memory_space<vmem>>, vector<1x64x1xf32>,
    } else {
    }
    return
  }
  func.func @transform_0(%arg0: i32, %arg1: i32) -> (i32, i32, i32) {
    %c0_i32 = arith.constant 0 : i32
    %c0_i32_0 = arith.constant 0 : i32
    return %arg0, %c0_i32, %arg1 : i32, i32, i32
  }
  func.func @transform_1(%arg0: i32, %arg1: i32) -> (i32, i32) {
    %c0_i32 = arith.constant 0 : i32
    %c0_i32_0 = arith.constant 0 : i32
    %c0_i32_1 = arith.constant 0 : i32
    return %c0_i32, %c0_i32_0 : i32, i32
  }
  func.func @transform_2(%arg0: i32, %arg1: i32) -> (i32, i32) {
    %c0_i32 = arith.constant 0 : i32
    %c0_i32_0 = arith.constant 0 : i32
    %c0_i32_1 = arith.constant 0 : i32
    return %c0_i32, %c0_i32_0 : i32, i32
  }
  func.func @transform_3(%arg0: i32, %arg1: i32) -> (i32, i32) {
    %c0_i32 = arith.constant 0 : i32
    %c0_i32_0 = arith.constant 0 : i32
    %c0_i32_1 = arith.constant 0 : i32
    return %c0_i32, %c0_i32_0 : i32, i32
  }
  func.func @transform_4(%arg0: i32, %arg1: i32) -> (i32, i32) {
    %c0_i32 = arith.constant 0 : i32
    %c0_i32_0 = arith.constant 0 : i32
    %c0_i32_1 = arith.constant 0 : i32
    return %c0_i32, %c0_i32_0 : i32, i32
  }
  func.func @transform_5(%arg0: i32, %arg1: i32) -> (i32, i32) {
    %c0_i32 = arith.constant 0 : i32
    %c0_i32_0 = arith.constant 0 : i32
    %c0_i32_1 = arith.constant 0 : i32
    return %c0_i32, %c0_i32_0 : i32, i32
  }
  func.func @transform_6(%arg0: i32, %arg1: i32) -> (i32, i32) {
    %c0_i32 = arith.constant 0 : i32
    %c0_i32_0 = arith.constant 0 : i32
    %c0_i32_1 = arith.constant 0 : i32
    return %c0_i32, %c0_i32_0 : i32, i32
  }
  func.func @transform_7(%arg0: i32, %arg1: i32) -> (i32, i32) {
    %c0_i32 = arith.constant 0 : i32
    %c0_i32_0 = arith.constant 0 : i32
    %c0_i32_1 = arith.constant 0 : i32
    return %c0_i32, %c0_i32_0 : i32, i32
  }
  func.func @transform_8(%arg0: i32, %arg1: i32) -> (i32, i32) {
    %c0_i32 = arith.constant 0 : i32
    %c0_i32_0 = arith.constant 0 : i32
    %c0_i32_1 = arith.constant 0 : i32
    return %c0_i32, %c0_i32_0 : i32, i32
  }
  func.func @transform_9(%arg0: i32, %arg1: i32) -> (i32, i32, i32) {
    %c0_i32 = arith.constant 0 : i32
    %c0_i32_0 = arith.constant 0 : i32
    %c0_i32_1 = arith.constant 0 : i32
    return %arg0, %c0_i32, %c0_i32_0 : i32, i32, i32
  }
}

module attributes {stable_mosaic.version = 11 : i64} {
  func.func @encoder_max_kernel(%arg0: i32, %arg1: i32, %arg2: memref<1x3x256xbf16, #tpu.memory_space<vmem>>, %arg3: memref<64x3xbf16, #tpu.memory_space<vmem>>, %arg4: memref<64x1xf32, #tpu.memory_space<vmem>>, %arg5: memref<128x64xbf16, #tpu.memory_space<vmem>>, %arg6: memref<128x1xf32, #tpu.memory_space<vmem>>, %arg7: memref<256x128xbf16, #tpu.memory_space<vmem>>, %arg8: memref<256x1xf32, #tpu.memory_space<vmem>>, %arg9: memref<64x256xbf16, #tpu.memory_space<vmem>>, %arg10: memref<64x1xf32, #tpu.memory_space<vmem>>, %arg11: memref<1x64x1xf32, #tpu.memory_space<vmem>>) attributes {dimension_semantics = [#tpu.dimension_semantics<parallel>, #tpu.dimension_semantics<arbitrary>], iteration_bounds = array<i64: 2, 2>, scalar_prefetch = 0 : i64, scratch_operands = 0 : i64, tpu.core_type = #tpu.core_type<tc>, window_params = [{transform_indices = @transform_0, window_bounds = array<i64: 1, 3, 256>}, {pipeline_mode = #tpu.pipeline_mode<synchronous>, transform_indices = @transform_1, window_bounds = array<i64: 64, 3>}, {pipeline_mode = #tpu.pipeline_mode<synchronous>, transform_indices = @transform_2, window_bounds = array<i64: 64, 1>}, {pipeline_mode = #tpu.pipeline_mode<synchronous>, transform_indices = @transform_3, window_bounds = array<i64: 128, 64>}, {pipeline_mode = #tpu.pipeline_mode<synchronous>, transform_indices = @transform_4, window_bounds = array<i64: 128, 1>}, {pipeline_mode = #tpu.pipeline_mode<synchronous>, transform_indices = @transform_5, window_bounds = array<i64: 256, 128>}, {pipeline_mode = #tpu.pipeline_mode<synchronous>, transform_indices = @transform_6, window_bounds = array<i64: 256, 1>}, {pipeline_mode = #tpu.pipeline_mode<synchronous>, transform_indices = @transform_7, window_bounds = array<i64: 64, 256>}, {pipeline_mode = #tpu.pipeline_mode<synchronous>, transform_indices = @transform_8, window_bounds = array<i64: 64, 1>}, {transform_indices = @transform_9, window_bounds = array<i64: 1, 64, 1>}]} {
    %c0 = arith.constant 0 : index
    %c0_0 = arith.constant 0 : index
    %c0_1 = arith.constant 0 : index
    %0 = vector.load %arg2[%c0, %c0_0, %c0_1] : memref<1x3x256xbf16, #tpu.memory_space<vmem>>, vector<1x3x256xbf16>
    %1 = vector.shape_cast %0 : vector<1x3x256xbf16> to vector<3x256xbf16>
    %c0_2 = arith.constant 0 : index
    %c0_3 = arith.constant 0 : index
    %2 = vector.load %arg3[%c0_2, %c0_3] : memref<64x3xbf16, #tpu.memory_space<vmem>>, vector<64x3xbf16>
    %cst = arith.constant dense<0.000000e+00> : vector<64x256xf32>
    %3 = tpu.matmul %2, %1, %cst {dimension_numbers = #tpu.dot_dimension_numbers<[1], [0], [0], [1], [0, 0, 1, 1], [], []>} : vector<64x3xbf16>, vector<3x256xbf16>, vector<64x256xf32> -> vector<64x256xf32>
    %c0_4 = arith.constant 0 : index
    %c0_5 = arith.constant 0 : index
    %4 = vector.load %arg4[%c0_4, %c0_5] : memref<64x1xf32, #tpu.memory_space<vmem>>, vector<64x1xf32>
    %5 = vector.broadcast %4 : vector<64x1xf32> to vector<64x256xf32>
    %6 = arith.addf %3, %5 : vector<64x256xf32>
    %cst_6 = arith.constant 0.000000e+00 : f32
    %7 = vector.broadcast %cst_6 : f32 to vector<64x256xf32>
    %8 = arith.maximumf %6, %7 : vector<64x256xf32>
    %9 = arith.truncf %8 : vector<64x256xf32> to vector<64x256xbf16>
    %c0_7 = arith.constant 0 : index
    %c0_8 = arith.constant 0 : index
    %10 = vector.load %arg5[%c0_7, %c0_8] : memref<128x64xbf16, #tpu.memory_space<vmem>>, vector<128x64xbf16>
    %cst_9 = arith.constant dense<0.000000e+00> : vector<128x256xf32>
    %11 = tpu.matmul %10, %9, %cst_9 {dimension_numbers = #tpu.dot_dimension_numbers<[1], [0], [0], [1], [0, 0, 1, 1], [], []>} : vector<128x64xbf16>, vector<64x256xbf16>, vector<128x256xf32> -> vector<128x256xf32>
    %c0_10 = arith.constant 0 : index
    %c0_11 = arith.constant 0 : index
    %12 = vector.load %arg6[%c0_10, %c0_11] : memref<128x1xf32, #tpu.memory_space<vmem>>, vector<128x1xf32>
    %13 = vector.broadcast %12 : vector<128x1xf32> to vector<128x256xf32>
    %14 = arith.addf %11, %13 : vector<128x256xf32>
    %cst_12 = arith.constant 0.000000e+00 : f32
    %15 = vector.broadcast %cst_12 : f32 to vector<128x256xf32>
    %16 = arith.maximumf %14, %15 : vector<128x256xf32>
    %17 = arith.truncf %16 : vector<128x256xf32> to vector<128x256xbf16>
    %c0_13 = arith.constant 0 : index
    %c0_14 = arith.constant 0 : index
    %18 = vector.load %arg7[%c0_13, %c0_14] : memref<256x128xbf16, #tpu.memory_space<vmem>>, vector<256x128xbf16>
    %cst_15 = arith.constant dense<0.000000e+00> : vector<256x256xf32>
    %19 = tpu.matmul %18, %17, %cst_15 {dimension_numbers = #tpu.dot_dimension_numbers<[1], [0], [0], [1], [0, 0, 1, 1], [], []>} : vector<256x128xbf16>, vector<128x256xbf16>, vector<256x256xf32> -> vector<256x256xf32>
    %c0_16 = arith.constant 0 : index
    %c0_17 = arith.constant 0 : index
    %20 = vector.load %arg8[%c0_16, %c0_17] : memref<256x1xf32, #tpu.memory_space<vmem>>, vector<256x1xf32>
    %21 = vector.broadcast %20 : vector<256x1xf32> to vector<256x256xf32>
    %22 = arith.addf %19, %21 : vector<256x256xf32>
    %cst_18 = arith.constant 0.000000e+00 : f32
    %23 = vector.broadcast %cst_18 : f32 to vector<256x256xf32>
    %24 = arith.maximumf %22, %23 : vector<256x256xf32>
    %25 = arith.truncf %24 : vector<256x256xf32> to vector<256x256xbf16>
    %c0_19 = arith.constant 0 : index
    %c0_20 = arith.constant 0 : index
    %26 = vector.load %arg9[%c0_19, %c0_20] : memref<64x256xbf16, #tpu.memory_space<vmem>>, vector<64x256xbf16>
    %cst_21 = arith.constant dense<0.000000e+00> : vector<64x256xf32>
    %27 = tpu.matmul %26, %25, %cst_21 {dimension_numbers = #tpu.dot_dimension_numbers<[1], [0], [0], [1], [0, 0, 1, 1], [], []>} : vector<64x256xbf16>, vector<256x256xbf16>, vector<64x256xf32> -> vector<64x256xf32>
    %c0_22 = arith.constant 0 : index
    %c0_23 = arith.constant 0 : index
    %28 = vector.load %arg10[%c0_22, %c0_23] : memref<64x1xf32, #tpu.memory_space<vmem>>, vector<64x1xf32>
    %29 = vector.broadcast %28 : vector<64x1xf32> to vector<64x256xf32>
    %30 = arith.addf %27, %29 : vector<64x256xf32>
    %cst_24 = arith.constant 0.000000e+00 : f32
    %31 = vector.broadcast %cst_24 : f32 to vector<64x256xf32>
    %32 = arith.maximumf %30, %31 : vector<64x256xf32>
    %cst_25 = arith.constant dense<0xFF800000> : vector<64xf32>
    %33 = vector.multi_reduction <maximumf>, %32, %cst_25 [1] : vector<64x256xf32> to vector<64xf32>
    %34 = vector.shape_cast %33 : vector<64xf32> to vector<64x1xf32>
    %c0_i32 = arith.constant 0 : i32
    %35 = arith.cmpi eq, %arg1, %c0_i32 : i32
    %36 = arith.extui %35 : i1 to i32
    %c0_i32_26 = arith.constant 0 : i32
    %37 = arith.cmpi ne, %36, %c0_i32_26 : i32
    scf.if %37 {
      %c0_29 = arith.constant 0 : index
      %c0_30 = arith.constant 0 : index
      %c0_31 = arith.constant 0 : index
      %41 = vector.load %arg11[%c0_29, %c0_30, %c0_31] : memref<1x64x1xf32, #tpu.memory_space<vmem>>, vector<1x64x1xf32>
      %42 = vector.shape_cast %41 : vector<1x64x1xf32> to vector<64x1xf32>
      %43 = vector.shape_cast %34 : vector<64x1xf32> to vector<1x64x1xf32>
      tpu.vector_store %arg11[%c0_29, %c0_30, %c0_31], %43 {strides = array<i32>} : memref<1x64x1xf32, #tpu.memory_space<vmem>>, vector<1x64x1xf32>,
    } else {
    }
    %c0_i32_27 = arith.constant 0 : i32
    %38 = arith.cmpi ne, %arg1, %c0_i32_27 : i32
    %39 = arith.extui %38 : i1 to i32
    %c0_i32_28 = arith.constant 0 : i32
    %40 = arith.cmpi ne, %39, %c0_i32_28 : i32
    scf.if %40 {
      %c0_29 = arith.constant 0 : index
      %c0_30 = arith.constant 0 : index
      %c0_31 = arith.constant 0 : index
      %41 = vector.load %arg11[%c0_29, %c0_30, %c0_31] : memref<1x64x1xf32, #tpu.memory_space<vmem>>, vector<1x64x1xf32>
      %42 = vector.shape_cast %41 : vector<1x64x1xf32> to vector<64x1xf32>
      %43 = arith.maximumf %42, %34 : vector<64x1xf32>
      %c0_32 = arith.constant 0 : index
      %c0_33 = arith.constant 0 : index
      %c0_34 = arith.constant 0 : index
      %44 = vector.load %arg11[%c0_32, %c0_33, %c0_34] : memref<1x64x1xf32, #tpu.memory_space<vmem>>, vector<1x64x1xf32>
      %45 = vector.shape_cast %44 : vector<1x64x1xf32> to vector<64x1xf32>
      %46 = vector.shape_cast %43 : vector<64x1xf32> to vector<1x64x1xf32>
      tpu.vector_store %arg11[%c0_32, %c0_33, %c0_34], %46 {strides = array<i32>} : memref<1x64x1xf32, #tpu.memory_space<vmem>>, vector<1x64x1xf32>,
    } else {
    }
    return
  }
  func.func @transform_0(%arg0: i32, %arg1: i32) -> (i32, i32, i32) {
    %c0_i32 = arith.constant 0 : i32
    %c0_i32_0 = arith.constant 0 : i32
    return %arg0, %c0_i32, %arg1 : i32, i32, i32
  }
  func.func @transform_1(%arg0: i32, %arg1: i32) -> (i32, i32) {
    %c0_i32 = arith.constant 0 : i32
    %c0_i32_0 = arith.constant 0 : i32
    %c0_i32_1 = arith.constant 0 : i32
    return %c0_i32, %c0_i32_0 : i32, i32
  }
  func.func @transform_2(%arg0: i32, %arg1: i32) -> (i32, i32) {
    %c0_i32 = arith.constant 0 : i32
    %c0_i32_0 = arith.constant 0 : i32
    %c0_i32_1 = arith.constant 0 : i32
    return %c0_i32, %c0_i32_0 : i32, i32
  }
  func.func @transform_3(%arg0: i32, %arg1: i32) -> (i32, i32) {
    %c0_i32 = arith.constant 0 : i32
    %c0_i32_0 = arith.constant 0 : i32
    %c0_i32_1 = arith.constant 0 : i32
    return %c0_i32, %c0_i32_0 : i32, i32
  }
  func.func @transform_4(%arg0: i32, %arg1: i32) -> (i32, i32) {
    %c0_i32 = arith.constant 0 : i32
    %c0_i32_0 = arith.constant 0 : i32
    %c0_i32_1 = arith.constant 0 : i32
    return %c0_i32, %c0_i32_0 : i32, i32
  }
  func.func @transform_5(%arg0: i32, %arg1: i32) -> (i32, i32) {
    %c0_i32 = arith.constant 0 : i32
    %c0_i32_0 = arith.constant 0 : i32
    %c0_i32_1 = arith.constant 0 : i32
    return %c0_i32, %c0_i32_0 : i32, i32
  }
  func.func @transform_6(%arg0: i32, %arg1: i32) -> (i32, i32) {
    %c0_i32 = arith.constant 0 : i32
    %c0_i32_0 = arith.constant 0 : i32
    %c0_i32_1 = arith.constant 0 : i32
    return %c0_i32, %c0_i32_0 : i32, i32
  }
  func.func @transform_7(%arg0: i32, %arg1: i32) -> (i32, i32) {
    %c0_i32 = arith.constant 0 : i32
    %c0_i32_0 = arith.constant 0 : i32
    %c0_i32_1 = arith.constant 0 : i32
    return %c0_i32, %c0_i32_0 : i32, i32
  }
  func.func @transform_8(%arg0: i32, %arg1: i32) -> (i32, i32) {
    %c0_i32 = arith.constant 0 : i32
    %c0_i32_0 = arith.constant 0 : i32
    %c0_i32_1 = arith.constant 0 : i32
    return %c0_i32, %c0_i32_0 : i32, i32
  }
  func.func @transform_9(%arg0: i32, %arg1: i32) -> (i32, i32, i32) {
    %c0_i32 = arith.constant 0 : i32
    %c0_i32_0 = arith.constant 0 : i32
    %c0_i32_1 = arith.constant 0 : i32
    return %arg0, %c0_i32, %c0_i32_0 : i32, i32, i32
  }
}

</mosaic_0001>

<llo_original>
// kernel: tpu_custom_call.1
$region0: #{tpu_custom_call.1}
  #allocation0 [shape = 'u32[]', space=smem, size = 0x4, offset = 0x4, fixed_abs, tag = 'smem constant byte address 0x4 - core index']
  #allocation1 [shape = 'u32[144,128]{1,0:T(1,128)}', space=vmem, size = 0x12000, scoped, tag = 'internal scratch']
  %s0 = inlined_call_operand.hbm [shape: bf16[2,3,512], index: 0, kind: input, shape index: {}]
  %s1 = inlined_call_operand.hbm [shape: bf16[64,3], index: 1, kind: input, shape index: {}]
  %s2 = inlined_call_operand.hbm [shape: f32[64,1], index: 2, kind: input, shape index: {}]
  %s3 = inlined_call_operand.hbm [shape: bf16[128,64], index: 3, kind: input, shape index: {}]
  %s4 = inlined_call_operand.hbm [shape: f32[128,1], index: 4, kind: input, shape index: {}]
  %s5 = inlined_call_operand.hbm [shape: bf16[256,128], index: 5, kind: input, shape index: {}]
  %s6 = inlined_call_operand.hbm [shape: f32[256,1], index: 6, kind: input, shape index: {}]
  %s7 = inlined_call_operand.hbm [shape: bf16[64,256], index: 7, kind: input, shape index: {}]
  %s8 = inlined_call_operand.hbm [shape: f32[64,1], index: 8, kind: input, shape index: {}]
  %s9 = inlined_call_operand.hbm [shape: f32[2,64,1], index: 9, kind: output, shape index: {}]
  %s10 = sld [smem:[#allocation0]]
  $region113: #{tpu_custom_call.1} parent=0
    _
  %s12 = ssub.s32 1, %s10
  %s13 = scalar_select 0, %s12, %s10
  $region1: #{tpu_custom_call.1} parent=0
    #allocation2 [shape = 'u8[4096]{0}', space=vmem, size = 0x1000, scoped, tag = 'input window, operand 0']
    #allocation3 [shape = 's32[2]{0}', space=sflag, size = 0x8, scoped, tag = 'scoped memory for tpu_custom_call.1']
    #allocation4 [shape = 's32[2]{0}', space=sflag, size = 0x8, scoped, tag = 'scoped memory for tpu_custom_call.1']
    #allocation5 [shape = 'u8[16384]{0}', space=vmem, size = 0x4000, scoped, tag = 'input window, operand 1, single buffered']
    #allocation6 [shape = 's32[1]{0}', space=sflag, size = 0x4, scoped, tag = 'scoped memory for tpu_custom_call.1']
    #allocation7 [shape = 'u8[32768]{0}', space=vmem, size = 0x8000, scoped, tag = 'input window, operand 2, single buffered']
    #allocation8 [shape = 'u8[32768]{0}', space=vmem, size = 0x8000, scoped, tag = 'input window, operand 3, single buffered']
    #allocation9 [shape = 's32[1]{0}', space=sflag, size = 0x4, scoped, tag = 'scoped memory for tpu_custom_call.1']
    #allocation10 [shape = 'u8[65536]{0}', space=vmem, size = 0x10000, scoped, tag = 'input window, operand 4, single buffered']
    #allocation11 [shape = 'u8[65536]{0}', space=vmem, size = 0x10000, scoped, tag = 'input window, operand 5, single buffered']
    #allocation12 [shape = 's32[1]{0}', space=sflag, size = 0x4, scoped, tag = 'scoped memory for tpu_custom_call.1']
    #allocation13 [shape = 'u8[131072]{0}', space=vmem, size = 0x20000, scoped, tag = 'input window, operand 6, single buffered']
    #allocation14 [shape = 'u8[32768]{0}', space=vmem, size = 0x8000, scoped, tag = 'input window, operand 7, single buffered']
    #allocation15 [shape = 's32[1]{0}', space=sflag, size = 0x4, scoped, tag = 'scoped memory for tpu_custom_call.1']
    #allocation16 [shape = 'u8[32768]{0}', space=vmem, size = 0x8000, scoped, tag = 'input window, operand 8, single buffered']
    #allocation17 [shape = 'u8[65536]{0}', space=vmem, size = 0x10000, scoped, tag = 'output window, operand 0']
    %14 = vsyncpa [#allocation3], 0
    %s15 = scalar_lea.sflag [#allocation3], 1
    %16 = vsyncpa %s15, 0
    %17 = vsyncpa [#allocation6], 0
    %18 = vsyncpa [#allocation9], 0
    %19 = vsyncpa [#allocation12], 0
    %20 = vsyncpa [#allocation15], 0
    %21 = vsyncpa [#allocation4], 0
    %s22 = scalar_lea.sflag [#allocation4], 1
    %23 = vsyncpa %s22, 0
    loop: start=0, step=1, limit=6
    $region2: #{tpu_custom_call.1} parent=1 // loop_pre_header
      _
    $region3: #{tpu_custom_call.1} parent=1 // loop_header
      %s25 = sphi 0, %s29
      %p26 = scmp.ge.s32.totalorder %s25, 6
      %s32 = sphi 0, %s44
      %s33 = sphi 0, %s40
      %s34 = sphi 0, %s32
      %s35 = sphi 0, %s33
      %s36 = sphi 0, %s34
      %s37 = sphi 0, %s35
      %s49 = sphi 0, %s51
      %s52 = sphi 0, %s49
      %s53 = sphi 0, %s52
      %s69 = sphi 0, %s53
      %s73 = sphi 0, %s73
      %s75 = sphi 0, %s73
      %s76 = sphi 0, %s75
      %s90 = sphi 0, %s76
      %s94 = sphi 0, %s94
      %s96 = sphi 0, %s94
      %s97 = sphi 0, %s96
      %s111 = sphi 0, %s97
      %s115 = sphi 0, %s115
      %s117 = sphi 0, %s115
      %s118 = sphi 0, %s117
      %s132 = sphi 0, %s118
      %s136 = sphi 0, %s136
      %s138 = sphi 0, %s136
      %s139 = sphi 0, %s138
      %s153 = sphi 0, %s139
      %s157 = sphi 0, %s157
      %s159 = sphi 0, %s157
      %s160 = sphi 0, %s159
      %s174 = sphi 0, %s160
      %s178 = sphi 0, %s178
      %s180 = sphi 0, %s178
      %s181 = sphi 0, %s180
      %s195 = sphi 0, %s181
      %s199 = sphi 0, %s199
      %s201 = sphi 0, %s199
      %s202 = sphi 0, %s201
      %s216 = sphi 0, %s202
      %s220 = sphi 0, %s220
      %s222 = sphi 0, %s220
      %s223 = sphi 0, %s222
      %s237 = sphi 0, %s223
      %s243 = sphi 0, %s245
      %s246 = sphi 0, %s243
      %s247 = sphi 0, %s246
      %s263 = sphi 0, %s247
    $region4: #{tpu_custom_call.1} parent=1 // loop_header_branch
      %28 = sbr.rel (%p26) target = $region8
    $region5: #{tpu_custom_call.1} parent=1 // loop_body
      %s30 = ssub.s32 %s25, 1
      %s31 = ssub.s32 %s25, 2
      %s38 = sadd.s32 1, %s33
      %p39 = scmp.ge.s32.totalorder %s38, 2
      %s40 = scalar_select %p39, 0, %s38
      %s41 = sadd.s32 1, %s32
      %s42 = scalar_select %p39, %s41, %s32
      %p43 = scmp.ge.s32.totalorder %s42, 2
      %s44 = scalar_select %p43, 0, %s42
      %s45 = ssub.s32 %s32, %s44
      %s46 = ssub.s32 %s33, %s40
      %s47 = sor.u32 %s45, %s46
      %p48 = scmp.eq.s32.totalorder %s47, 0
      %s50 = sadd.s32 %s49, 1
      %s51 = scalar_select %p48, %s49, %s50
      %p54 = pneg %p48
      %p55 = scmp.eq.s32.totalorder %s25, 3
      %p56 = por %p54, %p55
      %p57 = scmp.ne.s32.totalorder %s49, %s52
      %p58 = scmp.eq.s32.totalorder %s25, 0
      %p59 = por %p57, %p58
      %p60 = scmp.ne.s32.totalorder %s49, %s52
      %p61 = scmp.eq.s32.totalorder %s30, 3
      %p62 = por %p60, %p61
      %p63 = scmp.ne.s32.totalorder %s52, %s53
      %p64 = scmp.eq.s32.totalorder %s30, 0
      %p65 = por %p63, %p64
      %p66 = scmp.ne.s32.totalorder %s52, %s53
      %p67 = scmp.eq.s32.totalorder %s31, 3
      %p68 = por %p66, %p67
      %p70 = scmp.ne.s32.totalorder %s53, %s69
      %p71 = scmp.eq.s32.totalorder %s31, 0
      %p72 = por %p70, %p71
      %s74 = sadd.s32 %s73, 1
      %p77 = scmp.eq.s32.totalorder %s25, 3
      %p78 = scmp.ne.s32.totalorder %s73, %s75
      %p79 = scmp.eq.s32.totalorder %s25, 0
      %p80 = por %p78, %p79
      %p81 = scmp.ne.s32.totalorder %s73, %s75
      %p82 = scmp.eq.s32.totalorder %s30, 3
      %p83 = por %p81, %p82
      %p84 = scmp.ne.s32.totalorder %s75, %s76
      %p85 = scmp.eq.s32.totalorder %s30, 0
      %p86 = por %p84, %p85
      %p87 = scmp.ne.s32.totalorder %s75, %s76
      %p88 = scmp.eq.s32.totalorder %s31, 3
      %p89 = por %p87, %p88
      %p91 = scmp.ne.s32.totalorder %s76, %s90
      %p92 = scmp.eq.s32.totalorder %s31, 0
      %p93 = por %p91, %p92
      %s95 = sadd.s32 %s94, 1
      %p98 = scmp.eq.s32.totalorder %s25, 3
      %p99 = scmp.ne.s32.totalorder %s94, %s96
      %p100 = scmp.eq.s32.totalorder %s25, 0
      %p101 = por %p99, %p100
      %p102 = scmp.ne.s32.totalorder %s94, %s96
      %p103 = scmp.eq.s32.totalorder %s30, 3
      %p104 = por %p102, %p103
      %p105 = scmp.ne.s32.totalorder %s96, %s97
      %p106 = scmp.eq.s32.totalorder %s30, 0
      %p107 = por %p105, %p106
      %p108 = scmp.ne.s32.totalorder %s96, %s97
      %p109 = scmp.eq.s32.totalorder %s31, 3
      %p110 = por %p108, %p109
      %p112 = scmp.ne.s32.totalorder %s97, %s111
      %p113 = scmp.eq.s32.totalorder %s31, 0
      %p114 = por %p112, %p113
      %s116 = sadd.s32 %s115, 1
      %p119 = scmp.eq.s32.totalorder %s25, 3
      %p120 = scmp.ne.s32.totalorder %s115, %s117
      %p121 = scmp.eq.s32.totalorder %s25, 0
      %p122 = por %p120, %p121
      %p123 = scmp.ne.s32.totalorder %s115, %s117
      %p124 = scmp.eq.s32.totalorder %s30, 3
      %p125 = por %p123, %p124
      %p126 = scmp.ne.s32.totalorder %s117, %s118
      %p127 = scmp.eq.s32.totalorder %s30, 0
      %p128 = por %p126, %p127
      %p129 = scmp.ne.s32.totalorder %s117, %s118
      %p130 = scmp.eq.s32.totalorder %s31, 3
      %p131 = por %p129, %p130
      %p133 = scmp.ne.s32.totalorder %s118, %s132
      %p134 = scmp.eq.s32.totalorder %s31, 0
      %p135 = por %p133, %p134
      %s137 = sadd.s32 %s136, 1
      %p140 = scmp.eq.s32.totalorder %s25, 3
      %p141 = scmp.ne.s32.totalorder %s136, %s138
      %p142 = scmp.eq.s32.totalorder %s25, 0
      %p143 = por %p141, %p142
      %p144 = scmp.ne.s32.totalorder %s136, %s138
      %p145 = scmp.eq.s32.totalorder %s30, 3
      %p146 = por %p144, %p145
      %p147 = scmp.ne.s32.totalorder %s138, %s139
      %p148 = scmp.eq.s32.totalorder %s30, 0
      %p149 = por %p147, %p148
      %p150 = scmp.ne.s32.totalorder %s138, %s139
      %p151 = scmp.eq.s32.totalorder %s31, 3
      %p152 = por %p150, %p151
      %p154 = scmp.ne.s32.totalorder %s139, %s153
      %p155 = scmp.eq.s32.totalorder %s31, 0
      %p156 = por %p154, %p155
      %s158 = sadd.s32 %s157, 1
      %p161 = scmp.eq.s32.totalorder %s25, 3
      %p162 = scmp.ne.s32.totalorder %s157, %s159
      %p163 = scmp.eq.s32.totalorder %s25, 0
      %p164 = por %p162, %p163
      %p165 = scmp.ne.s32.totalorder %s157, %s159
      %p166 = scmp.eq.s32.totalorder %s30, 3
      %p167 = por %p165, %p166
      %p168 = scmp.ne.s32.totalorder %s159, %s160
      %p169 = scmp.eq.s32.totalorder %s30, 0
      %p170 = por %p168, %p169
      %p171 = scmp.ne.s32.totalorder %s159, %s160
      %p172 = scmp.eq.s32.totalorder %s31, 3
      %p173 = por %p171, %p172
      %p175 = scmp.ne.s32.totalorder %s160, %s174
      %p176 = scmp.eq.s32.totalorder %s31, 0
      %p177 = por %p175, %p176
      %s179 = sadd.s32 %s178, 1
      %p182 = scmp.eq.s32.totalorder %s25, 3
      %p183 = scmp.ne.s32.totalorder %s178, %s180
      %p184 = scmp.eq.s32.totalorder %s25, 0
      %p185 = por %p183, %p184
      %p186 = scmp.ne.s32.totalorder %s178, %s180
      %p187 = scmp.eq.s32.totalorder %s30, 3
      %p188 = por %p186, %p187
      %p189 = scmp.ne.s32.totalorder %s180, %s181
      %p190 = scmp.eq.s32.totalorder %s30, 0
      %p191 = por %p189, %p190
      %p192 = scmp.ne.s32.totalorder %s180, %s181
      %p193 = scmp.eq.s32.totalorder %s31, 3
      %p194 = por %p192, %p193
      %p196 = scmp.ne.s32.totalorder %s181, %s195
      %p197 = scmp.eq.s32.totalorder %s31, 0
      %p198 = por %p196, %p197
      %s200 = sadd.s32 %s199, 1
      %p203 = scmp.eq.s32.totalorder %s25, 3
      %p204 = scmp.ne.s32.totalorder %s199, %s201
      %p205 = scmp.eq.s32.totalorder %s25, 0
      %p206 = por %p204, %p205
      %p207 = scmp.ne.s32.totalorder %s199, %s201
      %p208 = scmp.eq.s32.totalorder %s30, 3
      %p209 = por %p207, %p208
      %p210 = scmp.ne.s32.totalorder %s201, %s202
      %p211 = scmp.eq.s32.totalorder %s30, 0
      %p212 = por %p210, %p211
      %p213 = scmp.ne.s32.totalorder %s201, %s202
      %p214 = scmp.eq.s32.totalorder %s31, 3
      %p215 = por %p213, %p214
      %p217 = scmp.ne.s32.totalorder %s202, %s216
      %p218 = scmp.eq.s32.totalorder %s31, 0
      %p219 = por %p217, %p218
      %s221 = sadd.s32 %s220, 1
      %p224 = scmp.eq.s32.totalorder %s25, 3
      %p225 = scmp.ne.s32.totalorder %s220, %s222
      %p226 = scmp.eq.s32.totalorder %s25, 0
      %p227 = por %p225, %p226
      %p228 = scmp.ne.s32.totalorder %s220, %s222
      %p229 = scmp.eq.s32.totalorder %s30, 3
      %p230 = por %p228, %p229
      %p231 = scmp.ne.s32.totalorder %s222, %s223
      %p232 = scmp.eq.s32.totalorder %s30, 0
      %p233 = por %p231, %p232
      %p234 = scmp.ne.s32.totalorder %s222, %s223
      %p235 = scmp.eq.s32.totalorder %s31, 3
      %p236 = por %p234, %p235
      %p238 = scmp.ne.s32.totalorder %s223, %s237
      %p239 = scmp.eq.s32.totalorder %s31, 0
      %p240 = por %p238, %p239
      %s241 = ssub.s32 %s32, %s44
      %p242 = scmp.eq.s32.totalorder %s241, 0
      %s244 = sadd.s32 %s243, 1
      %s245 = scalar_select %p242, %s243, %s244
      %p248 = pneg %p242
      %p249 = scmp.eq.s32.totalorder %s25, 3
      %p250 = por %p248, %p249
      %p251 = scmp.ne.s32.totalorder %s243, %s246
      %p252 = scmp.eq.s32.totalorder %s25, 0
      %p253 = por %p251, %p252
      %p254 = scmp.ne.s32.totalorder %s243, %s246
      %p255 = scmp.eq.s32.totalorder %s30, 3
      %p256 = por %p254, %p255
      %p257 = scmp.ne.s32.totalorder %s246, %s247
      %p258 = scmp.eq.s32.totalorder %s30, 0
      %p259 = por %p257, %p258
      %p260 = scmp.ne.s32.totalorder %s246, %s247
      %p261 = scmp.eq.s32.totalorder %s31, 3
      %p262 = por %p260, %p261
      %p264 = scmp.ne.s32.totalorder %s247, %s263
      %p265 = scmp.eq.s32.totalorder %s31, 0
      %p266 = por %p264, %p265
      %p267 = scmp.le.s32.totalorder 1, %s25
      %p268 = scmp.lt.s32.totalorder %s25, 5
      %p269 = pnand %p267, %p268
      %p270 = pneg %p269
      // Predicated region
      $region9: #{tpu_custom_call.1} parent=5 // pred_check
        _
      $region10: #{tpu_custom_call.1} parent=5 // pred_check_branch
        %272 = sbr.rel (%p269) target = $region12
      $region11: #{tpu_custom_call.1} parent=5 // pred_region
        %s273 = ssub.s32 %s25, 1
        // Predicated region
        $region13: #{tpu_custom_call.1} parent=11 // pred_check
          %p274 = pneg %p86
        $region14: #{tpu_custom_call.1} parent=11 // pred_check_branch
          %276 = sbr.rel (%p274) target = $region16
        $region15: #{tpu_custom_call.1} parent=11 // pred_region
          %s278 = ssub.s32 512, 512
          %279 = vsyncadd [#allocation6], %s278
          %s280 = sshll.u32 [#allocation5], 4
          %s281 = int_to_ptr.vmem [resolvable:$true] %s280
          %286 = dma.hbm_to_vmem [thread:$0]  %s1, 512, %s281, [#allocation6], 64, 64, 4
        $region16: #{tpu_custom_call.1} parent=11 // pred_fallthru
          _
        // Predicated region
        $region17: #{tpu_custom_call.1} parent=11 // pred_check
          %p287 = pneg %p107
        $region18: #{tpu_custom_call.1} parent=11 // pred_check_branch
          %289 = sbr.rel (%p287) target = $region20
        $region19: #{tpu_custom_call.1} parent=11 // pred_region
          %s291 = ssub.s32 1024, 1024
          %292 = vsyncadd [#allocation6], %s291
          %s293 = sshll.u32 [#allocation7], 4
          %s294 = int_to_ptr.vmem [resolvable:$true] %s293
          %299 = dma.hbm_to_vmem [thread:$0]  %s2, 1024, %s294, [#allocation6], 128, 128, 8
        $region20: #{tpu_custom_call.1} parent=11 // pred_fallthru
          _
        // Predicated region
        $region21: #{tpu_custom_call.1} parent=11 // pred_check
          %p300 = pneg %p128
        $region22: #{tpu_custom_call.1} parent=11 // pred_check_branch
          %302 = sbr.rel (%p300) target = $region24
        $region23: #{tpu_custom_call.1} parent=11 // pred_region
          %s304 = ssub.s32 1024, 1024
          %305 = vsyncadd [#allocation9], %s304
          %s306 = sshll.u32 [#allocation8], 4
          %s307 = int_to_ptr.vmem [resolvable:$true] %s306
          %312 = dma.hbm_to_vmem [thread:$0]  %s3, 1024, %s307, [#allocation9], 64, 64, 4
        $region24: #{tpu_custom_call.1} parent=11 // pred_fallthru
          _
        // Predicated region
        $region25: #{tpu_custom_call.1} parent=11 // pred_check
          %p313 = pneg %p149
        $region26: #{tpu_custom_call.1} parent=11 // pred_check_branch
          %315 = sbr.rel (%p313) target = $region28
        $region27: #{tpu_custom_call.1} parent=11 // pred_region
          %s317 = ssub.s32 2048, 2048
          %318 = vsyncadd [#allocation9], %s317
          %s319 = sshll.u32 [#allocation10], 4
          %s320 = int_to_ptr.vmem [resolvable:$true] %s319
          %325 = dma.hbm_to_vmem [thread:$0]  %s4, 2048, %s320, [#allocation9], 128, 128, 8
        $region28: #{tpu_custom_call.1} parent=11 // pred_fallthru
          _
        // Predicated region
        $region29: #{tpu_custom_call.1} parent=11 // pred_check
          %p326 = pneg %p170
        $region30: #{tpu_custom_call.1} parent=11 // pred_check_branch
          %328 = sbr.rel (%p326) target = $region32
        $region31: #{tpu_custom_call.1} parent=11 // pred_region
          %s330 = ssub.s32 2048, 2048
          %331 = vsyncadd [#allocation12], %s330
          %s332 = sshll.u32 [#allocation11], 4
          %s333 = int_to_ptr.vmem [resolvable:$true] %s332
          %338 = dma.hbm_to_vmem [thread:$0]  %s5, 2048, %s333, [#allocation12], 64, 64, 4
        $region32: #{tpu_custom_call.1} parent=11 // pred_fallthru
          _
        // Predicated region
        $region33: #{tpu_custom_call.1} parent=11 // pred_check
          %p339 = pneg %p191
        $region34: #{tpu_custom_call.1} parent=11 // pred_check_branch
          %341 = sbr.rel (%p339) target = $region36
        $region35: #{tpu_custom_call.1} parent=11 // pred_region
          %s343 = ssub.s32 4096, 4096
          %344 = vsyncadd [#allocation12], %s343
          %s345 = sshll.u32 [#allocation13], 4
          %s346 = int_to_ptr.vmem [resolvable:$true] %s345
          %351 = dma.hbm_to_vmem [thread:$0]  %s6, 4096, %s346, [#allocation12], 128, 128, 8
        $region36: #{tpu_custom_call.1} parent=11 // pred_fallthru
          _
        // Predicated region
        $region37: #{tpu_custom_call.1} parent=11 // pred_check
          %p352 = pneg %p212
        $region38: #{tpu_custom_call.1} parent=11 // pred_check_branch
          %354 = sbr.rel (%p352) target = $region40
        $region39: #{tpu_custom_call.1} parent=11 // pred_region
          %s356 = ssub.s32 1024, 1024
          %357 = vsyncadd [#allocation15], %s356
          %s358 = sshll.u32 [#allocation14], 4
          %s359 = int_to_ptr.vmem [resolvable:$true] %s358
          %364 = dma.hbm_to_vmem [thread:$0]  %s7, 1024, %s359, [#allocation15], 128, 128, 8
        $region40: #{tpu_custom_call.1} parent=11 // pred_fallthru
          _
        // Predicated region
        $region41: #{tpu_custom_call.1} parent=11 // pred_check
          %p365 = pneg %p233
        $region42: #{tpu_custom_call.1} parent=11 // pred_check_branch
          %367 = sbr.rel (%p365) target = $region44
        $region43: #{tpu_custom_call.1} parent=11 // pred_region
          %s369 = ssub.s32 1024, 1024
          %370 = vsyncadd [#allocation15], %s369
          %s371 = sshll.u32 [#allocation16], 4
          %s372 = int_to_ptr.vmem [resolvable:$true] %s371
          %377 = dma.hbm_to_vmem [thread:$0]  %s8, 1024, %s372, [#allocation15], 128, 128, 8
        $region44: #{tpu_custom_call.1} parent=11 // pred_fallthru
          _
      $region12: #{tpu_custom_call.1} parent=5 // pred_fallthru
        _
      %p378 = scmp.lt.s32.totalorder %s25, 4
      // Predicated region
      $region45: #{tpu_custom_call.1} parent=5 // pred_check
        %p379 = pneg %p378
      $region46: #{tpu_custom_call.1} parent=5 // pred_check_branch
        %381 = sbr.rel (%p379) target = $region48
      $region47: #{tpu_custom_call.1} parent=5 // pred_region
        // Predicated region
        $region49: #{tpu_custom_call.1} parent=47 // pred_check
          %p382 = pneg %p59
        $region50: #{tpu_custom_call.1} parent=47 // pred_check_branch
          %384 = sbr.rel (%p382) target = $region52
        $region51: #{tpu_custom_call.1} parent=47 // pred_region
          %s385 = sand.u32 %s49, 1
          %s386 = scalar_lea.sflag [#allocation3], %s385
          %s387 = sand.u32 %s49, 1
          %s388 = smul.addr %s387, 4
          %s389 = scalar_lea.vmem [#allocation2], %s388
          %s390 = smul.u32 2, %s33
          %s392 = ssub.s32 64, 64
          %393 = vsyncadd %s386, %s392
          %s394 = smul.addr %s32, 4
          %s395 = sadd.s32 %s390, %s394
          %s396 = smul.addr %s395, 32
          %s397 = scalar_lea.hbm %s0, %s396
          %s399 = sshll.u32 %s389, 4
          %s400 = int_to_ptr.vmem [resolvable:$true] %s399
          %402 = dma.hbm_to_vmem [thread:$0]  %s397, 64, %s400, %s386
        $region52: #{tpu_custom_call.1} parent=47 // pred_fallthru
          _
      $region48: #{tpu_custom_call.1} parent=5 // pred_fallthru
        _
      %p403 = scmp.le.s32.totalorder 1, %s25
      %p404 = scmp.lt.s32.totalorder %s25, 5
      %p405 = pnand %p403, %p404
      %p406 = pneg %p405
      // Predicated region
      $region53: #{tpu_custom_call.1} parent=5 // pred_check
        _
      $region54: #{tpu_custom_call.1} parent=5 // pred_check_branch
        %408 = sbr.rel (%p405) target = $region56
      $region55: #{tpu_custom_call.1} parent=5 // pred_region
        %s409 = ssub.s32 %s25, 1
        %s410 = sand.u32 %s52, 1
        %s411 = scalar_lea.sflag [#allocation3], %s410
        %s412 = sand.u32 %s52, 1
        %s413 = smul.addr %s412, 4
        %s414 = scalar_lea.vmem [#allocation2], %s413
        // Predicated region
        $region57: #{tpu_custom_call.1} parent=55 // pred_check
          %p415 = pneg %p65
        $region58: #{tpu_custom_call.1} parent=55 // pred_check_branch
          %417 = sbr.rel (%p415) target = $region60
        $region59: #{tpu_custom_call.1} parent=55 // pred_region
          %418 = dma.done %s411, 64
        $region60: #{tpu_custom_call.1} parent=55 // pred_fallthru
          _
        // Predicated region
        $region61: #{tpu_custom_call.1} parent=55 // pred_check
          %p419 = pneg %p86
        $region62: #{tpu_custom_call.1} parent=55 // pred_check_branch
          %421 = sbr.rel (%p419) target = $region64
        $region63: #{tpu_custom_call.1} parent=55 // pred_region
          %422 = dma.done [#allocation6], 512
        $region64: #{tpu_custom_call.1} parent=55 // pred_fallthru
          _
        // Predicated region
        $region65: #{tpu_custom_call.1} parent=55 // pred_check
          %p423 = pneg %p107
        $region66: #{tpu_custom_call.1} parent=55 // pred_check_branch
          %425 = sbr.rel (%p423) target = $region68
        $region67: #{tpu_custom_call.1} parent=55 // pred_region
          %426 = dma.done [#allocation6], 1024
        $region68: #{tpu_custom_call.1} parent=55 // pred_fallthru
          _
        // Predicated region
        $region69: #{tpu_custom_call.1} parent=55 // pred_check
          %p427 = pneg %p128
        $region70: #{tpu_custom_call.1} parent=55 // pred_check_branch
          %429 = sbr.rel (%p427) target = $region72
        $region71: #{tpu_custom_call.1} parent=55 // pred_region
          %430 = dma.done [#allocation9], 1024
        $region72: #{tpu_custom_call.1} parent=55 // pred_fallthru
          _
        // Predicated region
        $region73: #{tpu_custom_call.1} parent=55 // pred_check
          %p431 = pneg %p149
        $region74: #{tpu_custom_call.1} parent=55 // pred_check_branch
          %433 = sbr.rel (%p431) target = $region76
        $region75: #{tpu_custom_call.1} parent=55 // pred_region
          %434 = dma.done [#allocation9], 2048
        $region76: #{tpu_custom_call.1} parent=55 // pred_fallthru
          _
        // Predicated region
        $region77: #{tpu_custom_call.1} parent=55 // pred_check
          %p435 = pneg %p170
        $region78: #{tpu_custom_call.1} parent=55 // pred_check_branch
          %437 = sbr.rel (%p435) target = $region80
        $region79: #{tpu_custom_call.1} parent=55 // pred_region
          %438 = dma.done [#allocation12], 2048
        $region80: #{tpu_custom_call.1} parent=55 // pred_fallthru
          _
        // Predicated region
        $region81: #{tpu_custom_call.1} parent=55 // pred_check
          %p439 = pneg %p191
        $region82: #{tpu_custom_call.1} parent=55 // pred_check_branch
          %441 = sbr.rel (%p439) target = $region84
        $region83: #{tpu_custom_call.1} parent=55 // pred_region
          %442 = dma.done [#allocation12], 4096
        $region84: #{tpu_custom_call.1} parent=55 // pred_fallthru
          _
        // Predicated region
        $region85: #{tpu_custom_call.1} parent=55 // pred_check
          %p443 = pneg %p212
        $region86: #{tpu_custom_call.1} parent=55 // pred_check_branch
          %445 = sbr.rel (%p443) target = $region88
        $region87: #{tpu_custom_call.1} parent=55 // pred_region
          %446 = dma.done [#allocation15], 1024
        $region88: #{tpu_custom_call.1} parent=55 // pred_fallthru
          _
        // Predicated region
        $region89: #{tpu_custom_call.1} parent=55 // pred_check
          %p447 = pneg %p233
        $region90: #{tpu_custom_call.1} parent=55 // pred_check_branch
          %449 = sbr.rel (%p447) target = $region92
        $region91: #{tpu_custom_call.1} parent=55 // pred_region
          %450 = dma.done [#allocation15], 1024
        $region92: #{tpu_custom_call.1} parent=55 // pred_fallthru
          _
        %s451 = sand.u32 %s52, 1
        %s452 = scalar_lea.sflag [#allocation3], %s451
        %s453 = sand.u32 %s52, 1
        %s454 = smul.addr %s453, 4
        %s455 = scalar_lea.vmem [#allocation2], %s454
        %p456 = pneg %p65
        %p457 = pneg %p62
        %p458 = pneg %p86
        %p459 = pneg %p83
        %p460 = pneg %p107
        %p461 = pneg %p104
        %p462 = pneg %p128
        %p463 = pneg %p125
        %p464 = pneg %p149
        %p465 = pneg %p146
        %p466 = pneg %p170
        %p467 = pneg %p167
        %p468 = pneg %p191
        %p469 = pneg %p188
        %p470 = pneg %p212
        %p471 = pneg %p209
        %p472 = pneg %p233
        %p473 = pneg %p230
        %p474 = pneg %p259
        %p475 = pneg %p256
        %s476 = sand.u32 %s246, 1
        %s477 = scalar_lea.sflag [#allocation4], %s476
        %s478 = sand.u32 %s246, 1
        %s479 = smul.addr %s478, 64
        %s480 = scalar_lea.vmem [#allocation17], %s479
        %s481 = smul.u32 2, %s35
        %v483 = vld [vmem:[%s414] sm:$0xf]
        %v484 = vld [vmem:[#allocation5] sm:$0xf]
        %v485 = vld [vmem:[#allocation5 + $0x4] sm:$0xf]
        %v486 = vld [vmem:[#allocation5 + $0x8] sm:$0xf]
        %v487 = vld [vmem:[#allocation5 + $0xc] sm:$0xf]
        %v488 = vld [vmem:[#allocation5 + $0x10] sm:$0xf]
        %v489 = vld [vmem:[#allocation5 + $0x14] sm:$0xf]
        %v490 = vld [vmem:[#allocation5 + $0x18] sm:$0xf]
        %v491 = vld [vmem:[#allocation5 + $0x1c] sm:$0xf]
        %v492 = vld [vmem:[#allocation7] sm:$0xff]
        %v493 = vld [vmem:[#allocation7 + $0x8] sm:$0xff]
        %v494 = vld [vmem:[#allocation7 + $0x10] sm:$0xff]
        %v495 = vld [vmem:[#allocation7 + $0x18] sm:$0xff]
        %v496 = vld [vmem:[#allocation7 + $0x20] sm:$0xff]
        %v497 = vld [vmem:[#allocation7 + $0x28] sm:$0xff]
        %v498 = vld [vmem:[#allocation7 + $0x30] sm:$0xff]
        %v499 = vld [vmem:[#allocation7 + $0x38] sm:$0xff]
        %501 = vset.pattern.permute.xlu0 0
        %502 = vperm.xlu0 %501, %v492
        %v503 = vpop.permute.xlu0 %502
        %506 = vset.pattern.permute.xlu0 0
        %507 = vperm.xlu0 %506, %v493
        %v508 = vpop.permute.xlu0 %507
        %511 = vset.pattern.permute.xlu0 0
        %512 = vperm.xlu0 %511, %v494
        %v513 = vpop.permute.xlu0 %512
        %516 = vset.pattern.permute.xlu0 0
        %517 = vperm.xlu0 %516, %v495
        %v518 = vpop.permute.xlu0 %517
        %521 = vset.pattern.permute.xlu0 0
        %522 = vperm.xlu0 %521, %v496
        %v523 = vpop.permute.xlu0 %522
        %526 = vset.pattern.permute.xlu0 0
        %527 = vperm.xlu0 %526, %v497
        %v528 = vpop.permute.xlu0 %527
        %531 = vset.pattern.permute.xlu0 0
        %532 = vperm.xlu0 %531, %v498
        %v533 = vpop.permute.xlu0 %532
        %536 = vset.pattern.permute.xlu0 0
        %537 = vperm.xlu0 %536, %v499
        %v538 = vpop.permute.xlu0 %537
        %v548 = vunpack.c.l.b16 %v484
        %v549 = vunpack.c.l.b16 %v485
        %v550 = vunpack.c.l.b16 %v486
        %v551 = vunpack.c.l.b16 %v487
        %v552 = vunpack.c.l.b16 %v488
        %v553 = vunpack.c.l.b16 %v489
        %v554 = vunpack.c.l.b16 %v490
        %v555 = vunpack.c.l.b16 %v491
        %v556 = vpack.c.b16 %v549, %v548
        %v557 = vpack.c.b16 %v551, %v550
        %v558 = vpack.c.b16 %v553, %v552
        %v559 = vpack.c.b16 %v555, %v554
        %v562 = vunpack.c.l.s4 1983009808
        %v563 = vunpack.c.0.s8 %v562
        %v564 = vlaneseq
        %v565 = vshrl.u32 %v564, 7
        %v566 = vsub.s32 %v563, %v565
        %v567 = vrot.slane %v483, %v566
        %v568 = vcombine.high %v567, %v567
        %vm569 = vcmask 23552
        %v571 = vsel %vm569, %v556, 0
        %v574 = vsel %vm569, %v557, 0
        %v577 = vsel %vm569, %v558, 0
        %v580 = vsel %vm569, %v559, 0
        %vm582 = vcmask 1040384
        %vm583 = vcmask 1041408
        %v584 = vsel %vm582, 4294967295, 65535
        %v585 = vsel %vm583, %v584, 0
        %v587 = vand.u32 %v567, %v585
        %v590 = vand.u32 %v568, %v585
        %592 = vmatprep.subr.bf16.mxu0 %v590
        %593 = vmatpush1.bf16.msra.mxu0 %v587
        %594 = vmatprep.subr.bf16.mxu0 0
        %595 = vmatpush1.bf16.msra.mxu0 0
        %596 = vmatprep.subr.bf16.mxu0 0
        %597 = vmatpush1.bf16.msra.mxu0 0
        %598 = vmatprep.subr.bf16.mxu0 0
        %599 = vmatpush1.bf16.msra.mxu0 0
        %600 = vmatprep.subr.bf16.mxu0 0
        %601 = vmatpush1.bf16.msra.mxu0 0
        %602 = vmatprep.subr.bf16.mxu0 0
        %603 = vmatpush1.bf16.msra.mxu0 0
        %604 = vmatprep.subr.bf16.mxu0 0
        %605 = vmatpush1.bf16.msra.mxu0 0
        %606 = vmatprep.subr.bf16.mxu0 0
        %607 = vmatpush1.bf16.msra.mxu0 0
        %608 = vmatprep.subr.bf16.mxu0 0
        %609 = vmatpush1.bf16.msra.mxu0 0
        %610 = vmatprep.subr.bf16.mxu0 0
        %611 = vmatpush1.bf16.msra.mxu0 0
        %612 = vmatprep.subr.bf16.mxu0 0
        %613 = vmatpush1.bf16.msra.mxu0 0
        %614 = vmatprep.subr.bf16.mxu0 0
        %615 = vmatpush1.bf16.msra.mxu0 0
        %616 = vmatprep.subr.bf16.mxu0 0
        %617 = vmatpush1.bf16.msra.mxu0 0
        %618 = vmatprep.subr.bf16.mxu0 0
        %619 = vmatpush1.bf16.msra.mxu0 0
        %620 = vmatprep.subr.bf16.mxu0 0
        %621 = vmatpush1.bf16.msra.mxu0 0
        %622 = vmatprep.subr.bf16.mxu0 0
        %623 = vmatpush1.bf16.msra.mxu0 0
        %624 = vmatprep.mubr.bf16.mxu0 0
        %625 = vmatmul.mubr.bf16.gmra.mrb[0].mxu0 %v571
        %v626 = vpop.f32.mrb[0].mxu0
        %v627 = vadd.f32 %v503, %v626
        %v628 = vpop.f32.mrb[0].mxu0
        %v629 = vadd.f32 %v503, %v628
        %v630 = vpop.f32.mrb[0].mxu0
        %v631 = vadd.f32 %v508, %v630
        %v632 = vpop.f32.mrb[0].mxu0
        %v633 = vadd.f32 %v508, %v632
        %634 = vmatprep.mubr.bf16.mxu0 0
        %635 = vmatmul.mubr.bf16.gmra.mrb[0].mxu0 %v574
        %v636 = vpop.f32.mrb[0].mxu0
        %v637 = vadd.f32 %v513, %v636
        %v638 = vpop.f32.mrb[0].mxu0
        %v639 = vadd.f32 %v513, %v638
        %v640 = vpop.f32.mrb[0].mxu0
        %v641 = vadd.f32 %v518, %v640
        %v642 = vpop.f32.mrb[0].mxu0
        %v643 = vadd.f32 %v518, %v642
        %644 = vmatprep.mubr.bf16.mxu0 0
        %645 = vmatmul.mubr.bf16.gmra.mrb[0].mxu0 %v577
        %v646 = vpop.f32.mrb[0].mxu0
        %v647 = vadd.f32 %v523, %v646
        %v648 = vpop.f32.mrb[0].mxu0
        %v649 = vadd.f32 %v523, %v648
        %v650 = vpop.f32.mrb[0].mxu0
        %v651 = vadd.f32 %v528, %v650
        %v652 = vpop.f32.mrb[0].mxu0
        %v653 = vadd.f32 %v528, %v652
        %654 = vmatprep.mubr.bf16.mxu0 0
        %655 = vmatmul.mubr.bf16.gmra.mrb[0].mxu0 %v580
        %v656 = vpop.f32.mrb[0].mxu0
        %v657 = vadd.f32 %v533, %v656
        %v658 = vpop.f32.mrb[0].mxu0
        %v659 = vadd.f32 %v533, %v658
        %v660 = vpop.f32.mrb[0].mxu0
        %v661 = vadd.f32 %v538, %v660
        %v662 = vpop.f32.mrb[0].mxu0
        %v663 = vadd.f32 %v538, %v662
        %664 = vdwg.mxu0
        %v665 = vmax.f32 %v627, 0.0
        %v666 = vmax.f32 %v629, 0.0
        %v667 = vmax.f32 %v631, 0.0
        %v668 = vmax.f32 %v633, 0.0
        %v669 = vmax.f32 %v637, 0.0
        %v670 = vmax.f32 %v639, 0.0
        %v671 = vmax.f32 %v641, 0.0
        %v672 = vmax.f32 %v643, 0.0
        %v673 = vmax.f32 %v647, 0.0
        %v674 = vmax.f32 %v649, 0.0
        %v675 = vmax.f32 %v651, 0.0
        %v676 = vmax.f32 %v653, 0.0
        %v677 = vmax.f32 %v657, 0.0
        %v678 = vmax.f32 %v659, 0.0
        %v679 = vmax.f32 %v661, 0.0
        %v680 = vmax.f32 %v663, 0.0
        %v681 = vpack.c.bf16 %v667, %v665
        %v682 = vpack.c.bf16 %v668, %v666
        %v683 = vpack.c.bf16 %v671, %v669
        %v684 = vpack.c.bf16 %v672, %v670
        %v685 = vpack.c.bf16 %v675, %v673
        %v686 = vpack.c.bf16 %v676, %v674
        %v687 = vpack.c.bf16 %v679, %v677
        %v688 = vpack.c.bf16 %v680, %v678
        %v689 = vld [vmem:[#allocation8] sm:$0xf]
        %v690 = vld [vmem:[#allocation8 + $0x4] sm:$0xf]
        %v691 = vld [vmem:[#allocation8 + $0x8] sm:$0xf]
        %v692 = vld [vmem:[#allocation8 + $0xc] sm:$0xf]
        %v693 = vld [vmem:[#allocation8 + $0x10] sm:$0xf]
        %v694 = vld [vmem:[#allocation8 + $0x14] sm:$0xf]
        %v695 = vld [vmem:[#allocation8 + $0x18] sm:$0xf]
        %v696 = vld [vmem:[#allocation8 + $0x1c] sm:$0xf]
        %v697 = vld [vmem:[#allocation8 + $0x20] sm:$0xf]
        %v698 = vld [vmem:[#allocation8 + $0x24] sm:$0xf]
        %v699 = vld [vmem:[#allocation8 + $0x28] sm:$0xf]
        %v700 = vld [vmem:[#allocation8 + $0x2c] sm:$0xf]
        %v701 = vld [vmem:[#allocation8 + $0x30] sm:$0xf]
        %v702 = vld [vmem:[#allocation8 + $0x34] sm:$0xf]
        %v703 = vld [vmem:[#allocation8 + $0x38] sm:$0xf]
        %v704 = vld [vmem:[#allocation8 + $0x3c] sm:$0xf]
        %v705 = vld [vmem:[#allocation10] sm:$0xff]
        %v706 = vld [vmem:[#allocation10 + $0x8] sm:$0xff]
        %v707 = vld [vmem:[#allocation10 + $0x10] sm:$0xff]
        %v708 = vld [vmem:[#allocation10 + $0x18] sm:$0xff]
        %v709 = vld [vmem:[#allocation10 + $0x20] sm:$0xff]
        %v710 = vld [vmem:[#allocation10 + $0x28] sm:$0xff]
        %v711 = vld [vmem:[#allocation10 + $0x30] sm:$0xff]
        %v712 = vld [vmem:[#allocation10 + $0x38] sm:$0xff]
        %v713 = vld [vmem:[#allocation10 + $0x40] sm:$0xff]
        %v714 = vld [vmem:[#allocation10 + $0x48] sm:$0xff]
        %v715 = vld [vmem:[#allocation10 + $0x50] sm:$0xff]
        %v716 = vld [vmem:[#allocation10 + $0x58] sm:$0xff]
        %v717 = vld [vmem:[#allocation10 + $0x60] sm:$0xff]
        %v718 = vld [vmem:[#allocation10 + $0x68] sm:$0xff]
        %v719 = vld [vmem:[#allocation10 + $0x70] sm:$0xff]
        %v720 = vld [vmem:[#allocation10 + $0x78] sm:$0xff]
        %722 = vset.pattern.permute.xlu0 0
        %723 = vperm.xlu0 %722, %v705
        %v724 = vpop.permute.xlu0 %723
        %727 = vset.pattern.permute.xlu0 0
        %728 = vperm.xlu0 %727, %v706
        %v729 = vpop.permute.xlu0 %728
        %732 = vset.pattern.permute.xlu0 0
        %733 = vperm.xlu0 %732, %v707
        %v734 = vpop.permute.xlu0 %733
        %737 = vset.pattern.permute.xlu0 0
        %738 = vperm.xlu0 %737, %v708
        %v739 = vpop.permute.xlu0 %738
        %742 = vset.pattern.permute.xlu0 0
        %743 = vperm.xlu0 %742, %v709
        %v744 = vpop.permute.xlu0 %743
        %747 = vset.pattern.permute.xlu0 0
        %748 = vperm.xlu0 %747, %v710
        %v749 = vpop.permute.xlu0 %748
        %752 = vset.pattern.permute.xlu0 0
        %753 = vperm.xlu0 %752, %v711
        %v754 = vpop.permute.xlu0 %753
        %757 = vset.pattern.permute.xlu0 0
        %758 = vperm.xlu0 %757, %v712
        %v759 = vpop.permute.xlu0 %758
        %762 = vset.pattern.permute.xlu0 0
        %763 = vperm.xlu0 %762, %v713
        %v764 = vpop.permute.xlu0 %763
        %767 = vset.pattern.permute.xlu0 0
        %768 = vperm.xlu0 %767, %v714
        %v769 = vpop.permute.xlu0 %768
        %772 = vset.pattern.permute.xlu0 0
        %773 = vperm.xlu0 %772, %v715
        %v774 = vpop.permute.xlu0 %773
        %777 = vset.pattern.permute.xlu0 0
        %778 = vperm.xlu0 %777, %v716
        %v779 = vpop.permute.xlu0 %778
        %782 = vset.pattern.permute.xlu0 0
        %783 = vperm.xlu0 %782, %v717
        %v784 = vpop.permute.xlu0 %783
        %787 = vset.pattern.permute.xlu0 0
        %788 = vperm.xlu0 %787, %v718
        %v789 = vpop.permute.xlu0 %788
        %792 = vset.pattern.permute.xlu0 0
        %793 = vperm.xlu0 %792, %v719
        %v794 = vpop.permute.xlu0 %793
        %797 = vset.pattern.permute.xlu0 0
        %798 = vperm.xlu0 %797, %v720
        %v799 = vpop.permute.xlu0 %798
        %v817 = vunpack.c.l.b16 %v689
        %v818 = vunpack.c.l.b16 %v690
        %v819 = vunpack.c.l.b16 %v691
        %v820 = vunpack.c.l.b16 %v692
        %v821 = vunpack.c.l.b16 %v693
        %v822 = vunpack.c.l.b16 %v694
        %v823 = vunpack.c.l.b16 %v695
        %v824 = vunpack.c.l.b16 %v696
        %v825 = vunpack.c.l.b16 %v697
        %v826 = vunpack.c.l.b16 %v698
        %v827 = vunpack.c.l.b16 %v699
        %v828 = vunpack.c.l.b16 %v700
        %v829 = vunpack.c.l.b16 %v701
        %v830 = vunpack.c.l.b16 %v702
        %v831 = vunpack.c.l.b16 %v703
        %v832 = vunpack.c.l.b16 %v704
        %v833 = vpack.c.b16 %v818, %v817
        %v834 = vpack.c.b16 %v820, %v819
        %v835 = vpack.c.b16 %v822, %v821
        %v836 = vpack.c.b16 %v824, %v823
        %v837 = vpack.c.b16 %v826, %v825
        %v838 = vpack.c.b16 %v828, %v827
        %v839 = vpack.c.b16 %v830, %v829
        %v840 = vpack.c.b16 %v832, %v831
        %vm841 = vcmask 523264
        %v843 = vsel %vm841, %v833, 0
        %v846 = vsel %vm841, %v834, 0
        %v849 = vsel %vm841, %v835, 0
        %v852 = vsel %vm841, %v836, 0
        %v855 = vsel %vm841, %v837, 0
        %v858 = vsel %vm841, %v838, 0
        %v861 = vsel %vm841, %v839, 0
        %v864 = vsel %vm841, %v840, 0
        %866 = vmatprep.subr.bf16.mxu0 %v682
        %867 = vmatpush1.bf16.msra.mxu0 %v681
        %868 = vmatprep.subr.bf16.mxu0 %v684
        %869 = vmatpush1.bf16.msra.mxu0 %v683
        %870 = vmatprep.subr.bf16.mxu0 %v686
        %871 = vmatpush1.bf16.msra.mxu0 %v685
        %872 = vmatprep.subr.bf16.mxu0 %v688
        %873 = vmatpush1.bf16.msra.mxu0 %v687
        %874 = vmatprep.subr.bf16.mxu0 0
        %875 = vmatpush1.bf16.msra.mxu0 0
        %876 = vmatprep.subr.bf16.mxu0 0
        %877 = vmatpush1.bf16.msra.mxu0 0
        %878 = vmatprep.subr.bf16.mxu0 0
        %879 = vmatpush1.bf16.msra.mxu0 0
        %880 = vmatprep.subr.bf16.mxu0 0
        %881 = vmatpush1.bf16.msra.mxu0 0
        %882 = vmatprep.subr.bf16.mxu0 0
        %883 = vmatpush1.bf16.msra.mxu0 0
        %884 = vmatprep.subr.bf16.mxu0 0
        %885 = vmatpush1.bf16.msra.mxu0 0
        %886 = vmatprep.subr.bf16.mxu0 0
        %887 = vmatpush1.bf16.msra.mxu0 0
        %888 = vmatprep.subr.bf16.mxu0 0
        %889 = vmatpush1.bf16.msra.mxu0 0
        %890 = vmatprep.subr.bf16.mxu0 0
        %891 = vmatpush1.bf16.msra.mxu0 0
        %892 = vmatprep.subr.bf16.mxu0 0
        %893 = vmatpush1.bf16.msra.mxu0 0
        %894 = vmatprep.subr.bf16.mxu0 0
        %895 = vmatpush1.bf16.msra.mxu0 0
        %896 = vmatprep.subr.bf16.mxu0 0
        %897 = vmatpush1.bf16.msra.mxu0 0
        %898 = vmatprep.mubr.bf16.mxu0 0
        %899 = vmatmul.mubr.bf16.gmra.mrb[0].mxu0 %v843
        %v900 = vpop.f32.mrb[0].mxu0
        %v901 = vadd.f32 %v724, %v900
        %v902 = vpop.f32.mrb[0].mxu0
        %v903 = vadd.f32 %v724, %v902
        %v904 = vpop.f32.mrb[0].mxu0
        %v905 = vadd.f32 %v729, %v904
        %v906 = vpop.f32.mrb[0].mxu0
        %v907 = vadd.f32 %v729, %v906
        %908 = vmatprep.mubr.bf16.mxu0 0
        %909 = vmatmul.mubr.bf16.gmra.mrb[0].mxu0 %v846
        %v910 = vpop.f32.mrb[0].mxu0
        %v911 = vadd.f32 %v734, %v910
        %v912 = vpop.f32.mrb[0].mxu0
        %v913 = vadd.f32 %v734, %v912
        %v914 = vpop.f32.mrb[0].mxu0
        %v915 = vadd.f32 %v739, %v914
        %v916 = vpop.f32.mrb[0].mxu0
        %v917 = vadd.f32 %v739, %v916
        %918 = vmatprep.mubr.bf16.mxu0 0
        %919 = vmatmul.mubr.bf16.gmra.mrb[0].mxu0 %v849
        %v920 = vpop.f32.mrb[0].mxu0
        %v921 = vadd.f32 %v744, %v920
        %v922 = vpop.f32.mrb[0].mxu0
        %v923 = vadd.f32 %v744, %v922
        %v924 = vpop.f32.mrb[0].mxu0
        %v925 = vadd.f32 %v749, %v924
        %v926 = vpop.f32.mrb[0].mxu0
        %v927 = vadd.f32 %v749, %v926
        %928 = vmatprep.mubr.bf16.mxu0 0
        %929 = vmatmul.mubr.bf16.gmra.mrb[0].mxu0 %v852
        %v930 = vpop.f32.mrb[0].mxu0
        %v931 = vadd.f32 %v754, %v930
        %v932 = vpop.f32.mrb[0].mxu0
        %v933 = vadd.f32 %v754, %v932
        %v934 = vpop.f32.mrb[0].mxu0
        %v935 = vadd.f32 %v759, %v934
        %v936 = vpop.f32.mrb[0].mxu0
        %v937 = vadd.f32 %v759, %v936
        %938 = vmatprep.mubr.bf16.mxu0 0
        %939 = vmatmul.mubr.bf16.gmra.mrb[0].mxu0 %v855
        %v940 = vpop.f32.mrb[0].mxu0
        %v941 = vadd.f32 %v764, %v940
        %v942 = vpop.f32.mrb[0].mxu0
        %v943 = vadd.f32 %v764, %v942
        %v944 = vpop.f32.mrb[0].mxu0
        %v945 = vadd.f32 %v769, %v944
        %v946 = vpop.f32.mrb[0].mxu0
        %v947 = vadd.f32 %v769, %v946
        %948 = vmatprep.mubr.bf16.mxu0 0
        %949 = vmatmul.mubr.bf16.gmra.mrb[0].mxu0 %v858
        %v950 = vpop.f32.mrb[0].mxu0
        %v951 = vadd.f32 %v774, %v950
        %v952 = vpop.f32.mrb[0].mxu0
        %v953 = vadd.f32 %v774, %v952
        %v954 = vpop.f32.mrb[0].mxu0
        %v955 = vadd.f32 %v779, %v954
        %v956 = vpop.f32.mrb[0].mxu0
        %v957 = vadd.f32 %v779, %v956
        %958 = vmatprep.mubr.bf16.mxu0 0
        %959 = vmatmul.mubr.bf16.gmra.mrb[0].mxu0 %v861
        %v960 = vpop.f32.mrb[0].mxu0
        %v961 = vadd.f32 %v784, %v960
        %v962 = vpop.f32.mrb[0].mxu0
        %v963 = vadd.f32 %v784, %v962
        %v964 = vpop.f32.mrb[0].mxu0
        %v965 = vadd.f32 %v789, %v964
        %v966 = vpop.f32.mrb[0].mxu0
        %v967 = vadd.f32 %v789, %v966
        %968 = vmatprep.mubr.bf16.mxu0 0
        %969 = vmatmul.mubr.bf16.gmra.mrb[0].mxu0 %v864
        %v970 = vpop.f32.mrb[0].mxu0
        %v971 = vadd.f32 %v794, %v970
        %v972 = vpop.f32.mrb[0].mxu0
        %v973 = vadd.f32 %v794, %v972
        %v974 = vpop.f32.mrb[0].mxu0
        %v975 = vadd.f32 %v799, %v974
        %v976 = vpop.f32.mrb[0].mxu0
        %v977 = vadd.f32 %v799, %v976
        %978 = vdwg.mxu0
        %v979 = vmax.f32 %v901, 0.0
        %v980 = vmax.f32 %v903, 0.0
        %v981 = vmax.f32 %v905, 0.0
        %v982 = vmax.f32 %v907, 0.0
        %v983 = vmax.f32 %v911, 0.0
        %v984 = vmax.f32 %v913, 0.0
        %v985 = vmax.f32 %v915, 0.0
        %v986 = vmax.f32 %v917, 0.0
        %v987 = vmax.f32 %v921, 0.0
        %v988 = vmax.f32 %v923, 0.0
        %v989 = vmax.f32 %v925, 0.0
        %v990 = vmax.f32 %v927, 0.0
        %v991 = vmax.f32 %v931, 0.0
        %v992 = vmax.f32 %v933, 0.0
        %v993 = vmax.f32 %v935, 0.0
        %v994 = vmax.f32 %v937, 0.0
        %v995 = vmax.f32 %v941, 0.0
        %v996 = vmax.f32 %v943, 0.0
        %v997 = vmax.f32 %v945, 0.0
        %v998 = vmax.f32 %v947, 0.0
        %v999 = vmax.f32 %v951, 0.0
        %v1000 = vmax.f32 %v953, 0.0
        %v1001 = vmax.f32 %v955, 0.0
        %v1002 = vmax.f32 %v957, 0.0
        %v1003 = vmax.f32 %v961, 0.0
        %v1004 = vmax.f32 %v963, 0.0
        %v1005 = vmax.f32 %v965, 0.0
        %v1006 = vmax.f32 %v967, 0.0
        %v1007 = vmax.f32 %v971, 0.0
        %v1008 = vmax.f32 %v973, 0.0
        %v1009 = vmax.f32 %v975, 0.0
        %v1010 = vmax.f32 %v977, 0.0
        %v1011 = vpack.c.bf16 %v981, %v979
        %v1012 = vpack.c.bf16 %v982, %v980
        %v1013 = vpack.c.bf16 %v985, %v983
        %v1014 = vpack.c.bf16 %v986, %v984
        %v1015 = vpack.c.bf16 %v989, %v987
        %v1016 = vpack.c.bf16 %v990, %v988
        %v1017 = vpack.c.bf16 %v993, %v991
        %v1018 = vpack.c.bf16 %v994, %v992
        %v1019 = vpack.c.bf16 %v997, %v995
        %v1020 = vpack.c.bf16 %v998, %v996
        %v1021 = vpack.c.bf16 %v1001, %v999
        %v1022 = vpack.c.bf16 %v1002, %v1000
        %v1023 = vpack.c.bf16 %v1005, %v1003
        %v1024 = vpack.c.bf16 %v1006, %v1004
        %v1025 = vpack.c.bf16 %v1009, %v1007
        %v1026 = vpack.c.bf16 %v1010, %v1008
        %v1027 = vld [vmem:[#allocation11] sm:$0xf]
        %v1028 = vld [vmem:[#allocation11 + $0x4] sm:$0xf]
        %v1029 = vld [vmem:[#allocation11 + $0x8] sm:$0xf]
        %v1030 = vld [vmem:[#allocation11 + $0xc] sm:$0xf]
        %v1031 = vld [vmem:[#allocation11 + $0x10] sm:$0xf]
        %v1032 = vld [vmem:[#allocation11 + $0x14] sm:$0xf]
        %v1033 = vld [vmem:[#allocation11 + $0x18] sm:$0xf]
        %v1034 = vld [vmem:[#allocation11 + $0x1c] sm:$0xf]
        %v1035 = vld [vmem:[#allocation11 + $0x20] sm:$0xf]
        %v1036 = vld [vmem:[#allocation11 + $0x24] sm:$0xf]
        %v1037 = vld [vmem:[#allocation11 + $0x28] sm:$0xf]
        %v1038 = vld [vmem:[#allocation11 + $0x2c] sm:$0xf]
        %v1039 = vld [vmem:[#allocation11 + $0x30] sm:$0xf]
        %v1040 = vld [vmem:[#allocation11 + $0x34] sm:$0xf]
        %v1041 = vld [vmem:[#allocation11 + $0x38] sm:$0xf]
        %v1042 = vld [vmem:[#allocation11 + $0x3c] sm:$0xf]
        %v1043 = vld [vmem:[#allocation11 + $0x40] sm:$0xf]
        %v1044 = vld [vmem:[#allocation11 + $0x44] sm:$0xf]
        %v1045 = vld [vmem:[#allocation11 + $0x48] sm:$0xf]
        %v1046 = vld [vmem:[#allocation11 + $0x4c] sm:$0xf]
        %v1047 = vld [vmem:[#allocation11 + $0x50] sm:$0xf]
        %v1048 = vld [vmem:[#allocation11 + $0x54] sm:$0xf]
        %v1049 = vld [vmem:[#allocation11 + $0x58] sm:$0xf]
        %v1050 = vld [vmem:[#allocation11 + $0x5c] sm:$0xf]
        %v1051 = vld [vmem:[#allocation11 + $0x60] sm:$0xf]
        %v1052 = vld [vmem:[#allocation11 + $0x64] sm:$0xf]
        %v1053 = vld [vmem:[#allocation11 + $0x68] sm:$0xf]
        %v1054 = vld [vmem:[#allocation11 + $0x6c] sm:$0xf]
        %v1055 = vld [vmem:[#allocation11 + $0x70] sm:$0xf]
        %v1056 = vld [vmem:[#allocation11 + $0x74] sm:$0xf]
        %v1057 = vld [vmem:[#allocation11 + $0x78] sm:$0xf]
        %v1058 = vld [vmem:[#allocation11 + $0x7c] sm:$0xf]
        %v1059 = vld [vmem:[#allocation13] sm:$0xff]
        %v1060 = vld [vmem:[#allocation13 + $0x8] sm:$0xff]
        %v1061 = vld [vmem:[#allocation13 + $0x10] sm:$0xff]
        %v1062 = vld [vmem:[#allocation13 + $0x18] sm:$0xff]
        %v1063 = vld [vmem:[#allocation13 + $0x20] sm:$0xff]
        %v1064 = vld [vmem:[#allocation13 + $0x28] sm:$0xff]
        %v1065 = vld [vmem:[#allocation13 + $0x30] sm:$0xff]
        %v1066 = vld [vmem:[#allocation13 + $0x38] sm:$0xff]
        %v1067 = vld [vmem:[#allocation13 + $0x40] sm:$0xff]
        %v1068 = vld [vmem:[#allocation13 + $0x48] sm:$0xff]
        %v1069 = vld [vmem:[#allocation13 + $0x50] sm:$0xff]
        %v1070 = vld [vmem:[#allocation13 + $0x58] sm:$0xff]
        %v1071 = vld [vmem:[#allocation13 + $0x60] sm:$0xff]
        %v1072 = vld [vmem:[#allocation13 + $0x68] sm:$0xff]
        %v1073 = vld [vmem:[#allocation13 + $0x70] sm:$0xff]
        %v1074 = vld [vmem:[#allocation13 + $0x78] sm:$0xff]
        %v1075 = vld [vmem:[#allocation13 + $0x80] sm:$0xff]
        %v1076 = vld [vmem:[#allocation13 + $0x88] sm:$0xff]
        %v1077 = vld [vmem:[#allocation13 + $0x90] sm:$0xff]
        %v1078 = vld [vmem:[#allocation13 + $0x98] sm:$0xff]
        %v1079 = vld [vmem:[#allocation13 + $0xa0] sm:$0xff]
        %v1080 = vld [vmem:[#allocation13 + $0xa8] sm:$0xff]
        %v1081 = vld [vmem:[#allocation13 + $0xb0] sm:$0xff]
        %v1082 = vld [vmem:[#allocation13 + $0xb8] sm:$0xff]
        %v1083 = vld [vmem:[#allocation13 + $0xc0] sm:$0xff]
        %v1084 = vld [vmem:[#allocation13 + $0xc8] sm:$0xff]
        %v1085 = vld [vmem:[#allocation13 + $0xd0] sm:$0xff]
        %v1086 = vld [vmem:[#allocation13 + $0xd8] sm:$0xff]
        %v1087 = vld [vmem:[#allocation13 + $0xe0] sm:$0xff]
        %v1088 = vld [vmem:[#allocation13 + $0xe8] sm:$0xff]
        %v1089 = vld [vmem:[#allocation13 + $0xf0] sm:$0xff]
        %v1090 = vld [vmem:[#allocation13 + $0xf8] sm:$0xff]
        %1092 = vset.pattern.permute.xlu0 0
        %1093 = vperm.xlu0 %1092, %v1059
        %v1094 = vpop.permute.xlu0 %1093
        %1097 = vset.pattern.permute.xlu0 0
        %1098 = vperm.xlu0 %1097, %v1060
        %v1099 = vpop.permute.xlu0 %1098
        %1102 = vset.pattern.permute.xlu0 0
        %1103 = vperm.xlu0 %1102, %v1061
        %v1104 = vpop.permute.xlu0 %1103
        %1107 = vset.pattern.permute.xlu0 0
        %1108 = vperm.xlu0 %1107, %v1062
        %v1109 = vpop.permute.xlu0 %1108
        %1112 = vset.pattern.permute.xlu0 0
        %1113 = vperm.xlu0 %1112, %v1063
        %v1114 = vpop.permute.xlu0 %1113
        %1117 = vset.pattern.permute.xlu0 0
        %1118 = vperm.xlu0 %1117, %v1064
        %v1119 = vpop.permute.xlu0 %1118
        %1122 = vset.pattern.permute.xlu0 0
        %1123 = vperm.xlu0 %1122, %v1065
        %v1124 = vpop.permute.xlu0 %1123
        %1127 = vset.pattern.permute.xlu0 0
        %1128 = vperm.xlu0 %1127, %v1066
        %v1129 = vpop.permute.xlu0 %1128
        %1132 = vset.pattern.permute.xlu0 0
        %1133 = vperm.xlu0 %1132, %v1067
        %v1134 = vpop.permute.xlu0 %1133
        %1137 = vset.pattern.permute.xlu0 0
        %1138 = vperm.xlu0 %1137, %v1068
        %v1139 = vpop.permute.xlu0 %1138
        %1142 = vset.pattern.permute.xlu0 0
        %1143 = vperm.xlu0 %1142, %v1069
        %v1144 = vpop.permute.xlu0 %1143
        %1147 = vset.pattern.permute.xlu0 0
        %1148 = vperm.xlu0 %1147, %v1070
        %v1149 = vpop.permute.xlu0 %1148
        %1152 = vset.pattern.permute.xlu0 0
        %1153 = vperm.xlu0 %1152, %v1071
        %v1154 = vpop.permute.xlu0 %1153
        %1157 = vset.pattern.permute.xlu0 0
        %1158 = vperm.xlu0 %1157, %v1072
        %v1159 = vpop.permute.xlu0 %1158
        %1162 = vset.pattern.permute.xlu0 0
        %1163 = vperm.xlu0 %1162, %v1073
        %v1164 = vpop.permute.xlu0 %1163
        %1167 = vset.pattern.permute.xlu0 0
        %1168 = vperm.xlu0 %1167, %v1074
        %v1169 = vpop.permute.xlu0 %1168
        %1172 = vset.pattern.permute.xlu0 0
        %1173 = vperm.xlu0 %1172, %v1075
        %v1174 = vpop.permute.xlu0 %1173
        %1177 = vset.pattern.permute.xlu0 0
        %1178 = vperm.xlu0 %1177, %v1076
        %v1179 = vpop.permute.xlu0 %1178
        %1182 = vset.pattern.permute.xlu0 0
        %1183 = vperm.xlu0 %1182, %v1077
        %v1184 = vpop.permute.xlu0 %1183
        %1187 = vset.pattern.permute.xlu0 0
        %1188 = vperm.xlu0 %1187, %v1078
        %v1189 = vpop.permute.xlu0 %1188
        %1192 = vset.pattern.permute.xlu0 0
        %1193 = vperm.xlu0 %1192, %v1079
        %v1194 = vpop.permute.xlu0 %1193
        %1197 = vset.pattern.permute.xlu0 0
        %1198 = vperm.xlu0 %1197, %v1080
        %v1199 = vpop.permute.xlu0 %1198
        %1202 = vset.pattern.permute.xlu0 0
        %1203 = vperm.xlu0 %1202, %v1081
        %v1204 = vpop.permute.xlu0 %1203
        %1207 = vset.pattern.permute.xlu0 0
        %1208 = vperm.xlu0 %1207, %v1082
        %v1209 = vpop.permute.xlu0 %1208
        %1212 = vset.pattern.permute.xlu0 0
        %1213 = vperm.xlu0 %1212, %v1083
        %v1214 = vpop.permute.xlu0 %1213
        %1217 = vset.pattern.permute.xlu0 0
        %1218 = vperm.xlu0 %1217, %v1084
        %v1219 = vpop.permute.xlu0 %1218
        %1222 = vset.pattern.permute.xlu0 0
        %1223 = vperm.xlu0 %1222, %v1085
        %v1224 = vpop.permute.xlu0 %1223
        %1227 = vset.pattern.permute.xlu0 0
        %1228 = vperm.xlu0 %1227, %v1086
        %v1229 = vpop.permute.xlu0 %1228
        %1232 = vset.pattern.permute.xlu0 0
        %1233 = vperm.xlu0 %1232, %v1087
        %v1234 = vpop.permute.xlu0 %1233
        %1237 = vset.pattern.permute.xlu0 0
        %1238 = vperm.xlu0 %1237, %v1088
        %v1239 = vpop.permute.xlu0 %1238
        %1242 = vset.pattern.permute.xlu0 0
        %1243 = vperm.xlu0 %1242, %v1089
        %v1244 = vpop.permute.xlu0 %1243
        %1247 = vset.pattern.permute.xlu0 0
        %1248 = vperm.xlu0 %1247, %v1090
        %v1249 = vpop.permute.xlu0 %1248
        %v1283 = vunpack.c.l.b16 %v1027
        %v1284 = vunpack.c.l.b16 %v1028
        %v1285 = vunpack.c.l.b16 %v1029
        %v1286 = vunpack.c.l.b16 %v1030
        %v1287 = vunpack.c.l.b16 %v1031
        %v1288 = vunpack.c.l.b16 %v1032
        %v1289 = vunpack.c.l.b16 %v1033
        %v1290 = vunpack.c.l.b16 %v1034
        %v1291 = vunpack.c.l.b16 %v1035
        %v1292 = vunpack.c.l.b16 %v1036
        %v1293 = vunpack.c.l.b16 %v1037
        %v1294 = vunpack.c.l.b16 %v1038
        %v1295 = vunpack.c.l.b16 %v1039
        %v1296 = vunpack.c.l.b16 %v1040
        %v1297 = vunpack.c.l.b16 %v1041
        %v1298 = vunpack.c.l.b16 %v1042
        %v1299 = vunpack.c.l.b16 %v1043
        %v1300 = vunpack.c.l.b16 %v1044
        %v1301 = vunpack.c.l.b16 %v1045
        %v1302 = vunpack.c.l.b16 %v1046
        %v1303 = vunpack.c.l.b16 %v1047
        %v1304 = vunpack.c.l.b16 %v1048
        %v1305 = vunpack.c.l.b16 %v1049
        %v1306 = vunpack.c.l.b16 %v1050
        %v1307 = vunpack.c.l.b16 %v1051
        %v1308 = vunpack.c.l.b16 %v1052
        %v1309 = vunpack.c.l.b16 %v1053
        %v1310 = vunpack.c.l.b16 %v1054
        %v1311 = vunpack.c.l.b16 %v1055
        %v1312 = vunpack.c.l.b16 %v1056
        %v1313 = vunpack.c.l.b16 %v1057
        %v1314 = vunpack.c.l.b16 %v1058
        %v1315 = vpack.c.b16 %v1284, %v1283
        %v1316 = vpack.c.b16 %v1286, %v1285
        %v1317 = vpack.c.b16 %v1288, %v1287
        %v1318 = vpack.c.b16 %v1290, %v1289
        %v1319 = vpack.c.b16 %v1292, %v1291
        %v1320 = vpack.c.b16 %v1294, %v1293
        %v1321 = vpack.c.b16 %v1296, %v1295
        %v1322 = vpack.c.b16 %v1298, %v1297
        %v1323 = vpack.c.b16 %v1300, %v1299
        %v1324 = vpack.c.b16 %v1302, %v1301
        %v1325 = vpack.c.b16 %v1304, %v1303
        %v1326 = vpack.c.b16 %v1306, %v1305
        %v1327 = vpack.c.b16 %v1308, %v1307
        %v1328 = vpack.c.b16 %v1310, %v1309
        %v1329 = vpack.c.b16 %v1312, %v1311
        %v1330 = vpack.c.b16 %v1314, %v1313
        %1347 = vmatprep.subr.bf16.mxu0 %v1012
        %1348 = vmatpush1.bf16.msra.mxu0 %v1011
        %1349 = vmatprep.subr.bf16.mxu0 %v1014
        %1350 = vmatpush1.bf16.msra.mxu0 %v1013
        %1351 = vmatprep.subr.bf16.mxu0 %v1016
        %1352 = vmatpush1.bf16.msra.mxu0 %v1015
        %1353 = vmatprep.subr.bf16.mxu0 %v1018
        %1354 = vmatpush1.bf16.msra.mxu0 %v1017
        %1355 = vmatprep.subr.bf16.mxu0 %v1020
        %1356 = vmatpush1.bf16.msra.mxu0 %v1019
        %1357 = vmatprep.subr.bf16.mxu0 %v1022
        %1358 = vmatpush1.bf16.msra.mxu0 %v1021
        %1359 = vmatprep.subr.bf16.mxu0 %v1024
        %1360 = vmatpush1.bf16.msra.mxu0 %v1023
        %1361 = vmatprep.subr.bf16.mxu0 %v1026
        %1362 = vmatpush1.bf16.msra.mxu0 %v1025
        %1363 = vmatprep.subr.bf16.mxu0 0
        %1364 = vmatpush1.bf16.msra.mxu0 0
        %1365 = vmatprep.subr.bf16.mxu0 0
        %1366 = vmatpush1.bf16.msra.mxu0 0
        %1367 = vmatprep.subr.bf16.mxu0 0
        %1368 = vmatpush1.bf16.msra.mxu0 0
        %1369 = vmatprep.subr.bf16.mxu0 0
        %1370 = vmatpush1.bf16.msra.mxu0 0
        %1371 = vmatprep.subr.bf16.mxu0 0
        %1372 = vmatpush1.bf16.msra.mxu0 0
        %1373 = vmatprep.subr.bf16.mxu0 0
        %1374 = vmatpush1.bf16.msra.mxu0 0
        %1375 = vmatprep.subr.bf16.mxu0 0
        %1376 = vmatpush1.bf16.msra.mxu0 0
        %1377 = vmatprep.subr.bf16.mxu0 0
        %1378 = vmatpush1.bf16.msra.mxu0 0
        %1379 = vmatprep.mubr.bf16.mxu0 0
        %1380 = vmatmul.mubr.bf16.gmra.mrb[0].mxu0 %v1315
        %v1381 = vpop.f32.mrb[0].mxu0
        %v1382 = vadd.f32 %v1094, %v1381
        %v1383 = vpop.f32.mrb[0].mxu0
        %v1384 = vadd.f32 %v1094, %v1383
        %v1385 = vpop.f32.mrb[0].mxu0
        %v1386 = vadd.f32 %v1099, %v1385
        %v1387 = vpop.f32.mrb[0].mxu0
        %v1388 = vadd.f32 %v1099, %v1387
        %1389 = vmatprep.mubr.bf16.mxu0 0
        %1390 = vmatmul.mubr.bf16.gmra.mrb[0].mxu0 %v1316
        %v1391 = vpop.f32.mrb[0].mxu0
        %v1392 = vadd.f32 %v1104, %v1391
        %v1393 = vpop.f32.mrb[0].mxu0
        %v1394 = vadd.f32 %v1104, %v1393
        %v1395 = vpop.f32.mrb[0].mxu0
        %v1396 = vadd.f32 %v1109, %v1395
        %v1397 = vpop.f32.mrb[0].mxu0
        %v1398 = vadd.f32 %v1109, %v1397
        %1399 = vmatprep.mubr.bf16.mxu0 0
        %1400 = vmatmul.mubr.bf16.gmra.mrb[0].mxu0 %v1317
        %v1401 = vpop.f32.mrb[0].mxu0
        %v1402 = vadd.f32 %v1114, %v1401
        %v1403 = vpop.f32.mrb[0].mxu0
        %v1404 = vadd.f32 %v1114, %v1403
        %v1405 = vpop.f32.mrb[0].mxu0
        %v1406 = vadd.f32 %v1119, %v1405
        %v1407 = vpop.f32.mrb[0].mxu0
        %v1408 = vadd.f32 %v1119, %v1407
        %1409 = vmatprep.mubr.bf16.mxu0 0
        %1410 = vmatmul.mubr.bf16.gmra.mrb[0].mxu0 %v1318
        %v1411 = vpop.f32.mrb[0].mxu0
        %v1412 = vadd.f32 %v1124, %v1411
        %v1413 = vpop.f32.mrb[0].mxu0
        %v1414 = vadd.f32 %v1124, %v1413
        %v1415 = vpop.f32.mrb[0].mxu0
        %v1416 = vadd.f32 %v1129, %v1415
        %v1417 = vpop.f32.mrb[0].mxu0
        %v1418 = vadd.f32 %v1129, %v1417
        %1419 = vmatprep.mubr.bf16.mxu0 0
        %1420 = vmatmul.mubr.bf16.gmra.mrb[0].mxu0 %v1319
        %v1421 = vpop.f32.mrb[0].mxu0
        %v1422 = vadd.f32 %v1134, %v1421
        %v1423 = vpop.f32.mrb[0].mxu0
        %v1424 = vadd.f32 %v1134, %v1423
        %v1425 = vpop.f32.mrb[0].mxu0
        %v1426 = vadd.f32 %v1139, %v1425
        %v1427 = vpop.f32.mrb[0].mxu0
        %v1428 = vadd.f32 %v1139, %v1427
        %1429 = vmatprep.mubr.bf16.mxu0 0
        %1430 = vmatmul.mubr.bf16.gmra.mrb[0].mxu0 %v1320
        %v1431 = vpop.f32.mrb[0].mxu0
        %v1432 = vadd.f32 %v1144, %v1431
        %v1433 = vpop.f32.mrb[0].mxu0
        %v1434 = vadd.f32 %v1144, %v1433
        %v1435 = vpop.f32.mrb[0].mxu0
        %v1436 = vadd.f32 %v1149, %v1435
        %v1437 = vpop.f32.mrb[0].mxu0
        %v1438 = vadd.f32 %v1149, %v1437
        %1439 = vmatprep.mubr.bf16.mxu0 0
        %1440 = vmatmul.mubr.bf16.gmra.mrb[0].mxu0 %v1321
        %v1441 = vpop.f32.mrb[0].mxu0
        %v1442 = vadd.f32 %v1154, %v1441
        %v1443 = vpop.f32.mrb[0].mxu0
        %v1444 = vadd.f32 %v1154, %v1443
        %v1445 = vpop.f32.mrb[0].mxu0
        %v1446 = vadd.f32 %v1159, %v1445
        %v1447 = vpop.f32.mrb[0].mxu0
        %v1448 = vadd.f32 %v1159, %v1447
        %1449 = vmatprep.mubr.bf16.mxu0 0
        %1450 = vmatmul.mubr.bf16.gmra.mrb[0].mxu0 %v1322
        %v1451 = vpop.f32.mrb[0].mxu0
        %v1452 = vadd.f32 %v1164, %v1451
        %v1453 = vpop.f32.mrb[0].mxu0
        %v1454 = vadd.f32 %v1164, %v1453
        %v1455 = vpop.f32.mrb[0].mxu0
        %v1456 = vadd.f32 %v1169, %v1455
        %v1457 = vpop.f32.mrb[0].mxu0
        %v1458 = vadd.f32 %v1169, %v1457
        %1459 = vmatprep.mubr.bf16.mxu0 0
        %1460 = vmatmul.mubr.bf16.gmra.mrb[0].mxu0 %v1323
        %v1461 = vpop.f32.mrb[0].mxu0
        %v1462 = vadd.f32 %v1174, %v1461
        %v1463 = vpop.f32.mrb[0].mxu0
        %v1464 = vadd.f32 %v1174, %v1463
        %v1465 = vpop.f32.mrb[0].mxu0
        %v1466 = vadd.f32 %v1179, %v1465
        %v1467 = vpop.f32.mrb[0].mxu0
        %v1468 = vadd.f32 %v1179, %v1467
        %1469 = vmatprep.mubr.bf16.mxu0 0
        %1470 = vmatmul.mubr.bf16.gmra.mrb[0].mxu0 %v1324
        %v1471 = vpop.f32.mrb[0].mxu0
        %v1472 = vadd.f32 %v1184, %v1471
        %v1473 = vpop.f32.mrb[0].mxu0
        %v1474 = vadd.f32 %v1184, %v1473
        %v1475 = vpop.f32.mrb[0].mxu0
        %v1476 = vadd.f32 %v1189, %v1475
        %v1477 = vpop.f32.mrb[0].mxu0
        %v1478 = vadd.f32 %v1189, %v1477
        %1479 = vmatprep.mubr.bf16.mxu0 0
        %1480 = vmatmul.mubr.bf16.gmra.mrb[0].mxu0 %v1325
        %v1481 = vpop.f32.mrb[0].mxu0
        %v1482 = vadd.f32 %v1194, %v1481
        %v1483 = vpop.f32.mrb[0].mxu0
        %v1484 = vadd.f32 %v1194, %v1483
        %v1485 = vpop.f32.mrb[0].mxu0
        %v1486 = vadd.f32 %v1199, %v1485
        %v1487 = vpop.f32.mrb[0].mxu0
        %v1488 = vadd.f32 %v1199, %v1487
        %1489 = vmatprep.mubr.bf16.mxu0 0
        %1490 = vmatmul.mubr.bf16.gmra.mrb[0].mxu0 %v1326
        %v1491 = vpop.f32.mrb[0].mxu0
        %v1492 = vadd.f32 %v1204, %v1491
        %v1493 = vpop.f32.mrb[0].mxu0
        %v1494 = vadd.f32 %v1204, %v1493
        %v1495 = vpop.f32.mrb[0].mxu0
        %v1496 = vadd.f32 %v1209, %v1495
        %v1497 = vpop.f32.mrb[0].mxu0
        %v1498 = vadd.f32 %v1209, %v1497
        %1499 = vmatprep.mubr.bf16.mxu0 0
        %1500 = vmatmul.mubr.bf16.gmra.mrb[0].mxu0 %v1327
        %v1501 = vpop.f32.mrb[0].mxu0
        %v1502 = vadd.f32 %v1214, %v1501
        %v1503 = vpop.f32.mrb[0].mxu0
        %v1504 = vadd.f32 %v1214, %v1503
        %v1505 = vpop.f32.mrb[0].mxu0
        %v1506 = vadd.f32 %v1219, %v1505
        %v1507 = vpop.f32.mrb[0].mxu0
        %v1508 = vadd.f32 %v1219, %v1507
        %1509 = vmatprep.mubr.bf16.mxu0 0
        %1510 = vmatmul.mubr.bf16.gmra.mrb[0].mxu0 %v1328
        %v1511 = vpop.f32.mrb[0].mxu0
        %v1512 = vadd.f32 %v1224, %v1511
        %v1513 = vpop.f32.mrb[0].mxu0
        %v1514 = vadd.f32 %v1224, %v1513
        %v1515 = vpop.f32.mrb[0].mxu0
        %v1516 = vadd.f32 %v1229, %v1515
        %v1517 = vpop.f32.mrb[0].mxu0
        %v1518 = vadd.f32 %v1229, %v1517
        %1519 = vmatprep.mubr.bf16.mxu0 0
        %1520 = vmatmul.mubr.bf16.gmra.mrb[0].mxu0 %v1329
        %v1521 = vpop.f32.mrb[0].mxu0
        %v1522 = vadd.f32 %v1234, %v1521
        %v1523 = vpop.f32.mrb[0].mxu0
        %v1524 = vadd.f32 %v1234, %v1523
        %v1525 = vpop.f32.mrb[0].mxu0
        %v1526 = vadd.f32 %v1239, %v1525
        %v1527 = vpop.f32.mrb[0].mxu0
        %v1528 = vadd.f32 %v1239, %v1527
        %1529 = vmatprep.mubr.bf16.mxu0 0
        %1530 = vmatmul.mubr.bf16.gmra.mrb[0].mxu0 %v1330
        %v1531 = vpop.f32.mrb[0].mxu0
        %v1532 = vadd.f32 %v1244, %v1531
        %v1533 = vpop.f32.mrb[0].mxu0
        %v1534 = vadd.f32 %v1244, %v1533
        %v1535 = vpop.f32.mrb[0].mxu0
        %v1536 = vadd.f32 %v1249, %v1535
        %v1537 = vpop.f32.mrb[0].mxu0
        %v1538 = vadd.f32 %v1249, %v1537
        %1539 = vdwg.mxu0
        %v1540 = vmax.f32 %v1382, 0.0
        %v1541 = vmax.f32 %v1384, 0.0
        %v1542 = vmax.f32 %v1386, 0.0
        %v1543 = vmax.f32 %v1388, 0.0
        %v1544 = vmax.f32 %v1392, 0.0
        %v1545 = vmax.f32 %v1394, 0.0
        %v1546 = vmax.f32 %v1396, 0.0
        %v1547 = vmax.f32 %v1398, 0.0
        %v1548 = vmax.f32 %v1402, 0.0
        %v1549 = vmax.f32 %v1404, 0.0
        %v1550 = vmax.f32 %v1406, 0.0
        %v1551 = vmax.f32 %v1408, 0.0
        %v1552 = vmax.f32 %v1412, 0.0
        %v1553 = vmax.f32 %v1414, 0.0
        %v1554 = vmax.f32 %v1416, 0.0
        %v1555 = vmax.f32 %v1418, 0.0
        %v1556 = vmax.f32 %v1422, 0.0
        %v1557 = vmax.f32 %v1424, 0.0
        %v1558 = vmax.f32 %v1426, 0.0
        %v1559 = vmax.f32 %v1428, 0.0
        %v1560 = vmax.f32 %v1432, 0.0
        %v1561 = vmax.f32 %v1434, 0.0
        %v1562 = vmax.f32 %v1436, 0.0
        %v1563 = vmax.f32 %v1438, 0.0
        %v1564 = vmax.f32 %v1442, 0.0
        %v1565 = vmax.f32 %v1444, 0.0
        %v1566 = vmax.f32 %v1446, 0.0
        %v1567 = vmax.f32 %v1448, 0.0
        %v1568 = vmax.f32 %v1452, 0.0
        %v1569 = vmax.f32 %v1454, 0.0
        %v1570 = vmax.f32 %v1456, 0.0
        %v1571 = vmax.f32 %v1458, 0.0
        %v1572 = vmax.f32 %v1462, 0.0
        %v1573 = vmax.f32 %v1464, 0.0
        %v1574 = vmax.f32 %v1466, 0.0
        %v1575 = vmax.f32 %v1468, 0.0
        %v1576 = vmax.f32 %v1472, 0.0
        %v1577 = vmax.f32 %v1474, 0.0
        %v1578 = vmax.f32 %v1476, 0.0
        %v1579 = vmax.f32 %v1478, 0.0
        %v1580 = vmax.f32 %v1482, 0.0
        %v1581 = vmax.f32 %v1484, 0.0
        %v1582 = vmax.f32 %v1486, 0.0
        %v1583 = vmax.f32 %v1488, 0.0
        %v1584 = vmax.f32 %v1492, 0.0
        %v1585 = vmax.f32 %v1494, 0.0
        %v1586 = vmax.f32 %v1496, 0.0
        %v1587 = vmax.f32 %v1498, 0.0
        %v1588 = vmax.f32 %v1502, 0.0
        %v1589 = vmax.f32 %v1504, 0.0
        %v1590 = vmax.f32 %v1506, 0.0
        %v1591 = vmax.f32 %v1508, 0.0
        %v1592 = vmax.f32 %v1512, 0.0
        %v1593 = vmax.f32 %v1514, 0.0
        %v1594 = vmax.f32 %v1516, 0.0
        %v1595 = vmax.f32 %v1518, 0.0
        %v1596 = vmax.f32 %v1522, 0.0
        %v1597 = vmax.f32 %v1524, 0.0
        %v1598 = vmax.f32 %v1526, 0.0
        %v1599 = vmax.f32 %v1528, 0.0
        %v1600 = vmax.f32 %v1532, 0.0
        %v1601 = vmax.f32 %v1534, 0.0
        %v1602 = vmax.f32 %v1536, 0.0
        %v1603 = vmax.f32 %v1538, 0.0
        %v1604 = vpack.c.bf16 %v1542, %v1540
        %v1605 = vpack.c.bf16 %v1543, %v1541
        %v1606 = vpack.c.bf16 %v1546, %v1544
        %v1607 = vpack.c.bf16 %v1547, %v1545
        %v1608 = vpack.c.bf16 %v1550, %v1548
        %v1609 = vpack.c.bf16 %v1551, %v1549
        %v1610 = vpack.c.bf16 %v1554, %v1552
        %v1611 = vpack.c.bf16 %v1555, %v1553
        %v1612 = vpack.c.bf16 %v1558, %v1556
        %v1613 = vpack.c.bf16 %v1559, %v1557
        %v1614 = vpack.c.bf16 %v1562, %v1560
        %v1615 = vpack.c.bf16 %v1563, %v1561
        %v1616 = vpack.c.bf16 %v1566, %v1564
        %v1617 = vpack.c.bf16 %v1567, %v1565
        %v1618 = vpack.c.bf16 %v1570, %v1568
        %v1619 = vpack.c.bf16 %v1571, %v1569
        %v1620 = vpack.c.bf16 %v1574, %v1572
        %v1621 = vpack.c.bf16 %v1575, %v1573
        %v1622 = vpack.c.bf16 %v1578, %v1576
        %v1623 = vpack.c.bf16 %v1579, %v1577
        %v1624 = vpack.c.bf16 %v1582, %v1580
        %v1625 = vpack.c.bf16 %v1583, %v1581
        %v1626 = vpack.c.bf16 %v1586, %v1584
        %v1627 = vpack.c.bf16 %v1587, %v1585
        %v1628 = vpack.c.bf16 %v1590, %v1588
        %v1629 = vpack.c.bf16 %v1591, %v1589
        %v1630 = vpack.c.bf16 %v1594, %v1592
        %v1631 = vpack.c.bf16 %v1595, %v1593
        %v1632 = vpack.c.bf16 %v1598, %v1596
        %v1633 = vpack.c.bf16 %v1599, %v1597
        %v1634 = vpack.c.bf16 %v1602, %v1600
        %v1635 = vpack.c.bf16 %v1603, %v1601
        %v1636 = vld [vmem:[#allocation14] sm:$0xff]
        %v1637 = vld [vmem:[#allocation14 + $0x8] sm:$0xff]
        %v1638 = vld [vmem:[#allocation14 + $0x10] sm:$0xff]
        %v1639 = vld [vmem:[#allocation14 + $0x18] sm:$0xff]
        %v1640 = vld [vmem:[#allocation14 + $0x20] sm:$0xff]
        %v1641 = vld [vmem:[#allocation14 + $0x28] sm:$0xff]
        %v1642 = vld [vmem:[#allocation14 + $0x30] sm:$0xff]
        %v1643 = vld [vmem:[#allocation14 + $0x38] sm:$0xff]
        %v1644 = vld [vmem:[#allocation16] sm:$0xff]
        %v1645 = vld [vmem:[#allocation16 + $0x8] sm:$0xff]
        %v1646 = vld [vmem:[#allocation16 + $0x10] sm:$0xff]
        %v1647 = vld [vmem:[#allocation16 + $0x18] sm:$0xff]
        %v1648 = vld [vmem:[#allocation16 + $0x20] sm:$0xff]
        %v1649 = vld [vmem:[#allocation16 + $0x28] sm:$0xff]
        %v1650 = vld [vmem:[#allocation16 + $0x30] sm:$0xff]
        %v1651 = vld [vmem:[#allocation16 + $0x38] sm:$0xff]
        %1653 = vset.pattern.permute.xlu0 0
        %1654 = vperm.xlu0 %1653, %v1644
        %v1655 = vpop.permute.xlu0 %1654
        %1658 = vset.pattern.permute.xlu0 0
        %1659 = vperm.xlu0 %1658, %v1645
        %v1660 = vpop.permute.xlu0 %1659
        %1663 = vset.pattern.permute.xlu0 0
        %1664 = vperm.xlu0 %1663, %v1646
        %v1665 = vpop.permute.xlu0 %1664
        %1668 = vset.pattern.permute.xlu0 0
        %1669 = vperm.xlu0 %1668, %v1647
        %v1670 = vpop.permute.xlu0 %1669
        %1673 = vset.pattern.permute.xlu0 0
        %1674 = vperm.xlu0 %1673, %v1648
        %v1675 = vpop.permute.xlu0 %1674
        %1678 = vset.pattern.permute.xlu0 0
        %1679 = vperm.xlu0 %1678, %v1649
        %v1680 = vpop.permute.xlu0 %1679
        %1683 = vset.pattern.permute.xlu0 0
        %1684 = vperm.xlu0 %1683, %v1650
        %v1685 = vpop.permute.xlu0 %1684
        %1688 = vset.pattern.permute.xlu0 0
        %1689 = vperm.xlu0 %1688, %v1651
        %v1690 = vpop.permute.xlu0 %1689
        %v1700 = vunpack.c.l.b16 %v1636
        %v1701 = vunpack.c.h.b16 %v1636
        %v1702 = vunpack.c.l.b16 %v1637
        %v1703 = vunpack.c.h.b16 %v1637
        %v1704 = vunpack.c.l.b16 %v1638
        %v1705 = vunpack.c.h.b16 %v1638
        %v1706 = vunpack.c.l.b16 %v1639
        %v1707 = vunpack.c.h.b16 %v1639
        %v1708 = vunpack.c.l.b16 %v1640
        %v1709 = vunpack.c.h.b16 %v1640
        %v1710 = vunpack.c.l.b16 %v1641
        %v1711 = vunpack.c.h.b16 %v1641
        %v1712 = vunpack.c.l.b16 %v1642
        %v1713 = vunpack.c.h.b16 %v1642
        %v1714 = vunpack.c.l.b16 %v1643
        %v1715 = vunpack.c.h.b16 %v1643
        %v1716 = vpack.c.b16 %v1702, %v1700
        %v1717 = vpack.c.b16 %v1703, %v1701
        %v1718 = vpack.c.b16 %v1706, %v1704
        %v1719 = vpack.c.b16 %v1707, %v1705
        %v1720 = vpack.c.b16 %v1710, %v1708
        %v1721 = vpack.c.b16 %v1711, %v1709
        %v1722 = vpack.c.b16 %v1714, %v1712
        %v1723 = vpack.c.b16 %v1715, %v1713
        %1732 = vmatprep.subr.bf16.mxu0 %v1605
        %1733 = vmatpush1.bf16.msra.mxu0 %v1604
        %1734 = vmatprep.subr.bf16.mxu0 %v1607
        %1735 = vmatpush1.bf16.msra.mxu0 %v1606
        %1736 = vmatprep.subr.bf16.mxu0 %v1609
        %1737 = vmatpush1.bf16.msra.mxu0 %v1608
        %1738 = vmatprep.subr.bf16.mxu0 %v1611
        %1739 = vmatpush1.bf16.msra.mxu0 %v1610
        %1740 = vmatprep.subr.bf16.mxu0 %v1613
        %1741 = vmatpush1.bf16.msra.mxu0 %v1612
        %1742 = vmatprep.subr.bf16.mxu0 %v1615
        %1743 = vmatpush1.bf16.msra.mxu0 %v1614
        %1744 = vmatprep.subr.bf16.mxu0 %v1617
        %1745 = vmatpush1.bf16.msra.mxu0 %v1616
        %1746 = vmatprep.subr.bf16.mxu0 %v1619
        %1747 = vmatpush1.bf16.msra.mxu0 %v1618
        %1748 = vmatprep.subr.bf16.mxu0 %v1621
        %1749 = vmatpush1.bf16.msra.mxu0 %v1620
        %1750 = vmatprep.subr.bf16.mxu0 %v1623
        %1751 = vmatpush1.bf16.msra.mxu0 %v1622
        %1752 = vmatprep.subr.bf16.mxu0 %v1625
        %1753 = vmatpush1.bf16.msra.mxu0 %v1624
        %1754 = vmatprep.subr.bf16.mxu0 %v1627
        %1755 = vmatpush1.bf16.msra.mxu0 %v1626
        %1756 = vmatprep.subr.bf16.mxu0 %v1629
        %1757 = vmatpush1.bf16.msra.mxu0 %v1628
        %1758 = vmatprep.subr.bf16.mxu0 %v1631
        %1759 = vmatpush1.bf16.msra.mxu0 %v1630
        %1760 = vmatprep.subr.bf16.mxu0 %v1633
        %1761 = vmatpush1.bf16.msra.mxu0 %v1632
        %1762 = vmatprep.subr.bf16.mxu0 %v1635
        %1763 = vmatpush1.bf16.msra.mxu0 %v1634
        %1764 = vmatprep.mubr.bf16.mxu0 %v1717
        %1765 = vmatmul.mubr.bf16.gmra.mrb[0].mxu0 %v1716
        %v1766 = vpop.f32.mrb[0].mxu0
        %v1767 = vadd.f32 %v1655, %v1766
        %v1768 = vpop.f32.mrb[0].mxu0
        %v1769 = vadd.f32 %v1655, %v1768
        %v1770 = vpop.f32.mrb[0].mxu0
        %v1771 = vadd.f32 %v1660, %v1770
        %v1772 = vpop.f32.mrb[0].mxu0
        %v1773 = vadd.f32 %v1660, %v1772
        %1774 = vmatprep.mubr.bf16.mxu0 %v1719
        %1775 = vmatmul.mubr.bf16.gmra.mrb[0].mxu0 %v1718
        %v1776 = vpop.f32.mrb[0].mxu0
        %v1777 = vadd.f32 %v1665, %v1776
        %v1778 = vpop.f32.mrb[0].mxu0
        %v1779 = vadd.f32 %v1665, %v1778
        %v1780 = vpop.f32.mrb[0].mxu0
        %v1781 = vadd.f32 %v1670, %v1780
        %v1782 = vpop.f32.mrb[0].mxu0
        %v1783 = vadd.f32 %v1670, %v1782
        %1784 = vmatprep.mubr.bf16.mxu0 %v1721
        %1785 = vmatmul.mubr.bf16.gmra.mrb[0].mxu0 %v1720
        %v1786 = vpop.f32.mrb[0].mxu0
        %v1787 = vadd.f32 %v1675, %v1786
        %v1788 = vpop.f32.mrb[0].mxu0
        %v1789 = vadd.f32 %v1675, %v1788
        %v1790 = vpop.f32.mrb[0].mxu0
        %v1791 = vadd.f32 %v1680, %v1790
        %v1792 = vpop.f32.mrb[0].mxu0
        %v1793 = vadd.f32 %v1680, %v1792
        %1794 = vmatprep.mubr.bf16.mxu0 %v1723
        %1795 = vmatmul.mubr.bf16.gmra.mrb[0].mxu0 %v1722
        %v1796 = vpop.f32.mrb[0].mxu0
        %v1797 = vadd.f32 %v1685, %v1796
        %v1798 = vpop.f32.mrb[0].mxu0
        %v1799 = vadd.f32 %v1685, %v1798
        %v1800 = vpop.f32.mrb[0].mxu0
        %v1801 = vadd.f32 %v1690, %v1800
        %v1802 = vpop.f32.mrb[0].mxu0
        %v1803 = vadd.f32 %v1690, %v1802
        %1804 = vdwg.mxu0
        %v1805 = vmax.f32 %v1767, 0.0
        %v1806 = vmax.f32 %v1769, 0.0
        %v1807 = vmax.f32 %v1771, 0.0
        %v1808 = vmax.f32 %v1773, 0.0
        %v1809 = vmax.f32 %v1777, 0.0
        %v1810 = vmax.f32 %v1779, 0.0
        %v1811 = vmax.f32 %v1781, 0.0
        %v1812 = vmax.f32 %v1783, 0.0
        %v1813 = vmax.f32 %v1787, 0.0
        %v1814 = vmax.f32 %v1789, 0.0
        %v1815 = vmax.f32 %v1791, 0.0
        %v1816 = vmax.f32 %v1793, 0.0
        %v1817 = vmax.f32 %v1797, 0.0
        %v1818 = vmax.f32 %v1799, 0.0
        %v1819 = vmax.f32 %v1801, 0.0
        %v1820 = vmax.f32 %v1803, 0.0
        %v1821 = vmax.f32 %v1805, %v1806
        %1822 = vmax.xlane.f32.xlu0 %v1821
        %v1823 = vpop.xlane.xlu0 %1822
        %v1824 = vmax.f32 %v1807, %v1808
        %1825 = vmax.xlane.f32.xlu0 %v1824
        %v1826 = vpop.xlane.xlu0 %1825
        %v1827 = vmax.f32 %v1809, %v1810
        %1828 = vmax.xlane.f32.xlu0 %v1827
        %v1829 = vpop.xlane.xlu0 %1828
        %v1830 = vmax.f32 %v1811, %v1812
        %1831 = vmax.xlane.f32.xlu0 %v1830
        %v1832 = vpop.xlane.xlu0 %1831
        %v1833 = vmax.f32 %v1813, %v1814
        %1834 = vmax.xlane.f32.xlu0 %v1833
        %v1835 = vpop.xlane.xlu0 %1834
        %v1836 = vmax.f32 %v1815, %v1816
        %1837 = vmax.xlane.f32.xlu0 %v1836
        %v1838 = vpop.xlane.xlu0 %1837
        %v1839 = vmax.f32 %v1817, %v1818
        %1840 = vmax.xlane.f32.xlu0 %v1839
        %v1841 = vpop.xlane.xlu0 %1840
        %v1842 = vmax.f32 %v1819, %v1820
        %1843 = vmax.xlane.f32.xlu0 %v1842
        %v1844 = vpop.xlane.xlu0 %1843
        %p1845 = scmp.eq.s32.totalorder %s35, 0
        // Predicated region
        $region93: #{tpu_custom_call.1} parent=55 // pred_check
          %p1846 = pneg %p1845
        $region94: #{tpu_custom_call.1} parent=55 // pred_check_branch
          %1848 = sbr.rel (%p1846) target = $region96
        $region95: #{tpu_custom_call.1} parent=55 // pred_region
          %vm1849 = vcmask 7168
          %1850 = vst.msk [vmem:[%s480] sm:$0xff] %vm1849, %v1823
          %1851 = vst.msk [vmem:[%s480 + $0x8] sm:$0xff] %vm1849, %v1826
          %1852 = vst.msk [vmem:[%s480 + $0x10] sm:$0xff] %vm1849, %v1829
          %1853 = vst.msk [vmem:[%s480 + $0x18] sm:$0xff] %vm1849, %v1832
          %1854 = vst.msk [vmem:[%s480 + $0x20] sm:$0xff] %vm1849, %v1835
          %1855 = vst.msk [vmem:[%s480 + $0x28] sm:$0xff] %vm1849, %v1838
          %1856 = vst.msk [vmem:[%s480 + $0x30] sm:$0xff] %vm1849, %v1841
          %1857 = vst.msk [vmem:[%s480 + $0x38] sm:$0xff] %vm1849, %v1844
        $region96: #{tpu_custom_call.1} parent=55 // pred_fallthru
          _
        %p1858 = scmp.ne.s32.totalorder %s35, 0
        // Predicated region
        $region97: #{tpu_custom_call.1} parent=55 // pred_check
          %p1859 = pneg %p1858
        $region98: #{tpu_custom_call.1} parent=55 // pred_check_branch
          %1861 = sbr.rel (%p1859) target = $region100
        $region99: #{tpu_custom_call.1} parent=55 // pred_region
          %v1862 = vld [vmem:[%s480] sm:$0xff]
          %v1863 = vld [vmem:[%s480 + $0x8] sm:$0xff]
          %v1864 = vld [vmem:[%s480 + $0x10] sm:$0xff]
          %v1865 = vld [vmem:[%s480 + $0x18] sm:$0xff]
          %v1866 = vld [vmem:[%s480 + $0x20] sm:$0xff]
          %v1867 = vld [vmem:[%s480 + $0x28] sm:$0xff]
          %v1868 = vld [vmem:[%s480 + $0x30] sm:$0xff]
          %v1869 = vld [vmem:[%s480 + $0x38] sm:$0xff]
          %v1870 = vmax.f32 %v1862, %v1823
          %v1871 = vmax.f32 %v1863, %v1826
          %v1872 = vmax.f32 %v1864, %v1829
          %v1873 = vmax.f32 %v1865, %v1832
          %v1874 = vmax.f32 %v1866, %v1835
          %v1875 = vmax.f32 %v1867, %v1838
          %v1876 = vmax.f32 %v1868, %v1841
          %v1877 = vmax.f32 %v1869, %v1844
          %vm1878 = vcmask 7168
          %1879 = vst.msk [vmem:[%s480] sm:$0xff] %vm1878, %v1870
          %1880 = vst.msk [vmem:[%s480 + $0x8] sm:$0xff] %vm1878, %v1871
          %1881 = vst.msk [vmem:[%s480 + $0x10] sm:$0xff] %vm1878, %v1872
          %1882 = vst.msk [vmem:[%s480 + $0x18] sm:$0xff] %vm1878, %v1873
          %1883 = vst.msk [vmem:[%s480 + $0x20] sm:$0xff] %vm1878, %v1874
          %1884 = vst.msk [vmem:[%s480 + $0x28] sm:$0xff] %vm1878, %v1875
          %1885 = vst.msk [vmem:[%s480 + $0x30] sm:$0xff] %vm1878, %v1876
          %1886 = vst.msk [vmem:[%s480 + $0x38] sm:$0xff] %vm1878, %v1877
        $region100: #{tpu_custom_call.1} parent=55 // pred_fallthru
          _
        %s1887 = sand.u32 %s246, 1
        %s1888 = scalar_lea.sflag [#allocation4], %s1887
        %s1889 = sand.u32 %s246, 1
        %s1890 = smul.addr %s1889, 64
        %s1891 = scalar_lea.vmem [#allocation17], %s1890
        // Predicated region
        $region101: #{tpu_custom_call.1} parent=55 // pred_check
          %p1892 = pneg %p256
        $region102: #{tpu_custom_call.1} parent=55 // pred_check_branch
          %1894 = sbr.rel (%p1892) target = $region104
        $region103: #{tpu_custom_call.1} parent=55 // pred_region
          %s1896 = ssub.s32 1024, 1024
          %1897 = vsyncadd %s1888, %s1896
          %s1898 = smul.addr %s34, 8
          %s1899 = smul.addr %s1898, 128
          %s1900 = scalar_lea.hbm %s9, %s1899
          %s1901 = sshll.u32 %s1891, 4
          %s1902 = int_to_ptr.vmem [resolvable:$true] %s1901
          %1907 = dma.vmem_to_hbm [thread:$0]  %s1902, 1024, %s1900, %s1888, 128, 128, 8
        $region104: #{tpu_custom_call.1} parent=55 // pred_fallthru
          _
      $region56: #{tpu_custom_call.1} parent=5 // pred_fallthru
        _
      %p1908 = scmp.le.s32.totalorder 2, %s25
      // Predicated region
      $region105: #{tpu_custom_call.1} parent=5 // pred_check
        %p1909 = pneg %p1908
      $region106: #{tpu_custom_call.1} parent=5 // pred_check_branch
        %1911 = sbr.rel (%p1909) target = $region108
      $region107: #{tpu_custom_call.1} parent=5 // pred_region
        %s1912 = ssub.s32 %s25, 2
        // Predicated region
        $region109: #{tpu_custom_call.1} parent=107 // pred_check
          %p1913 = pneg %p262
        $region110: #{tpu_custom_call.1} parent=107 // pred_check_branch
          %1915 = sbr.rel (%p1913) target = $region112
        $region111: #{tpu_custom_call.1} parent=107 // pred_region
          %s1916 = sand.u32 %s247, 1
          %s1917 = scalar_lea.sflag [#allocation4], %s1916
          %s1918 = sand.u32 %s247, 1
          %s1919 = smul.addr %s1918, 64
          %s1920 = scalar_lea.vmem [#allocation17], %s1919
          %1921 = dma.done %s1917, 1024
        $region112: #{tpu_custom_call.1} parent=107 // pred_fallthru
          _
      $region108: #{tpu_custom_call.1} parent=5 // pred_fallthru
        _
    $region6: #{tpu_custom_call.1} parent=1 // loop_footer
      %s29 = sadd.s32 1, %s25
    $region7: #{tpu_custom_call.1} parent=1 // loop_footer_branch
      %24 = sbr.rel target = $region3
    $region8: #{tpu_custom_call.1} parent=1 // loop_exit
      _
    %1922 = vsyncpa [#allocation3], 1
    %s1923 = scalar_lea.sflag [#allocation3], 1
    %1924 = vsyncpa %s1923, 1
    %1925 = vsyncpa [#allocation6], 1
    %1926 = vsyncpa [#allocation9], 1
    %1927 = vsyncpa [#allocation12], 1
    %1928 = vsyncpa [#allocation15], 1
    %1929 = vsyncpa [#allocation4], 1
    %s1930 = scalar_lea.sflag [#allocation4], 1
    %1931 = vsyncpa %s1930, 1

// kernel: tpu_custom_call.1
$region0: #{tpu_custom_call.1}
  #allocation0 [shape = 'u32[]', space=smem, size = 0x4, offset = 0x4, fixed_abs, tag = 'smem constant byte address 0x4 - core index']
  #allocation1 [shape = 'u32[144,128]{1,0:T(1,128)}', space=vmem, size = 0x12000, scoped, tag = 'internal scratch']
  %s0 = inlined_call_operand.hbm [shape: bf16[2,3,512], index: 0, kind: input, shape index: {}]
  %s1 = inlined_call_operand.hbm [shape: bf16[64,3], index: 1, kind: input, shape index: {}]
  %s2 = inlined_call_operand.hbm [shape: f32[64,1], index: 2, kind: input, shape index: {}]
  %s3 = inlined_call_operand.hbm [shape: bf16[128,64], index: 3, kind: input, shape index: {}]
  %s4 = inlined_call_operand.hbm [shape: f32[128,1], index: 4, kind: input, shape index: {}]
  %s5 = inlined_call_operand.hbm [shape: bf16[256,128], index: 5, kind: input, shape index: {}]
  %s6 = inlined_call_operand.hbm [shape: f32[256,1], index: 6, kind: input, shape index: {}]
  %s7 = inlined_call_operand.hbm [shape: bf16[64,256], index: 7, kind: input, shape index: {}]
  %s8 = inlined_call_operand.hbm [shape: f32[64,1], index: 8, kind: input, shape index: {}]
  %s9 = inlined_call_operand.hbm [shape: f32[2,64,1], index: 9, kind: output, shape index: {}]
  %s10 = sld [smem:[#allocation0]]
  $region113: #{tpu_custom_call.1} parent=0
    _
  %s12 = ssub.s32 1, %s10
  %s13 = scalar_select 0, %s12, %s10
  $region1: #{tpu_custom_call.1} parent=0
    #allocation2 [shape = 'u8[4096]{0}', space=vmem, size = 0x1000, scoped, tag = 'input window, operand 0']
    #allocation3 [shape = 's32[2]{0}', space=sflag, size = 0x8, scoped, tag = 'scoped memory for tpu_custom_call.1']
    #allocation4 [shape = 's32[2]{0}', space=sflag, size = 0x8, scoped, tag = 'scoped memory for tpu_custom_call.1']
    #allocation5 [shape = 'u8[16384]{0}', space=vmem, size = 0x4000, scoped, tag = 'input window, operand 1, single buffered']
    #allocation6 [shape = 's32[1]{0}', space=sflag, size = 0x4, scoped, tag = 'scoped memory for tpu_custom_call.1']
    #allocation7 [shape = 'u8[32768]{0}', space=vmem, size = 0x8000, scoped, tag = 'input window, operand 2, single buffered']
    #allocation8 [shape = 'u8[32768]{0}', space=vmem, size = 0x8000, scoped, tag = 'input window, operand 3, single buffered']
    #allocation9 [shape = 's32[1]{0}', space=sflag, size = 0x4, scoped, tag = 'scoped memory for tpu_custom_call.1']
    #allocation10 [shape = 'u8[65536]{0}', space=vmem, size = 0x10000, scoped, tag = 'input window, operand 4, single buffered']
    #allocation11 [shape = 'u8[65536]{0}', space=vmem, size = 0x10000, scoped, tag = 'input window, operand 5, single buffered']
    #allocation12 [shape = 's32[1]{0}', space=sflag, size = 0x4, scoped, tag = 'scoped memory for tpu_custom_call.1']
    #allocation13 [shape = 'u8[131072]{0}', space=vmem, size = 0x20000, scoped, tag = 'input window, operand 6, single buffered']
    #allocation14 [shape = 'u8[32768]{0}', space=vmem, size = 0x8000, scoped, tag = 'input window, operand 7, single buffered']
    #allocation15 [shape = 's32[1]{0}', space=sflag, size = 0x4, scoped, tag = 'scoped memory for tpu_custom_call.1']
    #allocation16 [shape = 'u8[32768]{0}', space=vmem, size = 0x8000, scoped, tag = 'input window, operand 8, single buffered']
    #allocation17 [shape = 'u8[65536]{0}', space=vmem, size = 0x10000, scoped, tag = 'output window, operand 0']
    %14 = vsyncpa [#allocation3], 0
    %s15 = scalar_lea.sflag [#allocation3], 1
    %16 = vsyncpa %s15, 0
    %17 = vsyncpa [#allocation6], 0
    %18 = vsyncpa [#allocation9], 0
    %19 = vsyncpa [#allocation12], 0
    %20 = vsyncpa [#allocation15], 0
    %21 = vsyncpa [#allocation4], 0
    %s22 = scalar_lea.sflag [#allocation4], 1
    %23 = vsyncpa %s22, 0
    loop: start=0, step=1, limit=6
    $region2: #{tpu_custom_call.1} parent=1 // loop_pre_header
      _
    $region3: #{tpu_custom_call.1} parent=1 // loop_header
      %s25 = sphi 0, %s29
      %p26 = scmp.ge.s32.totalorder %s25, 6
      %s32 = sphi 0, %s44
      %s33 = sphi 0, %s40
      %s34 = sphi 0, %s32
      %s35 = sphi 0, %s33
      %s36 = sphi 0, %s34
      %s37 = sphi 0, %s35
      %s49 = sphi 0, %s51
      %s52 = sphi 0, %s49
      %s53 = sphi 0, %s52
      %s69 = sphi 0, %s53
      %s73 = sphi 0, %s73
      %s75 = sphi 0, %s73
      %s76 = sphi 0, %s75
      %s90 = sphi 0, %s76
      %s94 = sphi 0, %s94
      %s96 = sphi 0, %s94
      %s97 = sphi 0, %s96
      %s111 = sphi 0, %s97
      %s115 = sphi 0, %s115
      %s117 = sphi 0, %s115
      %s118 = sphi 0, %s117
      %s132 = sphi 0, %s118
      %s136 = sphi 0, %s136
      %s138 = sphi 0, %s136
      %s139 = sphi 0, %s138
      %s153 = sphi 0, %s139
      %s157 = sphi 0, %s157
      %s159 = sphi 0, %s157
      %s160 = sphi 0, %s159
      %s174 = sphi 0, %s160
      %s178 = sphi 0, %s178
      %s180 = sphi 0, %s178
      %s181 = sphi 0, %s180
      %s195 = sphi 0, %s181
      %s199 = sphi 0, %s199
      %s201 = sphi 0, %s199
      %s202 = sphi 0, %s201
      %s216 = sphi 0, %s202
      %s220 = sphi 0, %s220
      %s222 = sphi 0, %s220
      %s223 = sphi 0, %s222
      %s237 = sphi 0, %s223
      %s243 = sphi 0, %s245
      %s246 = sphi 0, %s243
      %s247 = sphi 0, %s246
      %s263 = sphi 0, %s247
    $region4: #{tpu_custom_call.1} parent=1 // loop_header_branch
      %28 = sbr.rel (%p26) target = $region8
    $region5: #{tpu_custom_call.1} parent=1 // loop_body
      %s30 = ssub.s32 %s25, 1
      %s31 = ssub.s32 %s25, 2
      %s38 = sadd.s32 1, %s33
      %p39 = scmp.ge.s32.totalorder %s38, 2
      %s40 = scalar_select %p39, 0, %s38
      %s41 = sadd.s32 1, %s32
      %s42 = scalar_select %p39, %s41, %s32
      %p43 = scmp.ge.s32.totalorder %s42, 2
      %s44 = scalar_select %p43, 0, %s42
      %s45 = ssub.s32 %s32, %s44
      %s46 = ssub.s32 %s33, %s40
      %s47 = sor.u32 %s45, %s46
      %p48 = scmp.eq.s32.totalorder %s47, 0
      %s50 = sadd.s32 %s49, 1
      %s51 = scalar_select %p48, %s49, %s50
      %p54 = pneg %p48
      %p55 = scmp.eq.s32.totalorder %s25, 3
      %p56 = por %p54, %p55
      %p57 = scmp.ne.s32.totalorder %s49, %s52
      %p58 = scmp.eq.s32.totalorder %s25, 0
      %p59 = por %p57, %p58
      %p60 = scmp.ne.s32.totalorder %s49, %s52
      %p61 = scmp.eq.s32.totalorder %s30, 3
      %p62 = por %p60, %p61
      %p63 = scmp.ne.s32.totalorder %s52, %s53
      %p64 = scmp.eq.s32.totalorder %s30, 0
      %p65 = por %p63, %p64
      %p66 = scmp.ne.s32.totalorder %s52, %s53
      %p67 = scmp.eq.s32.totalorder %s31, 3
      %p68 = por %p66, %p67
      %p70 = scmp.ne.s32.totalorder %s53, %s69
      %p71 = scmp.eq.s32.totalorder %s31, 0
      %p72 = por %p70, %p71
      %s74 = sadd.s32 %s73, 1
      %p77 = scmp.eq.s32.totalorder %s25, 3
      %p78 = scmp.ne.s32.totalorder %s73, %s75
      %p79 = scmp.eq.s32.totalorder %s25, 0
      %p80 = por %p78, %p79
      %p81 = scmp.ne.s32.totalorder %s73, %s75
      %p82 = scmp.eq.s32.totalorder %s30, 3
      %p83 = por %p81, %p82
      %p84 = scmp.ne.s32.totalorder %s75, %s76
      %p85 = scmp.eq.s32.totalorder %s30, 0
      %p86 = por %p84, %p85
      %p87 = scmp.ne.s32.totalorder %s75, %s76
      %p88 = scmp.eq.s32.totalorder %s31, 3
      %p89 = por %p87, %p88
      %p91 = scmp.ne.s32.totalorder %s76, %s90
      %p92 = scmp.eq.s32.totalorder %s31, 0
      %p93 = por %p91, %p92
      %s95 = sadd.s32 %s94, 1
      %p98 = scmp.eq.s32.totalorder %s25, 3
      %p99 = scmp.ne.s32.totalorder %s94, %s96
      %p100 = scmp.eq.s32.totalorder %s25, 0
      %p101 = por %p99, %p100
      %p102 = scmp.ne.s32.totalorder %s94, %s96
      %p103 = scmp.eq.s32.totalorder %s30, 3
      %p104 = por %p102, %p103
      %p105 = scmp.ne.s32.totalorder %s96, %s97
      %p106 = scmp.eq.s32.totalorder %s30, 0
      %p107 = por %p105, %p106
      %p108 = scmp.ne.s32.totalorder %s96, %s97
      %p109 = scmp.eq.s32.totalorder %s31, 3
      %p110 = por %p108, %p109
      %p112 = scmp.ne.s32.totalorder %s97, %s111
      %p113 = scmp.eq.s32.totalorder %s31, 0
      %p114 = por %p112, %p113
      %s116 = sadd.s32 %s115, 1
      %p119 = scmp.eq.s32.totalorder %s25, 3
      %p120 = scmp.ne.s32.totalorder %s115, %s117
      %p121 = scmp.eq.s32.totalorder %s25, 0
      %p122 = por %p120, %p121
      %p123 = scmp.ne.s32.totalorder %s115, %s117
      %p124 = scmp.eq.s32.totalorder %s30, 3
      %p125 = por %p123, %p124
      %p126 = scmp.ne.s32.totalorder %s117, %s118
      %p127 = scmp.eq.s32.totalorder %s30, 0
      %p128 = por %p126, %p127
      %p129 = scmp.ne.s32.totalorder %s117, %s118
      %p130 = scmp.eq.s32.totalorder %s31, 3
      %p131 = por %p129, %p130
      %p133 = scmp.ne.s32.totalorder %s118, %s132
      %p134 = scmp.eq.s32.totalorder %s31, 0
      %p135 = por %p133, %p134
      %s137 = sadd.s32 %s136, 1
      %p140 = scmp.eq.s32.totalorder %s25, 3
      %p141 = scmp.ne.s32.totalorder %s136, %s138
      %p142 = scmp.eq.s32.totalorder %s25, 0
      %p143 = por %p141, %p142
      %p144 = scmp.ne.s32.totalorder %s136, %s138
      %p145 = scmp.eq.s32.totalorder %s30, 3
      %p146 = por %p144, %p145
      %p147 = scmp.ne.s32.totalorder %s138, %s139
      %p148 = scmp.eq.s32.totalorder %s30, 0
      %p149 = por %p147, %p148
      %p150 = scmp.ne.s32.totalorder %s138, %s139
      %p151 = scmp.eq.s32.totalorder %s31, 3
      %p152 = por %p150, %p151
      %p154 = scmp.ne.s32.totalorder %s139, %s153
      %p155 = scmp.eq.s32.totalorder %s31, 0
      %p156 = por %p154, %p155
      %s158 = sadd.s32 %s157, 1
      %p161 = scmp.eq.s32.totalorder %s25, 3
      %p162 = scmp.ne.s32.totalorder %s157, %s159
      %p163 = scmp.eq.s32.totalorder %s25, 0
      %p164 = por %p162, %p163
      %p165 = scmp.ne.s32.totalorder %s157, %s159
      %p166 = scmp.eq.s32.totalorder %s30, 3
      %p167 = por %p165, %p166
      %p168 = scmp.ne.s32.totalorder %s159, %s160
      %p169 = scmp.eq.s32.totalorder %s30, 0
      %p170 = por %p168, %p169
      %p171 = scmp.ne.s32.totalorder %s159, %s160
      %p172 = scmp.eq.s32.totalorder %s31, 3
      %p173 = por %p171, %p172
      %p175 = scmp.ne.s32.totalorder %s160, %s174
      %p176 = scmp.eq.s32.totalorder %s31, 0
      %p177 = por %p175, %p176
      %s179 = sadd.s32 %s178, 1
      %p182 = scmp.eq.s32.totalorder %s25, 3
      %p183 = scmp.ne.s32.totalorder %s178, %s180
      %p184 = scmp.eq.s32.totalorder %s25, 0
      %p185 = por %p183, %p184
      %p186 = scmp.ne.s32.totalorder %s178, %s180
      %p187 = scmp.eq.s32.totalorder %s30, 3
      %p188 = por %p186, %p187
      %p189 = scmp.ne.s32.totalorder %s180, %s181
      %p190 = scmp.eq.s32.totalorder %s30, 0
      %p191 = por %p189, %p190
      %p192 = scmp.ne.s32.totalorder %s180, %s181
      %p193 = scmp.eq.s32.totalorder %s31, 3
      %p194 = por %p192, %p193
      %p196 = scmp.ne.s32.totalorder %s181, %s195
      %p197 = scmp.eq.s32.totalorder %s31, 0
      %p198 = por %p196, %p197
      %s200 = sadd.s32 %s199, 1
      %p203 = scmp.eq.s32.totalorder %s25, 3
      %p204 = scmp.ne.s32.totalorder %s199, %s201
      %p205 = scmp.eq.s32.totalorder %s25, 0
      %p206 = por %p204, %p205
      %p207 = scmp.ne.s32.totalorder %s199, %s201
      %p208 = scmp.eq.s32.totalorder %s30, 3
      %p209 = por %p207, %p208
      %p210 = scmp.ne.s32.totalorder %s201, %s202
      %p211 = scmp.eq.s32.totalorder %s30, 0
      %p212 = por %p210, %p211
      %p213 = scmp.ne.s32.totalorder %s201, %s202
      %p214 = scmp.eq.s32.totalorder %s31, 3
      %p215 = por %p213, %p214
      %p217 = scmp.ne.s32.totalorder %s202, %s216
      %p218 = scmp.eq.s32.totalorder %s31, 0
      %p219 = por %p217, %p218
      %s221 = sadd.s32 %s220, 1
      %p224 = scmp.eq.s32.totalorder %s25, 3
      %p225 = scmp.ne.s32.totalorder %s220, %s222
      %p226 = scmp.eq.s32.totalorder %s25, 0
      %p227 = por %p225, %p226
      %p228 = scmp.ne.s32.totalorder %s220, %s222
      %p229 = scmp.eq.s32.totalorder %s30, 3
      %p230 = por %p228, %p229
      %p231 = scmp.ne.s32.totalorder %s222, %s223
      %p232 = scmp.eq.s32.totalorder %s30, 0
      %p233 = por %p231, %p232
      %p234 = scmp.ne.s32.totalorder %s222, %s223
      %p235 = scmp.eq.s32.totalorder %s31, 3
      %p236 = por %p234, %p235
      %p238 = scmp.ne.s32.totalorder %s223, %s237
      %p239 = scmp.eq.s32.totalorder %s31, 0
      %p240 = por %p238, %p239
      %s241 = ssub.s32 %s32, %s44
      %p242 = scmp.eq.s32.totalorder %s241, 0
      %s244 = sadd.s32 %s243, 1
      %s245 = scalar_select %p242, %s243, %s244
      %p248 = pneg %p242
      %p249 = scmp.eq.s32.totalorder %s25, 3
      %p250 = por %p248, %p249
      %p251 = scmp.ne.s32.totalorder %s243, %s246
      %p252 = scmp.eq.s32.totalorder %s25, 0
      %p253 = por %p251, %p252
      %p254 = scmp.ne.s32.totalorder %s243, %s246
      %p255 = scmp.eq.s32.totalorder %s30, 3
      %p256 = por %p254, %p255
      %p257 = scmp.ne.s32.totalorder %s246, %s247
      %p258 = scmp.eq.s32.totalorder %s30, 0
      %p259 = por %p257, %p258
      %p260 = scmp.ne.s32.totalorder %s246, %s247
      %p261 = scmp.eq.s32.totalorder %s31, 3
      %p262 = por %p260, %p261
      %p264 = scmp.ne.s32.totalorder %s247, %s263
      %p265 = scmp.eq.s32.totalorder %s31, 0
      %p266 = por %p264, %p265
      %p267 = scmp.le.s32.totalorder 1, %s25
      %p268 = scmp.lt.s32.totalorder %s25, 5
      %p269 = pnand %p267, %p268
      %p270 = pneg %p269
      // Predicated region
      $region9: #{tpu_custom_call.1} parent=5 // pred_check
        _
      $region10: #{tpu_custom_call.1} parent=5 // pred_check_branch
        %272 = sbr.rel (%p269) target = $region12
      $region11: #{tpu_custom_call.1} parent=5 // pred_region
        %s273 = ssub.s32 %s25, 1
        // Predicated region
        $region13: #{tpu_custom_call.1} parent=11 // pred_check
          %p274 = pneg %p86
        $region14: #{tpu_custom_call.1} parent=11 // pred_check_branch
          %276 = sbr.rel (%p274) target = $region16
        $region15: #{tpu_custom_call.1} parent=11 // pred_region
          %s278 = ssub.s32 512, 512
          %279 = vsyncadd [#allocation6], %s278
          %s280 = sshll.u32 [#allocation5], 4
          %s281 = int_to_ptr.vmem [resolvable:$true] %s280
          %286 = dma.hbm_to_vmem [thread:$0]  %s1, 512, %s281, [#allocation6], 64, 64, 4
        $region16: #{tpu_custom_call.1} parent=11 // pred_fallthru
          _
        // Predicated region
        $region17: #{tpu_custom_call.1} parent=11 // pred_check
          %p287 = pneg %p107
        $region18: #{tpu_custom_call.1} parent=11 // pred_check_branch
          %289 = sbr.rel (%p287) target = $region20
        $region19: #{tpu_custom_call.1} parent=11 // pred_region
          %s291 = ssub.s32 1024, 1024
          %292 = vsyncadd [#allocation6], %s291
          %s293 = sshll.u32 [#allocation7], 4
          %s294 = int_to_ptr.vmem [resolvable:$true] %s293
          %299 = dma.hbm_to_vmem [thread:$0]  %s2, 1024, %s294, [#allocation6], 128, 128, 8
        $region20: #{tpu_custom_call.1} parent=11 // pred_fallthru
          _
        // Predicated region
        $region21: #{tpu_custom_call.1} parent=11 // pred_check
          %p300 = pneg %p128
        $region22: #{tpu_custom_call.1} parent=11 // pred_check_branch
          %302 = sbr.rel (%p300) target = $region24
        $region23: #{tpu_custom_call.1} parent=11 // pred_region
          %s304 = ssub.s32 1024, 1024
          %305 = vsyncadd [#allocation9], %s304
          %s306 = sshll.u32 [#allocation8], 4
          %s307 = int_to_ptr.vmem [resolvable:$true] %s306
          %312 = dma.hbm_to_vmem [thread:$0]  %s3, 1024, %s307, [#allocation9], 64, 64, 4
        $region24: #{tpu_custom_call.1} parent=11 // pred_fallthru
          _
        // Predicated region
        $region25: #{tpu_custom_call.1} parent=11 // pred_check
          %p313 = pneg %p149
        $region26: #{tpu_custom_call.1} parent=11 // pred_check_branch
          %315 = sbr.rel (%p313) target = $region28
        $region27: #{tpu_custom_call.1} parent=11 // pred_region
          %s317 = ssub.s32 2048, 2048
          %318 = vsyncadd [#allocation9], %s317
          %s319 = sshll.u32 [#allocation10], 4
          %s320 = int_to_ptr.vmem [resolvable:$true] %s319
          %325 = dma.hbm_to_vmem [thread:$0]  %s4, 2048, %s320, [#allocation9], 128, 128, 8
        $region28: #{tpu_custom_call.1} parent=11 // pred_fallthru
          _
        // Predicated region
        $region29: #{tpu_custom_call.1} parent=11 // pred_check
          %p326 = pneg %p170
        $region30: #{tpu_custom_call.1} parent=11 // pred_check_branch
          %328 = sbr.rel (%p326) target = $region32
        $region31: #{tpu_custom_call.1} parent=11 // pred_region
          %s330 = ssub.s32 2048, 2048
          %331 = vsyncadd [#allocation12], %s330
          %s332 = sshll.u32 [#allocation11], 4
          %s333 = int_to_ptr.vmem [resolvable:$true] %s332
          %338 = dma.hbm_to_vmem [thread:$0]  %s5, 2048, %s333, [#allocation12], 64, 64, 4
        $region32: #{tpu_custom_call.1} parent=11 // pred_fallthru
          _
        // Predicated region
        $region33: #{tpu_custom_call.1} parent=11 // pred_check
          %p339 = pneg %p191
        $region34: #{tpu_custom_call.1} parent=11 // pred_check_branch
          %341 = sbr.rel (%p339) target = $region36
        $region35: #{tpu_custom_call.1} parent=11 // pred_region
          %s343 = ssub.s32 4096, 4096
          %344 = vsyncadd [#allocation12], %s343
          %s345 = sshll.u32 [#allocation13], 4
          %s346 = int_to_ptr.vmem [resolvable:$true] %s345
          %351 = dma.hbm_to_vmem [thread:$0]  %s6, 4096, %s346, [#allocation12], 128, 128, 8
        $region36: #{tpu_custom_call.1} parent=11 // pred_fallthru
          _
        // Predicated region
        $region37: #{tpu_custom_call.1} parent=11 // pred_check
          %p352 = pneg %p212
        $region38: #{tpu_custom_call.1} parent=11 // pred_check_branch
          %354 = sbr.rel (%p352) target = $region40
        $region39: #{tpu_custom_call.1} parent=11 // pred_region
          %s356 = ssub.s32 1024, 1024
          %357 = vsyncadd [#allocation15], %s356
          %s358 = sshll.u32 [#allocation14], 4
          %s359 = int_to_ptr.vmem [resolvable:$true] %s358
          %364 = dma.hbm_to_vmem [thread:$0]  %s7, 1024, %s359, [#allocation15], 128, 128, 8
        $region40: #{tpu_custom_call.1} parent=11 // pred_fallthru
          _
        // Predicated region
        $region41: #{tpu_custom_call.1} parent=11 // pred_check
          %p365 = pneg %p233
        $region42: #{tpu_custom_call.1} parent=11 // pred_check_branch
          %367 = sbr.rel (%p365) target = $region44
        $region43: #{tpu_custom_call.1} parent=11 // pred_region
          %s369 = ssub.s32 1024, 1024
          %370 = vsyncadd [#allocation15], %s369
          %s371 = sshll.u32 [#allocation16], 4
          %s372 = int_to_ptr.vmem [resolvable:$true] %s371
          %377 = dma.hbm_to_vmem [thread:$0]  %s8, 1024, %s372, [#allocation15], 128, 128, 8
        $region44: #{tpu_custom_call.1} parent=11 // pred_fallthru
          _
      $region12: #{tpu_custom_call.1} parent=5 // pred_fallthru
        _
      %p378 = scmp.lt.s32.totalorder %s25, 4
      // Predicated region
      $region45: #{tpu_custom_call.1} parent=5 // pred_check
        %p379 = pneg %p378
      $region46: #{tpu_custom_call.1} parent=5 // pred_check_branch
        %381 = sbr.rel (%p379) target = $region48
      $region47: #{tpu_custom_call.1} parent=5 // pred_region
        // Predicated region
        $region49: #{tpu_custom_call.1} parent=47 // pred_check
          %p382 = pneg %p59
        $region50: #{tpu_custom_call.1} parent=47 // pred_check_branch
          %384 = sbr.rel (%p382) target = $region52
        $region51: #{tpu_custom_call.1} parent=47 // pred_region
          %s385 = sand.u32 %s49, 1
          %s386 = scalar_lea.sflag [#allocation3], %s385
          %s387 = sand.u32 %s49, 1
          %s388 = smul.addr %s387, 4
          %s389 = scalar_lea.vmem [#allocation2], %s388
          %s390 = smul.u32 2, %s33
          %s392 = ssub.s32 64, 64
          %393 = vsyncadd %s386, %s392
          %s394 = smul.addr %s32, 4
          %s395 = sadd.s32 %s390, %s394
          %s396 = smul.addr %s395, 32
          %s397 = scalar_lea.hbm %s0, %s396
          %s399 = sshll.u32 %s389, 4
          %s400 = int_to_ptr.vmem [resolvable:$true] %s399
          %402 = dma.hbm_to_vmem [thread:$0]  %s397, 64, %s400, %s386
        $region52: #{tpu_custom_call.1} parent=47 // pred_fallthru
          _
      $region48: #{tpu_custom_call.1} parent=5 // pred_fallthru
        _
      %p403 = scmp.le.s32.totalorder 1, %s25
      %p404 = scmp.lt.s32.totalorder %s25, 5
      %p405 = pnand %p403, %p404
      %p406 = pneg %p405
      // Predicated region
      $region53: #{tpu_custom_call.1} parent=5 // pred_check
        _
      $region54: #{tpu_custom_call.1} parent=5 // pred_check_branch
        %408 = sbr.rel (%p405) target = $region56
      $region55: #{tpu_custom_call.1} parent=5 // pred_region
        %s409 = ssub.s32 %s25, 1
        %s410 = sand.u32 %s52, 1
        %s411 = scalar_lea.sflag [#allocation3], %s410
        %s412 = sand.u32 %s52, 1
        %s413 = smul.addr %s412, 4
        %s414 = scalar_lea.vmem [#allocation2], %s413
        // Predicated region
        $region57: #{tpu_custom_call.1} parent=55 // pred_check
          %p415 = pneg %p65
        $region58: #{tpu_custom_call.1} parent=55 // pred_check_branch
          %417 = sbr.rel (%p415) target = $region60
        $region59: #{tpu_custom_call.1} parent=55 // pred_region
          %418 = dma.done %s411, 64
        $region60: #{tpu_custom_call.1} parent=55 // pred_fallthru
          _
        // Predicated region
        $region61: #{tpu_custom_call.1} parent=55 // pred_check
          %p419 = pneg %p86
        $region62: #{tpu_custom_call.1} parent=55 // pred_check_branch
          %421 = sbr.rel (%p419) target = $region64
        $region63: #{tpu_custom_call.1} parent=55 // pred_region
          %422 = dma.done [#allocation6], 512
        $region64: #{tpu_custom_call.1} parent=55 // pred_fallthru
          _
        // Predicated region
        $region65: #{tpu_custom_call.1} parent=55 // pred_check
          %p423 = pneg %p107
        $region66: #{tpu_custom_call.1} parent=55 // pred_check_branch
          %425 = sbr.rel (%p423) target = $region68
        $region67: #{tpu_custom_call.1} parent=55 // pred_region
          %426 = dma.done [#allocation6], 1024
        $region68: #{tpu_custom_call.1} parent=55 // pred_fallthru
          _
        // Predicated region
        $region69: #{tpu_custom_call.1} parent=55 // pred_check
          %p427 = pneg %p128
        $region70: #{tpu_custom_call.1} parent=55 // pred_check_branch
          %429 = sbr.rel (%p427) target = $region72
        $region71: #{tpu_custom_call.1} parent=55 // pred_region
          %430 = dma.done [#allocation9], 1024
        $region72: #{tpu_custom_call.1} parent=55 // pred_fallthru
          _
        // Predicated region
        $region73: #{tpu_custom_call.1} parent=55 // pred_check
          %p431 = pneg %p149
        $region74: #{tpu_custom_call.1} parent=55 // pred_check_branch
          %433 = sbr.rel (%p431) target = $region76
        $region75: #{tpu_custom_call.1} parent=55 // pred_region
          %434 = dma.done [#allocation9], 2048
        $region76: #{tpu_custom_call.1} parent=55 // pred_fallthru
          _
        // Predicated region
        $region77: #{tpu_custom_call.1} parent=55 // pred_check
          %p435 = pneg %p170
        $region78: #{tpu_custom_call.1} parent=55 // pred_check_branch
          %437 = sbr.rel (%p435) target = $region80
        $region79: #{tpu_custom_call.1} parent=55 // pred_region
          %438 = dma.done [#allocation12], 2048
        $region80: #{tpu_custom_call.1} parent=55 // pred_fallthru
          _
        // Predicated region
        $region81: #{tpu_custom_call.1} parent=55 // pred_check
          %p439 = pneg %p191
        $region82: #{tpu_custom_call.1} parent=55 // pred_check_branch
          %441 = sbr.rel (%p439) target = $region84
        $region83: #{tpu_custom_call.1} parent=55 // pred_region
          %442 = dma.done [#allocation12], 4096
        $region84: #{tpu_custom_call.1} parent=55 // pred_fallthru
          _
        // Predicated region
        $region85: #{tpu_custom_call.1} parent=55 // pred_check
          %p443 = pneg %p212
        $region86: #{tpu_custom_call.1} parent=55 // pred_check_branch
          %445 = sbr.rel (%p443) target = $region88
        $region87: #{tpu_custom_call.1} parent=55 // pred_region
          %446 = dma.done [#allocation15], 1024
        $region88: #{tpu_custom_call.1} parent=55 // pred_fallthru
          _
        // Predicated region
        $region89: #{tpu_custom_call.1} parent=55 // pred_check
          %p447 = pneg %p233
        $region90: #{tpu_custom_call.1} parent=55 // pred_check_branch
          %449 = sbr.rel (%p447) target = $region92
        $region91: #{tpu_custom_call.1} parent=55 // pred_region
          %450 = dma.done [#allocation15], 1024
        $region92: #{tpu_custom_call.1} parent=55 // pred_fallthru
          _
        %s451 = sand.u32 %s52, 1
        %s452 = scalar_lea.sflag [#allocation3], %s451
        %s453 = sand.u32 %s52, 1
        %s454 = smul.addr %s453, 4
        %s455 = scalar_lea.vmem [#allocation2], %s454
        %p456 = pneg %p65
        %p457 = pneg %p62
        %p458 = pneg %p86
        %p459 = pneg %p83
        %p460 = pneg %p107
        %p461 = pneg %p104
        %p462 = pneg %p128
        %p463 = pneg %p125
        %p464 = pneg %p149
        %p465 = pneg %p146
        %p466 = pneg %p170
        %p467 = pneg %p167
        %p468 = pneg %p191
        %p469 = pneg %p188
        %p470 = pneg %p212
        %p471 = pneg %p209
        %p472 = pneg %p233
        %p473 = pneg %p230
        %p474 = pneg %p259
        %p475 = pneg %p256
        %s476 = sand.u32 %s246, 1
        %s477 = scalar_lea.sflag [#allocation4], %s476
        %s478 = sand.u32 %s246, 1
        %s479 = smul.addr %s478, 64
        %s480 = scalar_lea.vmem [#allocation17], %s479
        %s481 = smul.u32 2, %s35
        %v483 = vld [vmem:[%s414] sm:$0xf]
        %v484 = vld [vmem:[#allocation5] sm:$0xf]
        %v485 = vld [vmem:[#allocation5 + $0x4] sm:$0xf]
        %v486 = vld [vmem:[#allocation5 + $0x8] sm:$0xf]
        %v487 = vld [vmem:[#allocation5 + $0xc] sm:$0xf]
        %v488 = vld [vmem:[#allocation5 + $0x10] sm:$0xf]
        %v489 = vld [vmem:[#allocation5 + $0x14] sm:$0xf]
        %v490 = vld [vmem:[#allocation5 + $0x18] sm:$0xf]
        %v491 = vld [vmem:[#allocation5 + $0x1c] sm:$0xf]
        %v492 = vld [vmem:[#allocation7] sm:$0xff]
        %v493 = vld [vmem:[#allocation7 + $0x8] sm:$0xff]
        %v494 = vld [vmem:[#allocation7 + $0x10] sm:$0xff]
        %v495 = vld [vmem:[#allocation7 + $0x18] sm:$0xff]
        %v496 = vld [vmem:[#allocation7 + $0x20] sm:$0xff]
        %v497 = vld [vmem:[#allocation7 + $0x28] sm:$0xff]
        %v498 = vld [vmem:[#allocation7 + $0x30] sm:$0xff]
        %v499 = vld [vmem:[#allocation7 + $0x38] sm:$0xff]
        %501 = vset.pattern.permute.xlu0 0
        %502 = vperm.xlu0 %501, %v492
        %v503 = vpop.permute.xlu0 %502
        %506 = vset.pattern.permute.xlu0 0
        %507 = vperm.xlu0 %506, %v493
        %v508 = vpop.permute.xlu0 %507
        %511 = vset.pattern.permute.xlu0 0
        %512 = vperm.xlu0 %511, %v494
        %v513 = vpop.permute.xlu0 %512
        %516 = vset.pattern.permute.xlu0 0
        %517 = vperm.xlu0 %516, %v495
        %v518 = vpop.permute.xlu0 %517
        %521 = vset.pattern.permute.xlu0 0
        %522 = vperm.xlu0 %521, %v496
        %v523 = vpop.permute.xlu0 %522
        %526 = vset.pattern.permute.xlu0 0
        %527 = vperm.xlu0 %526, %v497
        %v528 = vpop.permute.xlu0 %527
        %531 = vset.pattern.permute.xlu0 0
        %532 = vperm.xlu0 %531, %v498
        %v533 = vpop.permute.xlu0 %532
        %536 = vset.pattern.permute.xlu0 0
        %537 = vperm.xlu0 %536, %v499
        %v538 = vpop.permute.xlu0 %537
        %v548 = vunpack.c.l.b16 %v484
        %v549 = vunpack.c.l.b16 %v485
        %v550 = vunpack.c.l.b16 %v486
        %v551 = vunpack.c.l.b16 %v487
        %v552 = vunpack.c.l.b16 %v488
        %v553 = vunpack.c.l.b16 %v489
        %v554 = vunpack.c.l.b16 %v490
        %v555 = vunpack.c.l.b16 %v491
        %v556 = vpack.c.b16 %v549, %v548
        %v557 = vpack.c.b16 %v551, %v550
        %v558 = vpack.c.b16 %v553, %v552
        %v559 = vpack.c.b16 %v555, %v554
        %v562 = vunpack.c.l.s4 1983009808
        %v563 = vunpack.c.0.s8 %v562
        %v564 = vlaneseq
        %v565 = vshrl.u32 %v564, 7
        %v566 = vsub.s32 %v563, %v565
        %v567 = vrot.slane %v483, %v566
        %v568 = vcombine.high %v567, %v567
        %vm569 = vcmask 23552
        %v571 = vsel %vm569, %v556, 0
        %v574 = vsel %vm569, %v557, 0
        %v577 = vsel %vm569, %v558, 0
        %v580 = vsel %vm569, %v559, 0
        %vm582 = vcmask 1040384
        %vm583 = vcmask 1041408
        %v584 = vsel %vm582, 4294967295, 65535
        %v585 = vsel %vm583, %v584, 0
        %v587 = vand.u32 %v567, %v585
        %v590 = vand.u32 %v568, %v585
        %592 = vmatprep.subr.bf16.mxu0 %v590
        %593 = vmatpush1.bf16.msra.mxu0 %v587
        %594 = vmatprep.subr.bf16.mxu0 0
        %595 = vmatpush1.bf16.msra.mxu0 0
        %596 = vmatprep.subr.bf16.mxu0 0
        %597 = vmatpush1.bf16.msra.mxu0 0
        %598 = vmatprep.subr.bf16.mxu0 0
        %599 = vmatpush1.bf16.msra.mxu0 0
        %600 = vmatprep.subr.bf16.mxu0 0
        %601 = vmatpush1.bf16.msra.mxu0 0
        %602 = vmatprep.subr.bf16.mxu0 0
        %603 = vmatpush1.bf16.msra.mxu0 0
        %604 = vmatprep.subr.bf16.mxu0 0
        %605 = vmatpush1.bf16.msra.mxu0 0
        %606 = vmatprep.subr.bf16.mxu0 0
        %607 = vmatpush1.bf16.msra.mxu0 0
        %608 = vmatprep.subr.bf16.mxu0 0
        %609 = vmatpush1.bf16.msra.mxu0 0
        %610 = vmatprep.subr.bf16.mxu0 0
        %611 = vmatpush1.bf16.msra.mxu0 0
        %612 = vmatprep.subr.bf16.mxu0 0
        %613 = vmatpush1.bf16.msra.mxu0 0
        %614 = vmatprep.subr.bf16.mxu0 0
        %615 = vmatpush1.bf16.msra.mxu0 0
        %616 = vmatprep.subr.bf16.mxu0 0
        %617 = vmatpush1.bf16.msra.mxu0 0
        %618 = vmatprep.subr.bf16.mxu0 0
        %619 = vmatpush1.bf16.msra.mxu0 0
        %620 = vmatprep.subr.bf16.mxu0 0
        %621 = vmatpush1.bf16.msra.mxu0 0
        %622 = vmatprep.subr.bf16.mxu0 0
        %623 = vmatpush1.bf16.msra.mxu0 0
        %624 = vmatprep.mubr.bf16.mxu0 0
        %625 = vmatmul.mubr.bf16.gmra.mrb[0].mxu0 %v571
        %v626 = vpop.f32.mrb[0].mxu0
        %v627 = vadd.f32 %v503, %v626
        %v628 = vpop.f32.mrb[0].mxu0
        %v629 = vadd.f32 %v503, %v628
        %v630 = vpop.f32.mrb[0].mxu0
        %v631 = vadd.f32 %v508, %v630
        %v632 = vpop.f32.mrb[0].mxu0
        %v633 = vadd.f32 %v508, %v632
        %634 = vmatprep.mubr.bf16.mxu0 0
        %635 = vmatmul.mubr.bf16.gmra.mrb[0].mxu0 %v574
        %v636 = vpop.f32.mrb[0].mxu0
        %v637 = vadd.f32 %v513, %v636
        %v638 = vpop.f32.mrb[0].mxu0
        %v639 = vadd.f32 %v513, %v638
        %v640 = vpop.f32.mrb[0].mxu0
        %v641 = vadd.f32 %v518, %v640
        %v642 = vpop.f32.mrb[0].mxu0
        %v643 = vadd.f32 %v518, %v642
        %644 = vmatprep.mubr.bf16.mxu0 0
        %645 = vmatmul.mubr.bf16.gmra.mrb[0].mxu0 %v577
        %v646 = vpop.f32.mrb[0].mxu0
        %v647 = vadd.f32 %v523, %v646
        %v648 = vpop.f32.mrb[0].mxu0
        %v649 = vadd.f32 %v523, %v648
        %v650 = vpop.f32.mrb[0].mxu0
        %v651 = vadd.f32 %v528, %v650
        %v652 = vpop.f32.mrb[0].mxu0
        %v653 = vadd.f32 %v528, %v652
        %654 = vmatprep.mubr.bf16.mxu0 0
        %655 = vmatmul.mubr.bf16.gmra.mrb[0].mxu0 %v580
        %v656 = vpop.f32.mrb[0].mxu0
        %v657 = vadd.f32 %v533, %v656
        %v658 = vpop.f32.mrb[0].mxu0
        %v659 = vadd.f32 %v533, %v658
        %v660 = vpop.f32.mrb[0].mxu0
        %v661 = vadd.f32 %v538, %v660
        %v662 = vpop.f32.mrb[0].mxu0
        %v663 = vadd.f32 %v538, %v662
        %664 = vdwg.mxu0
        %v665 = vmax.f32 %v627, 0.0
        %v666 = vmax.f32 %v629, 0.0
        %v667 = vmax.f32 %v631, 0.0
        %v668 = vmax.f32 %v633, 0.0
        %v669 = vmax.f32 %v637, 0.0
        %v670 = vmax.f32 %v639, 0.0
        %v671 = vmax.f32 %v641, 0.0
        %v672 = vmax.f32 %v643, 0.0
        %v673 = vmax.f32 %v647, 0.0
        %v674 = vmax.f32 %v649, 0.0
        %v675 = vmax.f32 %v651, 0.0
        %v676 = vmax.f32 %v653, 0.0
        %v677 = vmax.f32 %v657, 0.0
        %v678 = vmax.f32 %v659, 0.0
        %v679 = vmax.f32 %v661, 0.0
        %v680 = vmax.f32 %v663, 0.0
        %v681 = vpack.c.bf16 %v667, %v665
        %v682 = vpack.c.bf16 %v668, %v666
        %v683 = vpack.c.bf16 %v671, %v669
        %v684 = vpack.c.bf16 %v672, %v670
        %v685 = vpack.c.bf16 %v675, %v673
        %v686 = vpack.c.bf16 %v676, %v674
        %v687 = vpack.c.bf16 %v679, %v677
        %v688 = vpack.c.bf16 %v680, %v678
        %v689 = vld [vmem:[#allocation8] sm:$0xf]
        %v690 = vld [vmem:[#allocation8 + $0x4] sm:$0xf]
        %v691 = vld [vmem:[#allocation8 + $0x8] sm:$0xf]
        %v692 = vld [vmem:[#allocation8 + $0xc] sm:$0xf]
        %v693 = vld [vmem:[#allocation8 + $0x10] sm:$0xf]
        %v694 = vld [vmem:[#allocation8 + $0x14] sm:$0xf]
        %v695 = vld [vmem:[#allocation8 + $0x18] sm:$0xf]
        %v696 = vld [vmem:[#allocation8 + $0x1c] sm:$0xf]
        %v697 = vld [vmem:[#allocation8 + $0x20] sm:$0xf]
        %v698 = vld [vmem:[#allocation8 + $0x24] sm:$0xf]
        %v699 = vld [vmem:[#allocation8 + $0x28] sm:$0xf]
        %v700 = vld [vmem:[#allocation8 + $0x2c] sm:$0xf]
        %v701 = vld [vmem:[#allocation8 + $0x30] sm:$0xf]
        %v702 = vld [vmem:[#allocation8 + $0x34] sm:$0xf]
        %v703 = vld [vmem:[#allocation8 + $0x38] sm:$0xf]
        %v704 = vld [vmem:[#allocation8 + $0x3c] sm:$0xf]
        %v705 = vld [vmem:[#allocation10] sm:$0xff]
        %v706 = vld [vmem:[#allocation10 + $0x8] sm:$0xff]
        %v707 = vld [vmem:[#allocation10 + $0x10] sm:$0xff]
        %v708 = vld [vmem:[#allocation10 + $0x18] sm:$0xff]
        %v709 = vld [vmem:[#allocation10 + $0x20] sm:$0xff]
        %v710 = vld [vmem:[#allocation10 + $0x28] sm:$0xff]
        %v711 = vld [vmem:[#allocation10 + $0x30] sm:$0xff]
        %v712 = vld [vmem:[#allocation10 + $0x38] sm:$0xff]
        %v713 = vld [vmem:[#allocation10 + $0x40] sm:$0xff]
        %v714 = vld [vmem:[#allocation10 + $0x48] sm:$0xff]
        %v715 = vld [vmem:[#allocation10 + $0x50] sm:$0xff]
        %v716 = vld [vmem:[#allocation10 + $0x58] sm:$0xff]
        %v717 = vld [vmem:[#allocation10 + $0x60] sm:$0xff]
        %v718 = vld [vmem:[#allocation10 + $0x68] sm:$0xff]
        %v719 = vld [vmem:[#allocation10 + $0x70] sm:$0xff]
        %v720 = vld [vmem:[#allocation10 + $0x78] sm:$0xff]
        %722 = vset.pattern.permute.xlu0 0
        %723 = vperm.xlu0 %722, %v705
        %v724 = vpop.permute.xlu0 %723
        %727 = vset.pattern.permute.xlu0 0
        %728 = vperm.xlu0 %727, %v706
        %v729 = vpop.permute.xlu0 %728
        %732 = vset.pattern.permute.xlu0 0
        %733 = vperm.xlu0 %732, %v707
        %v734 = vpop.permute.xlu0 %733
        %737 = vset.pattern.permute.xlu0 0
        %738 = vperm.xlu0 %737, %v708
        %v739 = vpop.permute.xlu0 %738
        %742 = vset.pattern.permute.xlu0 0
        %743 = vperm.xlu0 %742, %v709
        %v744 = vpop.permute.xlu0 %743
        %747 = vset.pattern.permute.xlu0 0
        %748 = vperm.xlu0 %747, %v710
        %v749 = vpop.permute.xlu0 %748
        %752 = vset.pattern.permute.xlu0 0
        %753 = vperm.xlu0 %752, %v711
        %v754 = vpop.permute.xlu0 %753
        %757 = vset.pattern.permute.xlu0 0
        %758 = vperm.xlu0 %757, %v712
        %v759 = vpop.permute.xlu0 %758
        %762 = vset.pattern.permute.xlu0 0
        %763 = vperm.xlu0 %762, %v713
        %v764 = vpop.permute.xlu0 %763
        %767 = vset.pattern.permute.xlu0 0
        %768 = vperm.xlu0 %767, %v714
        %v769 = vpop.permute.xlu0 %768
        %772 = vset.pattern.permute.xlu0 0
        %773 = vperm.xlu0 %772, %v715
        %v774 = vpop.permute.xlu0 %773
        %777 = vset.pattern.permute.xlu0 0
        %778 = vperm.xlu0 %777, %v716
        %v779 = vpop.permute.xlu0 %778
        %782 = vset.pattern.permute.xlu0 0
        %783 = vperm.xlu0 %782, %v717
        %v784 = vpop.permute.xlu0 %783
        %787 = vset.pattern.permute.xlu0 0
        %788 = vperm.xlu0 %787, %v718
        %v789 = vpop.permute.xlu0 %788
        %792 = vset.pattern.permute.xlu0 0
        %793 = vperm.xlu0 %792, %v719
        %v794 = vpop.permute.xlu0 %793
        %797 = vset.pattern.permute.xlu0 0
        %798 = vperm.xlu0 %797, %v720
        %v799 = vpop.permute.xlu0 %798
        %v817 = vunpack.c.l.b16 %v689
        %v818 = vunpack.c.l.b16 %v690
        %v819 = vunpack.c.l.b16 %v691
        %v820 = vunpack.c.l.b16 %v692
        %v821 = vunpack.c.l.b16 %v693
        %v822 = vunpack.c.l.b16 %v694
        %v823 = vunpack.c.l.b16 %v695
        %v824 = vunpack.c.l.b16 %v696
        %v825 = vunpack.c.l.b16 %v697
        %v826 = vunpack.c.l.b16 %v698
        %v827 = vunpack.c.l.b16 %v699
        %v828 = vunpack.c.l.b16 %v700
        %v829 = vunpack.c.l.b16 %v701
        %v830 = vunpack.c.l.b16 %v702
        %v831 = vunpack.c.l.b16 %v703
        %v832 = vunpack.c.l.b16 %v704
        %v833 = vpack.c.b16 %v818, %v817
        %v834 = vpack.c.b16 %v820, %v819
        %v835 = vpack.c.b16 %v822, %v821
        %v836 = vpack.c.b16 %v824, %v823
        %v837 = vpack.c.b16 %v826, %v825
        %v838 = vpack.c.b16 %v828, %v827
        %v839 = vpack.c.b16 %v830, %v829
        %v840 = vpack.c.b16 %v832, %v831
        %vm841 = vcmask 523264
        %v843 = vsel %vm841, %v833, 0
        %v846 = vsel %vm841, %v834, 0
        %v849 = vsel %vm841, %v835, 0
        %v852 = vsel %vm841, %v836, 0
        %v855 = vsel %vm841, %v837, 0
        %v858 = vsel %vm841, %v838, 0
        %v861 = vsel %vm841, %v839, 0
        %v864 = vsel %vm841, %v840, 0
        %866 = vmatprep.subr.bf16.mxu0 %v682
        %867 = vmatpush1.bf16.msra.mxu0 %v681
        %868 = vmatprep.subr.bf16.mxu0 %v684
        %869 = vmatpush1.bf16.msra.mxu0 %v683
        %870 = vmatprep.subr.bf16.mxu0 %v686
        %871 = vmatpush1.bf16.msra.mxu0 %v685
        %872 = vmatprep.subr.bf16.mxu0 %v688
        %873 = vmatpush1.bf16.msra.mxu0 %v687
        %874 = vmatprep.subr.bf16.mxu0 0
        %875 = vmatpush1.bf16.msra.mxu0 0
        %876 = vmatprep.subr.bf16.mxu0 0
        %877 = vmatpush1.bf16.msra.mxu0 0
        %878 = vmatprep.subr.bf16.mxu0 0
        %879 = vmatpush1.bf16.msra.mxu0 0
        %880 = vmatprep.subr.bf16.mxu0 0
        %881 = vmatpush1.bf16.msra.mxu0 0
        %882 = vmatprep.subr.bf16.mxu0 0
        %883 = vmatpush1.bf16.msra.mxu0 0
        %884 = vmatprep.subr.bf16.mxu0 0
        %885 = vmatpush1.bf16.msra.mxu0 0
        %886 = vmatprep.subr.bf16.mxu0 0
        %887 = vmatpush1.bf16.msra.mxu0 0
        %888 = vmatprep.subr.bf16.mxu0 0
        %889 = vmatpush1.bf16.msra.mxu0 0
        %890 = vmatprep.subr.bf16.mxu0 0
        %891 = vmatpush1.bf16.msra.mxu0 0
        %892 = vmatprep.subr.bf16.mxu0 0
        %893 = vmatpush1.bf16.msra.mxu0 0
        %894 = vmatprep.subr.bf16.mxu0 0
        %895 = vmatpush1.bf16.msra.mxu0 0
        %896 = vmatprep.subr.bf16.mxu0 0
        %897 = vmatpush1.bf16.msra.mxu0 0
        %898 = vmatprep.mubr.bf16.mxu0 0
        %899 = vmatmul.mubr.bf16.gmra.mrb[0].mxu0 %v843
        %v900 = vpop.f32.mrb[0].mxu0
        %v901 = vadd.f32 %v724, %v900
        %v902 = vpop.f32.mrb[0].mxu0
        %v903 = vadd.f32 %v724, %v902
        %v904 = vpop.f32.mrb[0].mxu0
        %v905 = vadd.f32 %v729, %v904
        %v906 = vpop.f32.mrb[0].mxu0
        %v907 = vadd.f32 %v729, %v906
        %908 = vmatprep.mubr.bf16.mxu0 0
        %909 = vmatmul.mubr.bf16.gmra.mrb[0].mxu0 %v846
        %v910 = vpop.f32.mrb[0].mxu0
        %v911 = vadd.f32 %v734, %v910
        %v912 = vpop.f32.mrb[0].mxu0
        %v913 = vadd.f32 %v734, %v912
        %v914 = vpop.f32.mrb[0].mxu0
        %v915 = vadd.f32 %v739, %v914
        %v916 = vpop.f32.mrb[0].mxu0
        %v917 = vadd.f32 %v739, %v916
        %918 = vmatprep.mubr.bf16.mxu0 0
        %919 = vmatmul.mubr.bf16.gmra.mrb[0].mxu0 %v849
        %v920 = vpop.f32.mrb[0].mxu0
        %v921 = vadd.f32 %v744, %v920
        %v922 = vpop.f32.mrb[0].mxu0
        %v923 = vadd.f32 %v744, %v922
        %v924 = vpop.f32.mrb[0].mxu0
        %v925 = vadd.f32 %v749, %v924
        %v926 = vpop.f32.mrb[0].mxu0
        %v927 = vadd.f32 %v749, %v926
        %928 = vmatprep.mubr.bf16.mxu0 0
        %929 = vmatmul.mubr.bf16.gmra.mrb[0].mxu0 %v852
        %v930 = vpop.f32.mrb[0].mxu0
        %v931 = vadd.f32 %v754, %v930
        %v932 = vpop.f32.mrb[0].mxu0
        %v933 = vadd.f32 %v754, %v932
        %v934 = vpop.f32.mrb[0].mxu0
        %v935 = vadd.f32 %v759, %v934
        %v936 = vpop.f32.mrb[0].mxu0
        %v937 = vadd.f32 %v759, %v936
        %938 = vmatprep.mubr.bf16.mxu0 0
        %939 = vmatmul.mubr.bf16.gmra.mrb[0].mxu0 %v855
        %v940 = vpop.f32.mrb[0].mxu0
        %v941 = vadd.f32 %v764, %v940
        %v942 = vpop.f32.mrb[0].mxu0
        %v943 = vadd.f32 %v764, %v942
        %v944 = vpop.f32.mrb[0].mxu0
        %v945 = vadd.f32 %v769, %v944
        %v946 = vpop.f32.mrb[0].mxu0
        %v947 = vadd.f32 %v769, %v946
        %948 = vmatprep.mubr.bf16.mxu0 0
        %949 = vmatmul.mubr.bf16.gmra.mrb[0].mxu0 %v858
        %v950 = vpop.f32.mrb[0].mxu0
        %v951 = vadd.f32 %v774, %v950
        %v952 = vpop.f32.mrb[0].mxu0
        %v953 = vadd.f32 %v774, %v952
        %v954 = vpop.f32.mrb[0].mxu0
        %v955 = vadd.f32 %v779, %v954
        %v956 = vpop.f32.mrb[0].mxu0
        %v957 = vadd.f32 %v779, %v956
        %958 = vmatprep.mubr.bf16.mxu0 0
        %959 = vmatmul.mubr.bf16.gmra.mrb[0].mxu0 %v861
        %v960 = vpop.f32.mrb[0].mxu0
        %v961 = vadd.f32 %v784, %v960
        %v962 = vpop.f32.mrb[0].mxu0
        %v963 = vadd.f32 %v784, %v962
        %v964 = vpop.f32.mrb[0].mxu0
        %v965 = vadd.f32 %v789, %v964
        %v966 = vpop.f32.mrb[0].mxu0
        %v967 = vadd.f32 %v789, %v966
        %968 = vmatprep.mubr.bf16.mxu0 0
        %969 = vmatmul.mubr.bf16.gmra.mrb[0].mxu0 %v864
        %v970 = vpop.f32.mrb[0].mxu0
        %v971 = vadd.f32 %v794, %v970
        %v972 = vpop.f32.mrb[0].mxu0
        %v973 = vadd.f32 %v794, %v972
        %v974 = vpop.f32.mrb[0].mxu0
        %v975 = vadd.f32 %v799, %v974
        %v976 = vpop.f32.mrb[0].mxu0
        %v977 = vadd.f32 %v799, %v976
        %978 = vdwg.mxu0
        %v979 = vmax.f32 %v901, 0.0
        %v980 = vmax.f32 %v903, 0.0
        %v981 = vmax.f32 %v905, 0.0
        %v982 = vmax.f32 %v907, 0.0
        %v983 = vmax.f32 %v911, 0.0
        %v984 = vmax.f32 %v913, 0.0
        %v985 = vmax.f32 %v915, 0.0
        %v986 = vmax.f32 %v917, 0.0
        %v987 = vmax.f32 %v921, 0.0
        %v988 = vmax.f32 %v923, 0.0
        %v989 = vmax.f32 %v925, 0.0
        %v990 = vmax.f32 %v927, 0.0
        %v991 = vmax.f32 %v931, 0.0
        %v992 = vmax.f32 %v933, 0.0
        %v993 = vmax.f32 %v935, 0.0
        %v994 = vmax.f32 %v937, 0.0
        %v995 = vmax.f32 %v941, 0.0
        %v996 = vmax.f32 %v943, 0.0
        %v997 = vmax.f32 %v945, 0.0
        %v998 = vmax.f32 %v947, 0.0
        %v999 = vmax.f32 %v951, 0.0
        %v1000 = vmax.f32 %v953, 0.0
        %v1001 = vmax.f32 %v955, 0.0
        %v1002 = vmax.f32 %v957, 0.0
        %v1003 = vmax.f32 %v961, 0.0
        %v1004 = vmax.f32 %v963, 0.0
        %v1005 = vmax.f32 %v965, 0.0
        %v1006 = vmax.f32 %v967, 0.0
        %v1007 = vmax.f32 %v971, 0.0
        %v1008 = vmax.f32 %v973, 0.0
        %v1009 = vmax.f32 %v975, 0.0
        %v1010 = vmax.f32 %v977, 0.0
        %v1011 = vpack.c.bf16 %v981, %v979
        %v1012 = vpack.c.bf16 %v982, %v980
        %v1013 = vpack.c.bf16 %v985, %v983
        %v1014 = vpack.c.bf16 %v986, %v984
        %v1015 = vpack.c.bf16 %v989, %v987
        %v1016 = vpack.c.bf16 %v990, %v988
        %v1017 = vpack.c.bf16 %v993, %v991
        %v1018 = vpack.c.bf16 %v994, %v992
        %v1019 = vpack.c.bf16 %v997, %v995
        %v1020 = vpack.c.bf16 %v998, %v996
        %v1021 = vpack.c.bf16 %v1001, %v999
        %v1022 = vpack.c.bf16 %v1002, %v1000
        %v1023 = vpack.c.bf16 %v1005, %v1003
        %v1024 = vpack.c.bf16 %v1006, %v1004
        %v1025 = vpack.c.bf16 %v1009, %v1007
        %v1026 = vpack.c.bf16 %v1010, %v1008
        %v1027 = vld [vmem:[#allocation11] sm:$0xf]
        %v1028 = vld [vmem:[#allocation11 + $0x4] sm:$0xf]
        %v1029 = vld [vmem:[#allocation11 + $0x8] sm:$0xf]
        %v1030 = vld [vmem:[#allocation11 + $0xc] sm:$0xf]
        %v1031 = vld [vmem:[#allocation11 + $0x10] sm:$0xf]
        %v1032 = vld [vmem:[#allocation11 + $0x14] sm:$0xf]
        %v1033 = vld [vmem:[#allocation11 + $0x18] sm:$0xf]
        %v1034 = vld [vmem:[#allocation11 + $0x1c] sm:$0xf]
        %v1035 = vld [vmem:[#allocation11 + $0x20] sm:$0xf]
        %v1036 = vld [vmem:[#allocation11 + $0x24] sm:$0xf]
        %v1037 = vld [vmem:[#allocation11 + $0x28] sm:$0xf]
        %v1038 = vld [vmem:[#allocation11 + $0x2c] sm:$0xf]
        %v1039 = vld [vmem:[#allocation11 + $0x30] sm:$0xf]
        %v1040 = vld [vmem:[#allocation11 + $0x34] sm:$0xf]
        %v1041 = vld [vmem:[#allocation11 + $0x38] sm:$0xf]
        %v1042 = vld [vmem:[#allocation11 + $0x3c] sm:$0xf]
        %v1043 = vld [vmem:[#allocation11 + $0x40] sm:$0xf]
        %v1044 = vld [vmem:[#allocation11 + $0x44] sm:$0xf]
        %v1045 = vld [vmem:[#allocation11 + $0x48] sm:$0xf]
        %v1046 = vld [vmem:[#allocation11 + $0x4c] sm:$0xf]
        %v1047 = vld [vmem:[#allocation11 + $0x50] sm:$0xf]
        %v1048 = vld [vmem:[#allocation11 + $0x54] sm:$0xf]
        %v1049 = vld [vmem:[#allocation11 + $0x58] sm:$0xf]
        %v1050 = vld [vmem:[#allocation11 + $0x5c] sm:$0xf]
        %v1051 = vld [vmem:[#allocation11 + $0x60] sm:$0xf]
        %v1052 = vld [vmem:[#allocation11 + $0x64] sm:$0xf]
        %v1053 = vld [vmem:[#allocation11 + $0x68] sm:$0xf]
        %v1054 = vld [vmem:[#allocation11 + $0x6c] sm:$0xf]
        %v1055 = vld [vmem:[#allocation11 + $0x70] sm:$0xf]
        %v1056 = vld [vmem:[#allocation11 + $0x74] sm:$0xf]
        %v1057 = vld [vmem:[#allocation11 + $0x78] sm:$0xf]
        %v1058 = vld [vmem:[#allocation11 + $0x7c] sm:$0xf]
        %v1059 = vld [vmem:[#allocation13] sm:$0xff]
        %v1060 = vld [vmem:[#allocation13 + $0x8] sm:$0xff]
        %v1061 = vld [vmem:[#allocation13 + $0x10] sm:$0xff]
        %v1062 = vld [vmem:[#allocation13 + $0x18] sm:$0xff]
        %v1063 = vld [vmem:[#allocation13 + $0x20] sm:$0xff]
        %v1064 = vld [vmem:[#allocation13 + $0x28] sm:$0xff]
        %v1065 = vld [vmem:[#allocation13 + $0x30] sm:$0xff]
        %v1066 = vld [vmem:[#allocation13 + $0x38] sm:$0xff]
        %v1067 = vld [vmem:[#allocation13 + $0x40] sm:$0xff]
        %v1068 = vld [vmem:[#allocation13 + $0x48] sm:$0xff]
        %v1069 = vld [vmem:[#allocation13 + $0x50] sm:$0xff]
        %v1070 = vld [vmem:[#allocation13 + $0x58] sm:$0xff]
        %v1071 = vld [vmem:[#allocation13 + $0x60] sm:$0xff]
        %v1072 = vld [vmem:[#allocation13 + $0x68] sm:$0xff]
        %v1073 = vld [vmem:[#allocation13 + $0x70] sm:$0xff]
        %v1074 = vld [vmem:[#allocation13 + $0x78] sm:$0xff]
        %v1075 = vld [vmem:[#allocation13 + $0x80] sm:$0xff]
        %v1076 = vld [vmem:[#allocation13 + $0x88] sm:$0xff]
        %v1077 = vld [vmem:[#allocation13 + $0x90] sm:$0xff]
        %v1078 = vld [vmem:[#allocation13 + $0x98] sm:$0xff]
        %v1079 = vld [vmem:[#allocation13 + $0xa0] sm:$0xff]
        %v1080 = vld [vmem:[#allocation13 + $0xa8] sm:$0xff]
        %v1081 = vld [vmem:[#allocation13 + $0xb0] sm:$0xff]
        %v1082 = vld [vmem:[#allocation13 + $0xb8] sm:$0xff]
        %v1083 = vld [vmem:[#allocation13 + $0xc0] sm:$0xff]
        %v1084 = vld [vmem:[#allocation13 + $0xc8] sm:$0xff]
        %v1085 = vld [vmem:[#allocation13 + $0xd0] sm:$0xff]
        %v1086 = vld [vmem:[#allocation13 + $0xd8] sm:$0xff]
        %v1087 = vld [vmem:[#allocation13 + $0xe0] sm:$0xff]
        %v1088 = vld [vmem:[#allocation13 + $0xe8] sm:$0xff]
        %v1089 = vld [vmem:[#allocation13 + $0xf0] sm:$0xff]
        %v1090 = vld [vmem:[#allocation13 + $0xf8] sm:$0xff]
        %1092 = vset.pattern.permute.xlu0 0
        %1093 = vperm.xlu0 %1092, %v1059
        %v1094 = vpop.permute.xlu0 %1093
        %1097 = vset.pattern.permute.xlu0 0
        %1098 = vperm.xlu0 %1097, %v1060
        %v1099 = vpop.permute.xlu0 %1098
        %1102 = vset.pattern.permute.xlu0 0
        %1103 = vperm.xlu0 %1102, %v1061
        %v1104 = vpop.permute.xlu0 %1103
        %1107 = vset.pattern.permute.xlu0 0
        %1108 = vperm.xlu0 %1107, %v1062
        %v1109 = vpop.permute.xlu0 %1108
        %1112 = vset.pattern.permute.xlu0 0
        %1113 = vperm.xlu0 %1112, %v1063
        %v1114 = vpop.permute.xlu0 %1113
        %1117 = vset.pattern.permute.xlu0 0
        %1118 = vperm.xlu0 %1117, %v1064
        %v1119 = vpop.permute.xlu0 %1118
        %1122 = vset.pattern.permute.xlu0 0
        %1123 = vperm.xlu0 %1122, %v1065
        %v1124 = vpop.permute.xlu0 %1123
        %1127 = vset.pattern.permute.xlu0 0
        %1128 = vperm.xlu0 %1127, %v1066
        %v1129 = vpop.permute.xlu0 %1128
        %1132 = vset.pattern.permute.xlu0 0
        %1133 = vperm.xlu0 %1132, %v1067
        %v1134 = vpop.permute.xlu0 %1133
        %1137 = vset.pattern.permute.xlu0 0
        %1138 = vperm.xlu0 %1137, %v1068
        %v1139 = vpop.permute.xlu0 %1138
        %1142 = vset.pattern.permute.xlu0 0
        %1143 = vperm.xlu0 %1142, %v1069
        %v1144 = vpop.permute.xlu0 %1143
        %1147 = vset.pattern.permute.xlu0 0
        %1148 = vperm.xlu0 %1147, %v1070
        %v1149 = vpop.permute.xlu0 %1148
        %1152 = vset.pattern.permute.xlu0 0
        %1153 = vperm.xlu0 %1152, %v1071
        %v1154 = vpop.permute.xlu0 %1153
        %1157 = vset.pattern.permute.xlu0 0
        %1158 = vperm.xlu0 %1157, %v1072
        %v1159 = vpop.permute.xlu0 %1158
        %1162 = vset.pattern.permute.xlu0 0
        %1163 = vperm.xlu0 %1162, %v1073
        %v1164 = vpop.permute.xlu0 %1163
        %1167 = vset.pattern.permute.xlu0 0
        %1168 = vperm.xlu0 %1167, %v1074
        %v1169 = vpop.permute.xlu0 %1168
        %1172 = vset.pattern.permute.xlu0 0
        %1173 = vperm.xlu0 %1172, %v1075
        %v1174 = vpop.permute.xlu0 %1173
        %1177 = vset.pattern.permute.xlu0 0
        %1178 = vperm.xlu0 %1177, %v1076
        %v1179 = vpop.permute.xlu0 %1178
        %1182 = vset.pattern.permute.xlu0 0
        %1183 = vperm.xlu0 %1182, %v1077
        %v1184 = vpop.permute.xlu0 %1183
        %1187 = vset.pattern.permute.xlu0 0
        %1188 = vperm.xlu0 %1187, %v1078
        %v1189 = vpop.permute.xlu0 %1188
        %1192 = vset.pattern.permute.xlu0 0
        %1193 = vperm.xlu0 %1192, %v1079
        %v1194 = vpop.permute.xlu0 %1193
        %1197 = vset.pattern.permute.xlu0 0
        %1198 = vperm.xlu0 %1197, %v1080
        %v1199 = vpop.permute.xlu0 %1198
        %1202 = vset.pattern.permute.xlu0 0
        %1203 = vperm.xlu0 %1202, %v1081
        %v1204 = vpop.permute.xlu0 %1203
        %1207 = vset.pattern.permute.xlu0 0
        %1208 = vperm.xlu0 %1207, %v1082
        %v1209 = vpop.permute.xlu0 %1208
        %1212 = vset.pattern.permute.xlu0 0
        %1213 = vperm.xlu0 %1212, %v1083
        %v1214 = vpop.permute.xlu0 %1213
        %1217 = vset.pattern.permute.xlu0 0
        %1218 = vperm.xlu0 %1217, %v1084
        %v1219 = vpop.permute.xlu0 %1218
        %1222 = vset.pattern.permute.xlu0 0
        %1223 = vperm.xlu0 %1222, %v1085
        %v1224 = vpop.permute.xlu0 %1223
        %1227 = vset.pattern.permute.xlu0 0
        %1228 = vperm.xlu0 %1227, %v1086
        %v1229 = vpop.permute.xlu0 %1228
        %1232 = vset.pattern.permute.xlu0 0
        %1233 = vperm.xlu0 %1232, %v1087
        %v1234 = vpop.permute.xlu0 %1233
        %1237 = vset.pattern.permute.xlu0 0
        %1238 = vperm.xlu0 %1237, %v1088
        %v1239 = vpop.permute.xlu0 %1238
        %1242 = vset.pattern.permute.xlu0 0
        %1243 = vperm.xlu0 %1242, %v1089
        %v1244 = vpop.permute.xlu0 %1243
        %1247 = vset.pattern.permute.xlu0 0
        %1248 = vperm.xlu0 %1247, %v1090
        %v1249 = vpop.permute.xlu0 %1248
        %v1283 = vunpack.c.l.b16 %v1027
        %v1284 = vunpack.c.l.b16 %v1028
        %v1285 = vunpack.c.l.b16 %v1029
        %v1286 = vunpack.c.l.b16 %v1030
        %v1287 = vunpack.c.l.b16 %v1031
        %v1288 = vunpack.c.l.b16 %v1032
        %v1289 = vunpack.c.l.b16 %v1033
        %v1290 = vunpack.c.l.b16 %v1034
        %v1291 = vunpack.c.l.b16 %v1035
        %v1292 = vunpack.c.l.b16 %v1036
        %v1293 = vunpack.c.l.b16 %v1037
        %v1294 = vunpack.c.l.b16 %v1038
        %v1295 = vunpack.c.l.b16 %v1039
        %v1296 = vunpack.c.l.b16 %v1040
        %v1297 = vunpack.c.l.b16 %v1041
        %v1298 = vunpack.c.l.b16 %v1042
        %v1299 = vunpack.c.l.b16 %v1043
        %v1300 = vunpack.c.l.b16 %v1044
        %v1301 = vunpack.c.l.b16 %v1045
        %v1302 = vunpack.c.l.b16 %v1046
        %v1303 = vunpack.c.l.b16 %v1047
        %v1304 = vunpack.c.l.b16 %v1048
        %v1305 = vunpack.c.l.b16 %v1049
        %v1306 = vunpack.c.l.b16 %v1050
        %v1307 = vunpack.c.l.b16 %v1051
        %v1308 = vunpack.c.l.b16 %v1052
        %v1309 = vunpack.c.l.b16 %v1053
        %v1310 = vunpack.c.l.b16 %v1054
        %v1311 = vunpack.c.l.b16 %v1055
        %v1312 = vunpack.c.l.b16 %v1056
        %v1313 = vunpack.c.l.b16 %v1057
        %v1314 = vunpack.c.l.b16 %v1058
        %v1315 = vpack.c.b16 %v1284, %v1283
        %v1316 = vpack.c.b16 %v1286, %v1285
        %v1317 = vpack.c.b16 %v1288, %v1287
        %v1318 = vpack.c.b16 %v1290, %v1289
        %v1319 = vpack.c.b16 %v1292, %v1291
        %v1320 = vpack.c.b16 %v1294, %v1293
        %v1321 = vpack.c.b16 %v1296, %v1295
        %v1322 = vpack.c.b16 %v1298, %v1297
        %v1323 = vpack.c.b16 %v1300, %v1299
        %v1324 = vpack.c.b16 %v1302, %v1301
        %v1325 = vpack.c.b16 %v1304, %v1303
        %v1326 = vpack.c.b16 %v1306, %v1305
        %v1327 = vpack.c.b16 %v1308, %v1307
        %v1328 = vpack.c.b16 %v1310, %v1309
        %v1329 = vpack.c.b16 %v1312, %v1311
        %v1330 = vpack.c.b16 %v1314, %v1313
        %1347 = vmatprep.subr.bf16.mxu0 %v1012
        %1348 = vmatpush1.bf16.msra.mxu0 %v1011
        %1349 = vmatprep.subr.bf16.mxu0 %v1014
        %1350 = vmatpush1.bf16.msra.mxu0 %v1013
        %1351 = vmatprep.subr.bf16.mxu0 %v1016
        %1352 = vmatpush1.bf16.msra.mxu0 %v1015
        %1353 = vmatprep.subr.bf16.mxu0 %v1018
        %1354 = vmatpush1.bf16.msra.mxu0 %v1017
        %1355 = vmatprep.subr.bf16.mxu0 %v1020
        %1356 = vmatpush1.bf16.msra.mxu0 %v1019
        %1357 = vmatprep.subr.bf16.mxu0 %v1022
        %1358 = vmatpush1.bf16.msra.mxu0 %v1021
        %1359 = vmatprep.subr.bf16.mxu0 %v1024
        %1360 = vmatpush1.bf16.msra.mxu0 %v1023
        %1361 = vmatprep.subr.bf16.mxu0 %v1026
        %1362 = vmatpush1.bf16.msra.mxu0 %v1025
        %1363 = vmatprep.subr.bf16.mxu0 0
        %1364 = vmatpush1.bf16.msra.mxu0 0
        %1365 = vmatprep.subr.bf16.mxu0 0
        %1366 = vmatpush1.bf16.msra.mxu0 0
        %1367 = vmatprep.subr.bf16.mxu0 0
        %1368 = vmatpush1.bf16.msra.mxu0 0
        %1369 = vmatprep.subr.bf16.mxu0 0
        %1370 = vmatpush1.bf16.msra.mxu0 0
        %1371 = vmatprep.subr.bf16.mxu0 0
        %1372 = vmatpush1.bf16.msra.mxu0 0
        %1373 = vmatprep.subr.bf16.mxu0 0
        %1374 = vmatpush1.bf16.msra.mxu0 0
        %1375 = vmatprep.subr.bf16.mxu0 0
        %1376 = vmatpush1.bf16.msra.mxu0 0
        %1377 = vmatprep.subr.bf16.mxu0 0
        %1378 = vmatpush1.bf16.msra.mxu0 0
        %1379 = vmatprep.mubr.bf16.mxu0 0
        %1380 = vmatmul.mubr.bf16.gmra.mrb[0].mxu0 %v1315
        %v1381 = vpop.f32.mrb[0].mxu0
        %v1382 = vadd.f32 %v1094, %v1381
        %v1383 = vpop.f32.mrb[0].mxu0
        %v1384 = vadd.f32 %v1094, %v1383
        %v1385 = vpop.f32.mrb[0].mxu0
        %v1386 = vadd.f32 %v1099, %v1385
        %v1387 = vpop.f32.mrb[0].mxu0
        %v1388 = vadd.f32 %v1099, %v1387
        %1389 = vmatprep.mubr.bf16.mxu0 0
        %1390 = vmatmul.mubr.bf16.gmra.mrb[0].mxu0 %v1316
        %v1391 = vpop.f32.mrb[0].mxu0
        %v1392 = vadd.f32 %v1104, %v1391
        %v1393 = vpop.f32.mrb[0].mxu0
        %v1394 = vadd.f32 %v1104, %v1393
        %v1395 = vpop.f32.mrb[0].mxu0
        %v1396 = vadd.f32 %v1109, %v1395
        %v1397 = vpop.f32.mrb[0].mxu0
        %v1398 = vadd.f32 %v1109, %v1397
        %1399 = vmatprep.mubr.bf16.mxu0 0
        %1400 = vmatmul.mubr.bf16.gmra.mrb[0].mxu0 %v1317
        %v1401 = vpop.f32.mrb[0].mxu0
        %v1402 = vadd.f32 %v1114, %v1401
        %v1403 = vpop.f32.mrb[0].mxu0
        %v1404 = vadd.f32 %v1114, %v1403
        %v1405 = vpop.f32.mrb[0].mxu0
        %v1406 = vadd.f32 %v1119, %v1405
        %v1407 = vpop.f32.mrb[0].mxu0
        %v1408 = vadd.f32 %v1119, %v1407
        %1409 = vmatprep.mubr.bf16.mxu0 0
        %1410 = vmatmul.mubr.bf16.gmra.mrb[0].mxu0 %v1318
        %v1411 = vpop.f32.mrb[0].mxu0
        %v1412 = vadd.f32 %v1124, %v1411
        %v1413 = vpop.f32.mrb[0].mxu0
        %v1414 = vadd.f32 %v1124, %v1413
        %v1415 = vpop.f32.mrb[0].mxu0
        %v1416 = vadd.f32 %v1129, %v1415
        %v1417 = vpop.f32.mrb[0].mxu0
        %v1418 = vadd.f32 %v1129, %v1417
        %1419 = vmatprep.mubr.bf16.mxu0 0
        %1420 = vmatmul.mubr.bf16.gmra.mrb[0].mxu0 %v1319
        %v1421 = vpop.f32.mrb[0].mxu0
        %v1422 = vadd.f32 %v1134, %v1421
        %v1423 = vpop.f32.mrb[0].mxu0
        %v1424 = vadd.f32 %v1134, %v1423
        %v1425 = vpop.f32.mrb[0].mxu0
        %v1426 = vadd.f32 %v1139, %v1425
        %v1427 = vpop.f32.mrb[0].mxu0
        %v1428 = vadd.f32 %v1139, %v1427
        %1429 = vmatprep.mubr.bf16.mxu0 0
        %1430 = vmatmul.mubr.bf16.gmra.mrb[0].mxu0 %v1320
        %v1431 = vpop.f32.mrb[0].mxu0
        %v1432 = vadd.f32 %v1144, %v1431
        %v1433 = vpop.f32.mrb[0].mxu0
        %v1434 = vadd.f32 %v1144, %v1433
        %v1435 = vpop.f32.mrb[0].mxu0
        %v1436 = vadd.f32 %v1149, %v1435
        %v1437 = vpop.f32.mrb[0].mxu0
        %v1438 = vadd.f32 %v1149, %v1437
        %1439 = vmatprep.mubr.bf16.mxu0 0
        %1440 = vmatmul.mubr.bf16.gmra.mrb[0].mxu0 %v1321
        %v1441 = vpop.f32.mrb[0].mxu0
        %v1442 = vadd.f32 %v1154, %v1441
        %v1443 = vpop.f32.mrb[0].mxu0
        %v1444 = vadd.f32 %v1154, %v1443
        %v1445 = vpop.f32.mrb[0].mxu0
        %v1446 = vadd.f32 %v1159, %v1445
        %v1447 = vpop.f32.mrb[0].mxu0
        %v1448 = vadd.f32 %v1159, %v1447
        %1449 = vmatprep.mubr.bf16.mxu0 0
        %1450 = vmatmul.mubr.bf16.gmra.mrb[0].mxu0 %v1322
        %v1451 = vpop.f32.mrb[0].mxu0
        %v1452 = vadd.f32 %v1164, %v1451
        %v1453 = vpop.f32.mrb[0].mxu0
        %v1454 = vadd.f32 %v1164, %v1453
        %v1455 = vpop.f32.mrb[0].mxu0
        %v1456 = vadd.f32 %v1169, %v1455
        %v1457 = vpop.f32.mrb[0].mxu0
        %v1458 = vadd.f32 %v1169, %v1457
        %1459 = vmatprep.mubr.bf16.mxu0 0
        %1460 = vmatmul.mubr.bf16.gmra.mrb[0].mxu0 %v1323
        %v1461 = vpop.f32.mrb[0].mxu0
        %v1462 = vadd.f32 %v1174, %v1461
        %v1463 = vpop.f32.mrb[0].mxu0
        %v1464 = vadd.f32 %v1174, %v1463
        %v1465 = vpop.f32.mrb[0].mxu0
        %v1466 = vadd.f32 %v1179, %v1465
        %v1467 = vpop.f32.mrb[0].mxu0
        %v1468 = vadd.f32 %v1179, %v1467
        %1469 = vmatprep.mubr.bf16.mxu0 0
        %1470 = vmatmul.mubr.bf16.gmra.mrb[0].mxu0 %v1324
        %v1471 = vpop.f32.mrb[0].mxu0
        %v1472 = vadd.f32 %v1184, %v1471
        %v1473 = vpop.f32.mrb[0].mxu0
        %v1474 = vadd.f32 %v1184, %v1473
        %v1475 = vpop.f32.mrb[0].mxu0
        %v1476 = vadd.f32 %v1189, %v1475
        %v1477 = vpop.f32.mrb[0].mxu0
        %v1478 = vadd.f32 %v1189, %v1477
        %1479 = vmatprep.mubr.bf16.mxu0 0
        %1480 = vmatmul.mubr.bf16.gmra.mrb[0].mxu0 %v1325
        %v1481 = vpop.f32.mrb[0].mxu0
        %v1482 = vadd.f32 %v1194, %v1481
        %v1483 = vpop.f32.mrb[0].mxu0
        %v1484 = vadd.f32 %v1194, %v1483
        %v1485 = vpop.f32.mrb[0].mxu0
        %v1486 = vadd.f32 %v1199, %v1485
        %v1487 = vpop.f32.mrb[0].mxu0
        %v1488 = vadd.f32 %v1199, %v1487
        %1489 = vmatprep.mubr.bf16.mxu0 0
        %1490 = vmatmul.mubr.bf16.gmra.mrb[0].mxu0 %v1326
        %v1491 = vpop.f32.mrb[0].mxu0
        %v1492 = vadd.f32 %v1204, %v1491
        %v1493 = vpop.f32.mrb[0].mxu0
        %v1494 = vadd.f32 %v1204, %v1493
        %v1495 = vpop.f32.mrb[0].mxu0
        %v1496 = vadd.f32 %v1209, %v1495
        %v1497 = vpop.f32.mrb[0].mxu0
        %v1498 = vadd.f32 %v1209, %v1497
        %1499 = vmatprep.mubr.bf16.mxu0 0
        %1500 = vmatmul.mubr.bf16.gmra.mrb[0].mxu0 %v1327
        %v1501 = vpop.f32.mrb[0].mxu0
        %v1502 = vadd.f32 %v1214, %v1501
        %v1503 = vpop.f32.mrb[0].mxu0
        %v1504 = vadd.f32 %v1214, %v1503
        %v1505 = vpop.f32.mrb[0].mxu0
        %v1506 = vadd.f32 %v1219, %v1505
        %v1507 = vpop.f32.mrb[0].mxu0
        %v1508 = vadd.f32 %v1219, %v1507
        %1509 = vmatprep.mubr.bf16.mxu0 0
        %1510 = vmatmul.mubr.bf16.gmra.mrb[0].mxu0 %v1328
        %v1511 = vpop.f32.mrb[0].mxu0
        %v1512 = vadd.f32 %v1224, %v1511
        %v1513 = vpop.f32.mrb[0].mxu0
        %v1514 = vadd.f32 %v1224, %v1513
        %v1515 = vpop.f32.mrb[0].mxu0
        %v1516 = vadd.f32 %v1229, %v1515
        %v1517 = vpop.f32.mrb[0].mxu0
        %v1518 = vadd.f32 %v1229, %v1517
        %1519 = vmatprep.mubr.bf16.mxu0 0
        %1520 = vmatmul.mubr.bf16.gmra.mrb[0].mxu0 %v1329
        %v1521 = vpop.f32.mrb[0].mxu0
        %v1522 = vadd.f32 %v1234, %v1521
        %v1523 = vpop.f32.mrb[0].mxu0
        %v1524 = vadd.f32 %v1234, %v1523
        %v1525 = vpop.f32.mrb[0].mxu0
        %v1526 = vadd.f32 %v1239, %v1525
        %v1527 = vpop.f32.mrb[0].mxu0
        %v1528 = vadd.f32 %v1239, %v1527
        %1529 = vmatprep.mubr.bf16.mxu0 0
        %1530 = vmatmul.mubr.bf16.gmra.mrb[0].mxu0 %v1330
        %v1531 = vpop.f32.mrb[0].mxu0
        %v1532 = vadd.f32 %v1244, %v1531
        %v1533 = vpop.f32.mrb[0].mxu0
        %v1534 = vadd.f32 %v1244, %v1533
        %v1535 = vpop.f32.mrb[0].mxu0
        %v1536 = vadd.f32 %v1249, %v1535
        %v1537 = vpop.f32.mrb[0].mxu0
        %v1538 = vadd.f32 %v1249, %v1537
        %1539 = vdwg.mxu0
        %v1540 = vmax.f32 %v1382, 0.0
        %v1541 = vmax.f32 %v1384, 0.0
        %v1542 = vmax.f32 %v1386, 0.0
        %v1543 = vmax.f32 %v1388, 0.0
        %v1544 = vmax.f32 %v1392, 0.0
        %v1545 = vmax.f32 %v1394, 0.0
        %v1546 = vmax.f32 %v1396, 0.0
        %v1547 = vmax.f32 %v1398, 0.0
        %v1548 = vmax.f32 %v1402, 0.0
        %v1549 = vmax.f32 %v1404, 0.0
        %v1550 = vmax.f32 %v1406, 0.0
        %v1551 = vmax.f32 %v1408, 0.0
        %v1552 = vmax.f32 %v1412, 0.0
        %v1553 = vmax.f32 %v1414, 0.0
        %v1554 = vmax.f32 %v1416, 0.0
        %v1555 = vmax.f32 %v1418, 0.0
        %v1556 = vmax.f32 %v1422, 0.0
        %v1557 = vmax.f32 %v1424, 0.0
        %v1558 = vmax.f32 %v1426, 0.0
        %v1559 = vmax.f32 %v1428, 0.0
        %v1560 = vmax.f32 %v1432, 0.0
        %v1561 = vmax.f32 %v1434, 0.0
        %v1562 = vmax.f32 %v1436, 0.0
        %v1563 = vmax.f32 %v1438, 0.0
        %v1564 = vmax.f32 %v1442, 0.0
        %v1565 = vmax.f32 %v1444, 0.0
        %v1566 = vmax.f32 %v1446, 0.0
        %v1567 = vmax.f32 %v1448, 0.0
        %v1568 = vmax.f32 %v1452, 0.0
        %v1569 = vmax.f32 %v1454, 0.0
        %v1570 = vmax.f32 %v1456, 0.0
        %v1571 = vmax.f32 %v1458, 0.0
        %v1572 = vmax.f32 %v1462, 0.0
        %v1573 = vmax.f32 %v1464, 0.0
        %v1574 = vmax.f32 %v1466, 0.0
        %v1575 = vmax.f32 %v1468, 0.0
        %v1576 = vmax.f32 %v1472, 0.0
        %v1577 = vmax.f32 %v1474, 0.0
        %v1578 = vmax.f32 %v1476, 0.0
        %v1579 = vmax.f32 %v1478, 0.0
        %v1580 = vmax.f32 %v1482, 0.0
        %v1581 = vmax.f32 %v1484, 0.0
        %v1582 = vmax.f32 %v1486, 0.0
        %v1583 = vmax.f32 %v1488, 0.0
        %v1584 = vmax.f32 %v1492, 0.0
        %v1585 = vmax.f32 %v1494, 0.0
        %v1586 = vmax.f32 %v1496, 0.0
        %v1587 = vmax.f32 %v1498, 0.0
        %v1588 = vmax.f32 %v1502, 0.0
        %v1589 = vmax.f32 %v1504, 0.0
        %v1590 = vmax.f32 %v1506, 0.0
        %v1591 = vmax.f32 %v1508, 0.0
        %v1592 = vmax.f32 %v1512, 0.0
        %v1593 = vmax.f32 %v1514, 0.0
        %v1594 = vmax.f32 %v1516, 0.0
        %v1595 = vmax.f32 %v1518, 0.0
        %v1596 = vmax.f32 %v1522, 0.0
        %v1597 = vmax.f32 %v1524, 0.0
        %v1598 = vmax.f32 %v1526, 0.0
        %v1599 = vmax.f32 %v1528, 0.0
        %v1600 = vmax.f32 %v1532, 0.0
        %v1601 = vmax.f32 %v1534, 0.0
        %v1602 = vmax.f32 %v1536, 0.0
        %v1603 = vmax.f32 %v1538, 0.0
        %v1604 = vpack.c.bf16 %v1542, %v1540
        %v1605 = vpack.c.bf16 %v1543, %v1541
        %v1606 = vpack.c.bf16 %v1546, %v1544
        %v1607 = vpack.c.bf16 %v1547, %v1545
        %v1608 = vpack.c.bf16 %v1550, %v1548
        %v1609 = vpack.c.bf16 %v1551, %v1549
        %v1610 = vpack.c.bf16 %v1554, %v1552
        %v1611 = vpack.c.bf16 %v1555, %v1553
        %v1612 = vpack.c.bf16 %v1558, %v1556
        %v1613 = vpack.c.bf16 %v1559, %v1557
        %v1614 = vpack.c.bf16 %v1562, %v1560
        %v1615 = vpack.c.bf16 %v1563, %v1561
        %v1616 = vpack.c.bf16 %v1566, %v1564
        %v1617 = vpack.c.bf16 %v1567, %v1565
        %v1618 = vpack.c.bf16 %v1570, %v1568
        %v1619 = vpack.c.bf16 %v1571, %v1569
        %v1620 = vpack.c.bf16 %v1574, %v1572
        %v1621 = vpack.c.bf16 %v1575, %v1573
        %v1622 = vpack.c.bf16 %v1578, %v1576
        %v1623 = vpack.c.bf16 %v1579, %v1577
        %v1624 = vpack.c.bf16 %v1582, %v1580
        %v1625 = vpack.c.bf16 %v1583, %v1581
        %v1626 = vpack.c.bf16 %v1586, %v1584
        %v1627 = vpack.c.bf16 %v1587, %v1585
        %v1628 = vpack.c.bf16 %v1590, %v1588
        %v1629 = vpack.c.bf16 %v1591, %v1589
        %v1630 = vpack.c.bf16 %v1594, %v1592
        %v1631 = vpack.c.bf16 %v1595, %v1593
        %v1632 = vpack.c.bf16 %v1598, %v1596
        %v1633 = vpack.c.bf16 %v1599, %v1597
        %v1634 = vpack.c.bf16 %v1602, %v1600
        %v1635 = vpack.c.bf16 %v1603, %v1601
        %v1636 = vld [vmem:[#allocation14] sm:$0xff]
        %v1637 = vld [vmem:[#allocation14 + $0x8] sm:$0xff]
        %v1638 = vld [vmem:[#allocation14 + $0x10] sm:$0xff]
        %v1639 = vld [vmem:[#allocation14 + $0x18] sm:$0xff]
        %v1640 = vld [vmem:[#allocation14 + $0x20] sm:$0xff]
        %v1641 = vld [vmem:[#allocation14 + $0x28] sm:$0xff]
        %v1642 = vld [vmem:[#allocation14 + $0x30] sm:$0xff]
        %v1643 = vld [vmem:[#allocation14 + $0x38] sm:$0xff]
        %v1644 = vld [vmem:[#allocation16] sm:$0xff]
        %v1645 = vld [vmem:[#allocation16 + $0x8] sm:$0xff]
        %v1646 = vld [vmem:[#allocation16 + $0x10] sm:$0xff]
        %v1647 = vld [vmem:[#allocation16 + $0x18] sm:$0xff]
        %v1648 = vld [vmem:[#allocation16 + $0x20] sm:$0xff]
        %v1649 = vld [vmem:[#allocation16 + $0x28] sm:$0xff]
        %v1650 = vld [vmem:[#allocation16 + $0x30] sm:$0xff]
        %v1651 = vld [vmem:[#allocation16 + $0x38] sm:$0xff]
        %1653 = vset.pattern.permute.xlu0 0
        %1654 = vperm.xlu0 %1653, %v1644
        %v1655 = vpop.permute.xlu0 %1654
        %1658 = vset.pattern.permute.xlu0 0
        %1659 = vperm.xlu0 %1658, %v1645
        %v1660 = vpop.permute.xlu0 %1659
        %1663 = vset.pattern.permute.xlu0 0
        %1664 = vperm.xlu0 %1663, %v1646
        %v1665 = vpop.permute.xlu0 %1664
        %1668 = vset.pattern.permute.xlu0 0
        %1669 = vperm.xlu0 %1668, %v1647
        %v1670 = vpop.permute.xlu0 %1669
        %1673 = vset.pattern.permute.xlu0 0
        %1674 = vperm.xlu0 %1673, %v1648
        %v1675 = vpop.permute.xlu0 %1674
        %1678 = vset.pattern.permute.xlu0 0
        %1679 = vperm.xlu0 %1678, %v1649
        %v1680 = vpop.permute.xlu0 %1679
        %1683 = vset.pattern.permute.xlu0 0
        %1684 = vperm.xlu0 %1683, %v1650
        %v1685 = vpop.permute.xlu0 %1684
        %1688 = vset.pattern.permute.xlu0 0
        %1689 = vperm.xlu0 %1688, %v1651
        %v1690 = vpop.permute.xlu0 %1689
        %v1700 = vunpack.c.l.b16 %v1636
        %v1701 = vunpack.c.h.b16 %v1636
        %v1702 = vunpack.c.l.b16 %v1637
        %v1703 = vunpack.c.h.b16 %v1637
        %v1704 = vunpack.c.l.b16 %v1638
        %v1705 = vunpack.c.h.b16 %v1638
        %v1706 = vunpack.c.l.b16 %v1639
        %v1707 = vunpack.c.h.b16 %v1639
        %v1708 = vunpack.c.l.b16 %v1640
        %v1709 = vunpack.c.h.b16 %v1640
        %v1710 = vunpack.c.l.b16 %v1641
        %v1711 = vunpack.c.h.b16 %v1641
        %v1712 = vunpack.c.l.b16 %v1642
        %v1713 = vunpack.c.h.b16 %v1642
        %v1714 = vunpack.c.l.b16 %v1643
        %v1715 = vunpack.c.h.b16 %v1643
        %v1716 = vpack.c.b16 %v1702, %v1700
        %v1717 = vpack.c.b16 %v1703, %v1701
        %v1718 = vpack.c.b16 %v1706, %v1704
        %v1719 = vpack.c.b16 %v1707, %v1705
        %v1720 = vpack.c.b16 %v1710, %v1708
        %v1721 = vpack.c.b16 %v1711, %v1709
        %v1722 = vpack.c.b16 %v1714, %v1712
        %v1723 = vpack.c.b16 %v1715, %v1713
        %1732 = vmatprep.subr.bf16.mxu0 %v1605
        %1733 = vmatpush1.bf16.msra.mxu0 %v1604
        %1734 = vmatprep.subr.bf16.mxu0 %v1607
        %1735 = vmatpush1.bf16.msra.mxu0 %v1606
        %1736 = vmatprep.subr.bf16.mxu0 %v1609
        %1737 = vmatpush1.bf16.msra.mxu0 %v1608
        %1738 = vmatprep.subr.bf16.mxu0 %v1611
        %1739 = vmatpush1.bf16.msra.mxu0 %v1610
        %1740 = vmatprep.subr.bf16.mxu0 %v1613
        %1741 = vmatpush1.bf16.msra.mxu0 %v1612
        %1742 = vmatprep.subr.bf16.mxu0 %v1615
        %1743 = vmatpush1.bf16.msra.mxu0 %v1614
        %1744 = vmatprep.subr.bf16.mxu0 %v1617
        %1745 = vmatpush1.bf16.msra.mxu0 %v1616
        %1746 = vmatprep.subr.bf16.mxu0 %v1619
        %1747 = vmatpush1.bf16.msra.mxu0 %v1618
        %1748 = vmatprep.subr.bf16.mxu0 %v1621
        %1749 = vmatpush1.bf16.msra.mxu0 %v1620
        %1750 = vmatprep.subr.bf16.mxu0 %v1623
        %1751 = vmatpush1.bf16.msra.mxu0 %v1622
        %1752 = vmatprep.subr.bf16.mxu0 %v1625
        %1753 = vmatpush1.bf16.msra.mxu0 %v1624
        %1754 = vmatprep.subr.bf16.mxu0 %v1627
        %1755 = vmatpush1.bf16.msra.mxu0 %v1626
        %1756 = vmatprep.subr.bf16.mxu0 %v1629
        %1757 = vmatpush1.bf16.msra.mxu0 %v1628
        %1758 = vmatprep.subr.bf16.mxu0 %v1631
        %1759 = vmatpush1.bf16.msra.mxu0 %v1630
        %1760 = vmatprep.subr.bf16.mxu0 %v1633
        %1761 = vmatpush1.bf16.msra.mxu0 %v1632
        %1762 = vmatprep.subr.bf16.mxu0 %v1635
        %1763 = vmatpush1.bf16.msra.mxu0 %v1634
        %1764 = vmatprep.mubr.bf16.mxu0 %v1717
        %1765 = vmatmul.mubr.bf16.gmra.mrb[0].mxu0 %v1716
        %v1766 = vpop.f32.mrb[0].mxu0
        %v1767 = vadd.f32 %v1655, %v1766
        %v1768 = vpop.f32.mrb[0].mxu0
        %v1769 = vadd.f32 %v1655, %v1768
        %v1770 = vpop.f32.mrb[0].mxu0
        %v1771 = vadd.f32 %v1660, %v1770
        %v1772 = vpop.f32.mrb[0].mxu0
        %v1773 = vadd.f32 %v1660, %v1772
        %1774 = vmatprep.mubr.bf16.mxu0 %v1719
        %1775 = vmatmul.mubr.bf16.gmra.mrb[0].mxu0 %v1718
        %v1776 = vpop.f32.mrb[0].mxu0
        %v1777 = vadd.f32 %v1665, %v1776
        %v1778 = vpop.f32.mrb[0].mxu0
        %v1779 = vadd.f32 %v1665, %v1778
        %v1780 = vpop.f32.mrb[0].mxu0
        %v1781 = vadd.f32 %v1670, %v1780
        %v1782 = vpop.f32.mrb[0].mxu0
        %v1783 = vadd.f32 %v1670, %v1782
        %1784 = vmatprep.mubr.bf16.mxu0 %v1721
        %1785 = vmatmul.mubr.bf16.gmra.mrb[0].mxu0 %v1720
        %v1786 = vpop.f32.mrb[0].mxu0
        %v1787 = vadd.f32 %v1675, %v1786
        %v1788 = vpop.f32.mrb[0].mxu0
        %v1789 = vadd.f32 %v1675, %v1788
        %v1790 = vpop.f32.mrb[0].mxu0
        %v1791 = vadd.f32 %v1680, %v1790
        %v1792 = vpop.f32.mrb[0].mxu0
        %v1793 = vadd.f32 %v1680, %v1792
        %1794 = vmatprep.mubr.bf16.mxu0 %v1723
        %1795 = vmatmul.mubr.bf16.gmra.mrb[0].mxu0 %v1722
        %v1796 = vpop.f32.mrb[0].mxu0
        %v1797 = vadd.f32 %v1685, %v1796
        %v1798 = vpop.f32.mrb[0].mxu0
        %v1799 = vadd.f32 %v1685, %v1798
        %v1800 = vpop.f32.mrb[0].mxu0
        %v1801 = vadd.f32 %v1690, %v1800
        %v1802 = vpop.f32.mrb[0].mxu0
        %v1803 = vadd.f32 %v1690, %v1802
        %1804 = vdwg.mxu0
        %v1805 = vmax.f32 %v1767, 0.0
        %v1806 = vmax.f32 %v1769, 0.0
        %v1807 = vmax.f32 %v1771, 0.0
        %v1808 = vmax.f32 %v1773, 0.0
        %v1809 = vmax.f32 %v1777, 0.0
        %v1810 = vmax.f32 %v1779, 0.0
        %v1811 = vmax.f32 %v1781, 0.0
        %v1812 = vmax.f32 %v1783, 0.0
        %v1813 = vmax.f32 %v1787, 0.0
        %v1814 = vmax.f32 %v1789, 0.0
        %v1815 = vmax.f32 %v1791, 0.0
        %v1816 = vmax.f32 %v1793, 0.0
        %v1817 = vmax.f32 %v1797, 0.0
        %v1818 = vmax.f32 %v1799, 0.0
        %v1819 = vmax.f32 %v1801, 0.0
        %v1820 = vmax.f32 %v1803, 0.0
        %v1821 = vmax.f32 %v1805, %v1806
        %1822 = vmax.xlane.f32.xlu0 %v1821
        %v1823 = vpop.xlane.xlu0 %1822
        %v1824 = vmax.f32 %v1807, %v1808
        %1825 = vmax.xlane.f32.xlu0 %v1824
        %v1826 = vpop.xlane.xlu0 %1825
        %v1827 = vmax.f32 %v1809, %v1810
        %1828 = vmax.xlane.f32.xlu0 %v1827
        %v1829 = vpop.xlane.xlu0 %1828
        %v1830 = vmax.f32 %v1811, %v1812
        %1831 = vmax.xlane.f32.xlu0 %v1830
        %v1832 = vpop.xlane.xlu0 %1831
        %v1833 = vmax.f32 %v1813, %v1814
        %1834 = vmax.xlane.f32.xlu0 %v1833
        %v1835 = vpop.xlane.xlu0 %1834
        %v1836 = vmax.f32 %v1815, %v1816
        %1837 = vmax.xlane.f32.xlu0 %v1836
        %v1838 = vpop.xlane.xlu0 %1837
        %v1839 = vmax.f32 %v1817, %v1818
        %1840 = vmax.xlane.f32.xlu0 %v1839
        %v1841 = vpop.xlane.xlu0 %1840
        %v1842 = vmax.f32 %v1819, %v1820
        %1843 = vmax.xlane.f32.xlu0 %v1842
        %v1844 = vpop.xlane.xlu0 %1843
        %p1845 = scmp.eq.s32.totalorder %s35, 0
        // Predicated region
        $region93: #{tpu_custom_call.1} parent=55 // pred_check
          %p1846 = pneg %p1845
        $region94: #{tpu_custom_call.1} parent=55 // pred_check_branch
          %1848 = sbr.rel (%p1846) target = $region96
        $region95: #{tpu_custom_call.1} parent=55 // pred_region
          %vm1849 = vcmask 7168
          %1850 = vst.msk [vmem:[%s480] sm:$0xff] %vm1849, %v1823
          %1851 = vst.msk [vmem:[%s480 + $0x8] sm:$0xff] %vm1849, %v1826
          %1852 = vst.msk [vmem:[%s480 + $0x10] sm:$0xff] %vm1849, %v1829
          %1853 = vst.msk [vmem:[%s480 + $0x18] sm:$0xff] %vm1849, %v1832
          %1854 = vst.msk [vmem:[%s480 + $0x20] sm:$0xff] %vm1849, %v1835
          %1855 = vst.msk [vmem:[%s480 + $0x28] sm:$0xff] %vm1849, %v1838
          %1856 = vst.msk [vmem:[%s480 + $0x30] sm:$0xff] %vm1849, %v1841
          %1857 = vst.msk [vmem:[%s480 + $0x38] sm:$0xff] %vm1849, %v1844
        $region96: #{tpu_custom_call.1} parent=55 // pred_fallthru
          _
        %p1858 = scmp.ne.s32.totalorder %s35, 0
        // Predicated region
        $region97: #{tpu_custom_call.1} parent=55 // pred_check
          %p1859 = pneg %p1858
        $region98: #{tpu_custom_call.1} parent=55 // pred_check_branch
          %1861 = sbr.rel (%p1859) target = $region100
        $region99: #{tpu_custom_call.1} parent=55 // pred_region
          %v1862 = vld [vmem:[%s480] sm:$0xff]
          %v1863 = vld [vmem:[%s480 + $0x8] sm:$0xff]
          %v1864 = vld [vmem:[%s480 + $0x10] sm:$0xff]
          %v1865 = vld [vmem:[%s480 + $0x18] sm:$0xff]
          %v1866 = vld [vmem:[%s480 + $0x20] sm:$0xff]
          %v1867 = vld [vmem:[%s480 + $0x28] sm:$0xff]
          %v1868 = vld [vmem:[%s480 + $0x30] sm:$0xff]
          %v1869 = vld [vmem:[%s480 + $0x38] sm:$0xff]
          %v1870 = vmax.f32 %v1862, %v1823
          %v1871 = vmax.f32 %v1863, %v1826
          %v1872 = vmax.f32 %v1864, %v1829
          %v1873 = vmax.f32 %v1865, %v1832
          %v1874 = vmax.f32 %v1866, %v1835
          %v1875 = vmax.f32 %v1867, %v1838
          %v1876 = vmax.f32 %v1868, %v1841
          %v1877 = vmax.f32 %v1869, %v1844
          %vm1878 = vcmask 7168
          %1879 = vst.msk [vmem:[%s480] sm:$0xff] %vm1878, %v1870
          %1880 = vst.msk [vmem:[%s480 + $0x8] sm:$0xff] %vm1878, %v1871
          %1881 = vst.msk [vmem:[%s480 + $0x10] sm:$0xff] %vm1878, %v1872
          %1882 = vst.msk [vmem:[%s480 + $0x18] sm:$0xff] %vm1878, %v1873
          %1883 = vst.msk [vmem:[%s480 + $0x20] sm:$0xff] %vm1878, %v1874
          %1884 = vst.msk [vmem:[%s480 + $0x28] sm:$0xff] %vm1878, %v1875
          %1885 = vst.msk [vmem:[%s480 + $0x30] sm:$0xff] %vm1878, %v1876
          %1886 = vst.msk [vmem:[%s480 + $0x38] sm:$0xff] %vm1878, %v1877
        $region100: #{tpu_custom_call.1} parent=55 // pred_fallthru
          _
        %s1887 = sand.u32 %s246, 1
        %s1888 = scalar_lea.sflag [#allocation4], %s1887
        %s1889 = sand.u32 %s246, 1
        %s1890 = smul.addr %s1889, 64
        %s1891 = scalar_lea.vmem [#allocation17], %s1890
        // Predicated region
        $region101: #{tpu_custom_call.1} parent=55 // pred_check
          %p1892 = pneg %p256
        $region102: #{tpu_custom_call.1} parent=55 // pred_check_branch
          %1894 = sbr.rel (%p1892) target = $region104
        $region103: #{tpu_custom_call.1} parent=55 // pred_region
          %s1896 = ssub.s32 1024, 1024
          %1897 = vsyncadd %s1888, %s1896
          %s1898 = smul.addr %s34, 8
          %s1899 = smul.addr %s1898, 128
          %s1900 = scalar_lea.hbm %s9, %s1899
          %s1901 = sshll.u32 %s1891, 4
          %s1902 = int_to_ptr.vmem [resolvable:$true] %s1901
          %1907 = dma.vmem_to_hbm [thread:$0]  %s1902, 1024, %s1900, %s1888, 128, 128, 8
        $region104: #{tpu_custom_call.1} parent=55 // pred_fallthru
          _
      $region56: #{tpu_custom_call.1} parent=5 // pred_fallthru
        _
      %p1908 = scmp.le.s32.totalorder 2, %s25
      // Predicated region
      $region105: #{tpu_custom_call.1} parent=5 // pred_check
        %p1909 = pneg %p1908
      $region106: #{tpu_custom_call.1} parent=5 // pred_check_branch
        %1911 = sbr.rel (%p1909) target = $region108
      $region107: #{tpu_custom_call.1} parent=5 // pred_region
        %s1912 = ssub.s32 %s25, 2
        // Predicated region
        $region109: #{tpu_custom_call.1} parent=107 // pred_check
          %p1913 = pneg %p262
        $region110: #{tpu_custom_call.1} parent=107 // pred_check_branch
          %1915 = sbr.rel (%p1913) target = $region112
        $region111: #{tpu_custom_call.1} parent=107 // pred_region
          %s1916 = sand.u32 %s247, 1
          %s1917 = scalar_lea.sflag [#allocation4], %s1916
          %s1918 = sand.u32 %s247, 1
          %s1919 = smul.addr %s1918, 64
          %s1920 = scalar_lea.vmem [#allocation17], %s1919
          %1921 = dma.done %s1917, 1024
        $region112: #{tpu_custom_call.1} parent=107 // pred_fallthru
          _
      $region108: #{tpu_custom_call.1} parent=5 // pred_fallthru
        _
    $region6: #{tpu_custom_call.1} parent=1 // loop_footer
      %s29 = sadd.s32 1, %s25
    $region7: #{tpu_custom_call.1} parent=1 // loop_footer_branch
      %24 = sbr.rel target = $region3
    $region8: #{tpu_custom_call.1} parent=1 // loop_exit
      _
    %1922 = vsyncpa [#allocation3], 1
    %s1923 = scalar_lea.sflag [#allocation3], 1
    %1924 = vsyncpa %s1923, 1
    %1925 = vsyncpa [#allocation6], 1
    %1926 = vsyncpa [#allocation9], 1
    %1927 = vsyncpa [#allocation12], 1
    %1928 = vsyncpa [#allocation15], 1
    %1929 = vsyncpa [#allocation4], 1
    %s1930 = scalar_lea.sflag [#allocation4], 1
    %1931 = vsyncpa %s1930, 1

</llo_original>
